<compile_context>
chip_gen: v7x
topology: tpu7x:2x2x1
jax: 0.10.0
libtpu: 0.0.40
codegen_flags: <defaults>
</compile_context>

<pallas_src>
import functools

import jax
import jax.numpy as jnp
from jax.experimental import pallas as pl
from jax.experimental.pallas import tpu as pltpu


def _ts2img_kernel(img_ref, w1_ref, b1_ref, w2_ref, b2_ref, w3_ref, b3_ref,
                   mask_ref, m_ref, out_ref, a1_ref, a2_ref, *,
                   Lp2, Pp, G, Bb):
    """One grid step = Bb batch elements, flat padded image layout.

    img_ref  : [1, 4, P+2]        flat padded 4-channel image (+1 guard lane/side)
    w1_ref   : [hidden, 12]       conv1d weight, columns ordered (tap, in_ch)
    b1_ref   : [hidden, 1]
    w2_ref   : [h_half, 9*hidden] columns ordered (kd, kl, in_ch)
    b2_ref   : [h_half, 1]
    w3_ref   : [c_out, 9*h_half]
    b3_ref   : [c_out, 1]
    mask_ref : [1, P]             1.0 at interior pixels, 0.0 at padded border
    m_ref    : [Pp, H*W]          per-sample fused bilinear-resize matrix
    out_ref  : [1, c_out, Bb*H*W]
    a1_ref   : [hidden, P+2G]     scratch: conv1 output (flat padded)
    a2_ref   : [h_half, P+2G]     scratch: conv2 output (flat padded)
    """
    P = mask_ref.shape[1]
    HW = m_ref.shape[1]
    hidden = w1_ref.shape[0]
    h_half = w2_ref.shape[0]
    interior = mask_ref[...] > 0.5                       # [1, P]

    # Zero guard bands each step (a handful of aligned vreg stores). This is
    # megacore-safe (each TensorCore owns its own scratch) and guarantees the
    # lane-shifted tap reads below never touch uninitialized VMEM; the border
    # outputs they feed are masked out by jnp.where anyway.
    zeros_h = jnp.zeros((hidden, G), jnp.float32)
    zeros_q = jnp.zeros((h_half, G), jnp.float32)
    a1_ref[:, :G] = zeros_h
    a1_ref[:, G + P:] = zeros_h
    a2_ref[:, :G] = zeros_q
    a2_ref[:, G + P:] = zeros_q

    # ---- Conv1d(4 -> hidden, k=3, pad=1), no activation:
    #      3 lane-shifted dots accumulated in f32 (no im2col slab).
    y1 = None
    for kl in range(3):
        w_tap = w1_ref[:, kl * 4:(kl + 1) * 4]                     # [hidden, 4]
        d = jnp.dot(w_tap, img_ref[0, :, kl:kl + P],
                    preferred_element_type=jnp.float32)
        y1 = d if y1 is None else y1 + d
    a1_ref[:, G:G + P] = jnp.where(interior, y1 + b1_ref[...], 0.0)

    # ---- Conv2d(hidden -> hidden//2, 3x3, pad=1) + ReLU:
    #      9 lane-shifted dots accumulated in f32 (no concat materialization).
    y2 = None
    for kd in range(3):
        for kl in range(3):
            off = G + (kd - 1) * Lp2 + (kl - 1)
            w_tap = w2_ref[:, (kd * 3 + kl) * hidden:(kd * 3 + kl + 1) * hidden]
            d = jnp.dot(w_tap, a1_ref[:, off:off + P],
                        preferred_element_type=jnp.float32)
            y2 = d if y2 is None else y2 + d
    a2_ref[:, G:G + P] = jnp.where(
        interior, jnp.maximum(y2 + b2_ref[...], 0.0), 0.0)

    # ---- Conv2d(hidden//2 -> c_out, 3x3, pad=1) + ReLU
    y3 = None
    for kd in range(3):
        for kl in range(3):
            off = G + (kd - 1) * Lp2 + (kl - 1)
            w_tap = w3_ref[:, (kd * 3 + kl) * h_half:(kd * 3 + kl + 1) * h_half]
            d = jnp.dot(w_tap, a2_ref[:, off:off + P],
                        preferred_element_type=jnp.float32)
            y3 = d if y3 is None else y3 + d
    y3 = jnp.where(interior, jnp.maximum(y3 + b3_ref[...], 0.0), 0.0)

    # ---- bilinear resize: one [c_out, Pp] @ [Pp, H*W] dot per local batch;
    #      each output store is an H*W-aligned, lane-dense slab.
    for b in range(Bb):
        out_ref[0, :, b * HW:(b + 1) * HW] = jnp.dot(
            y3[:, b * Pp:(b + 1) * Pp], m_ref[...],
            preferred_element_type=jnp.float32)


def _interp_matrix(in_size, out_size):
    """1-D interpolation matrix matching torch bilinear, align_corners=False."""
    scale = in_size / out_size
    i = jnp.arange(out_size, dtype=jnp.float32)
    src = jnp.maximum((i + 0.5) * scale - 0.5, 0.0)
    i0 = jnp.clip(jnp.floor(src), 0.0, in_size - 1.0)
    i1 = jnp.minimum(i0 + 1.0, in_size - 1.0)
    w1 = src - i0
    w0 = 1.0 - w1
    cols = jnp.arange(in_size, dtype=jnp.float32)
    oh0 = (cols[None, :] == i0[:, None]).astype(jnp.float32)
    oh1 = (cols[None, :] == i1[:, None]).astype(jnp.float32)
    return w0[:, None] * oh0 + w1[:, None] * oh1                    # [out, in]


def learnable_ts_to_image(x_enc, params, image_size, periodicity, max_block_b=8):
    B, L, D = x_enc.shape
    hidden = params["w1"].shape[0]
    h_half = params["w2"].shape[0]
    c_out = params["w3"].shape[0]
    H = W = image_size
    HW = H * W
    Lp2 = L + 2
    Pp = (D + 2) * Lp2                       # flat padded pixels per sample

    # ---- batch tiling: aim for ~512 lanes per step; keep >= 2 grid steps so
    #      the "parallel" batch axis can feed both v7x TensorCores; pad B up
    #      to a multiple of Bb (padded samples are dropped at the end).
    Bb = max(1, min(max_block_b, max(1, 512 // Pp)))
    Bb = min(Bb, (B + 1) // 2) if B >= 2 else 1
    B_outer = -(-B // Bb)
    B_pad = B_outer * Bb
    P = Bb * Pp
    G = ((Lp2 + 1 + 127) // 128) * 128       # lane-aligned guard width

    # ---- glue: 4-channel stack [x, |rfft(x)| (zero padded), sin, cos]
    # TODO(synk): the rfft magnitude channel is computed here in XLA (no Pallas FFT).
    x_enc = x_enc.astype(jnp.float32)
    t = jnp.arange(L, dtype=jnp.float32)
    phase = t / periodicity * (2.0 * jnp.pi)
    sin_t = jnp.broadcast_to(jnp.sin(phase)[None, :, None], (B, L, D))
    cos_t = jnp.broadcast_to(jnp.cos(phase)[None, :, None], (B, L, D))
    mag = jnp.abs(jnp.fft.rfft(x_enc, axis=1)).astype(jnp.float32)   # [B, L//2+1, D]
    mag = jnp.concatenate(
        [mag, jnp.zeros((B, L - mag.shape[1], D), jnp.float32)], axis=1)
    chans = jnp.stack([x_enc, mag, sin_t, cos_t], axis=-1)           # [B, L, D, 4]
    feat = jnp.transpose(chans, (0, 2, 3, 1))                        # [B, D, 4, L]
    if B_pad != B:
        feat = jnp.pad(feat, ((0, B_pad - B), (0, 0), (0, 0), (0, 0)))

    # ---- glue: flat padded 4-channel image per grid step: [B_outer, 4, P+2]
    img = jnp.transpose(feat, (0, 2, 1, 3))                          # [B_pad, 4, D, L]
    img = jnp.pad(img, ((0, 0), (0, 0), (1, 1), (1, 1)))             # [B_pad, 4, D+2, L+2]
    img = img.reshape(B_outer, Bb, 4, Pp)
    img = jnp.transpose(img, (0, 2, 1, 3)).reshape(B_outer, 4, P)
    img = jnp.pad(img, ((0, 0), (0, 0), (1, 1)))                     # +1 guard lane/side

    # ---- conv weights flattened so each tap is a contiguous column block
    w1f = jnp.transpose(params["w1"], (0, 2, 1)).reshape(hidden, 12).astype(jnp.float32)
    w2f = jnp.transpose(params["w2"], (0, 2, 3, 1)).reshape(h_half, 9 * hidden).astype(jnp.float32)
    w3f = jnp.transpose(params["w3"], (0, 2, 3, 1)).reshape(c_out, 9 * h_half).astype(jnp.float32)
    b1 = params["b1"].reshape(hidden, 1).astype(jnp.float32)
    b2 = params["b2"].reshape(h_half, 1).astype(jnp.float32)
    b3 = params["b3"].reshape(c_out, 1).astype(jnp.float32)

    # interior mask over flat padded pixels
    mask2d = jnp.pad(jnp.ones((D, L), jnp.float32), ((1, 1), (1, 1)))
    mask = jnp.tile(mask2d.reshape(-1), Bb)[None, :]                 # [1, P]

    # per-sample fused bilinear-resize matrix (no kron over Bb)
    Rm = _interp_matrix(D, H)                                        # [H, D]
    Cw = _interp_matrix(L, W)                                        # [W, L]
    Rp = jnp.pad(Rm, ((0, 0), (1, 1)))                               # [H, D+2]
    Cp = jnp.pad(Cw.T, ((1, 1), (0, 0)))                             # [L+2, W]
    M1 = jnp.kron(Rp.T, Cp)                                          # [Pp, H*W]

    kernel = functools.partial(_ts2img_kernel, Lp2=Lp2, Pp=Pp, G=G, Bb=Bb)

    def build_and_run(single_buffer_consts):
        def cspec(shape):
            idx = lambda b: (0,) * len(shape)
            if single_buffer_consts:
                return pl.BlockSpec(shape, idx, pipeline_mode=pl.Buffered(1))
            return pl.BlockSpec(shape, idx)

        grid_spec = pltpu.PrefetchScalarGridSpec(
            num_scalar_prefetch=0,
            grid=(B_outer,),
            in_specs=[
                pl.BlockSpec((1, 4, P + 2), lambda b: (b, 0, 0)),
                cspec((hidden, 12)),
                cspec((hidden, 1)),
                cspec((h_half, 9 * hidden)),
                cspec((h_half, 1)),
                cspec((c_out, 9 * h_half)),
                cspec((c_out, 1)),
                cspec((1, P)),
                cspec((Pp, HW)),
            ],
            out_specs=pl.BlockSpec((1, c_out, Bb * HW), lambda b: (b, 0, 0)),
            scratch_shapes=[
                pltpu.VMEM((hidden, P + 2 * G), jnp.float32),   # conv1 out, flat padded
                pltpu.VMEM((h_half, P + 2 * G), jnp.float32),   # conv2 out, flat padded
            ],
        )
        return pl.pallas_call(
            kernel,
            out_shape=jax.ShapeDtypeStruct((B_outer, c_out, Bb * HW), jnp.float32),
            grid_spec=grid_spec,
            compiler_params=pltpu.CompilerParams(
                dimension_semantics=("parallel",),
                vmem_limit_bytes=32 * 1024 * 1024),
        )(img, w1f, b1, w2f, b2, w3f, b3, mask, M1)

    try:
        out_flat = build_and_run(True)
    except Exception:
        # pl.Buffered(1) / pipeline_mode not supported on this jax version:
        # fall back to default (double-buffered) constant inputs.
        out_flat = build_and_run(False)

    # lane-dense kernel output -> NCHW (pure XLA glue), drop padded samples
    out = out_flat.reshape(B_outer, c_out, Bb, H, W)
    out = jnp.transpose(out, (0, 2, 1, 3, 4)).reshape(B_pad, c_out, H, W)
    return out[:B]


if __name__ == "__main__":
    # module hyper-params: input_dim=D, hidden_dim=32, output_channels=3,
    # image_size=16, periodicity=4 ; input x_enc: [B, L, D]
    B, L, D = 2, 8, 4
    hidden_dim, output_channels = 32, 3
    image_size, periodicity = 16, 4

    key = jax.random.PRNGKey(0)
    ks = jax.random.split(key, 7)
    x_enc = jax.random.normal(ks[0], (B, L, D), jnp.float32)

    def uinit(k, shape, fan_in):
        bound = 1.0 / (fan_in ** 0.5)
        return jax.random.uniform(k, shape, jnp.float32, -bound, bound)

    params = dict(
        w1=uinit(ks[1], (hidden_dim, 4, 3), 4 * 3),                       # Conv1d weight
        b1=uinit(ks[2], (hidden_dim,), 4 * 3),
        w2=uinit(ks[3], (hidden_dim // 2, hidden_dim, 3, 3), hidden_dim * 9),
        b2=uinit(ks[4], (hidden_dim // 2,), hidden_dim * 9),
        w3=uinit(ks[5], (output_channels, hidden_dim // 2, 3, 3), (hidden_dim // 2) * 9),
        b3=uinit(ks[6], (output_channels,), (hidden_dim // 2) * 9),
    )

    out = learnable_ts_to_image(x_enc, params, image_size, periodicity)
    out = jax.block_until_ready(out)
    assert out.shape == (B, output_channels, image_size, image_size), out.shape
    assert bool(jnp.all(jnp.isfinite(out)))
    print("KERNEL_OK")
</pallas_src>

<mosaic_0001>
module attributes {stable_mosaic.version = 11 : i64} {
  func.func @_ts2img_kernel(%arg0: i32, %arg1: memref<1x4x62xf32, #tpu.memory_space<vmem>>, %arg2: memref<32x12xf32, #tpu.memory_space<vmem>>, %arg3: memref<32x1xf32, #tpu.memory_space<vmem>>, %arg4: memref<16x288xf32, #tpu.memory_space<vmem>>, %arg5: memref<16x1xf32, #tpu.memory_space<vmem>>, %arg6: memref<3x144xf32, #tpu.memory_space<vmem>>, %arg7: memref<3x1xf32, #tpu.memory_space<vmem>>, %arg8: memref<1x60xf32, #tpu.memory_space<vmem>>, %arg9: memref<60x256xf32, #tpu.memory_space<vmem>>, %arg10: memref<1x3x256xf32, #tpu.memory_space<vmem>>, %arg11: memref<32x316xf32, #tpu.memory_space<vmem>>, %arg12: memref<16x316xf32, #tpu.memory_space<vmem>>) attributes {dimension_semantics = [#tpu.dimension_semantics<parallel>], iteration_bounds = array<i64: 2>, scalar_prefetch = 0 : i64, scratch_operands = 2 : i64, tpu.core_type = #tpu.core_type<tc>, window_params = [{transform_indices = @transform_0, window_bounds = array<i64: 1, 4, 62>}, {pipeline_mode = #tpu.pipeline_mode<synchronous>, transform_indices = @transform_1, window_bounds = array<i64: 32, 12>}, {pipeline_mode = #tpu.pipeline_mode<synchronous>, transform_indices = @transform_2, window_bounds = array<i64: 32, 1>}, {pipeline_mode = #tpu.pipeline_mode<synchronous>, transform_indices = @transform_3, window_bounds = array<i64: 16, 288>}, {pipeline_mode = #tpu.pipeline_mode<synchronous>, transform_indices = @transform_4, window_bounds = array<i64: 16, 1>}, {pipeline_mode = #tpu.pipeline_mode<synchronous>, transform_indices = @transform_5, window_bounds = array<i64: 3, 144>}, {pipeline_mode = #tpu.pipeline_mode<synchronous>, transform_indices = @transform_6, window_bounds = array<i64: 3, 1>}, {pipeline_mode = #tpu.pipeline_mode<synchronous>, transform_indices = @transform_7, window_bounds = array<i64: 1, 60>}, {pipeline_mode = #tpu.pipeline_mode<synchronous>, transform_indices = @transform_8, window_bounds = array<i64: 60, 256>}, {transform_indices = @transform_9, window_bounds = array<i64: 1, 3, 256>}]} {
    %c0 = arith.constant 0 : index
    %c0_0 = arith.constant 0 : index
    %0 = vector.load %arg8[%c0, %c0_0] : memref<1x60xf32, #tpu.memory_space<vmem>>, vector<1x60xf32>
    %cst = arith.constant 5.000000e-01 : f32
    %1 = vector.broadcast %cst : f32 to vector<1x60xf32>
    %2 = arith.cmpf ogt, %0, %1 : vector<1x60xf32>
    %cst_1 = arith.constant 0.000000e+00 : f32
    %3 = vector.broadcast %cst_1 : f32 to vector<32x128xf32>
    %cst_2 = arith.constant 0.000000e+00 : f32
    %4 = vector.broadcast %cst_2 : f32 to vector<16x128xf32>
    %c0_3 = arith.constant 0 : index
    %c0_4 = arith.constant 0 : index
    %5 = vector.load %arg11[%c0_3, %c0_4] : memref<32x316xf32, #tpu.memory_space<vmem>>, vector<32x128xf32>
    tpu.vector_store %arg11[%c0_3, %c0_4], %3 {strides = array<i32>} : memref<32x316xf32, #tpu.memory_space<vmem>>, vector<32x128xf32>,
    %c0_5 = arith.constant 0 : index
    %c188 = arith.constant 188 : index
    %6 = vector.load %arg11[%c0_5, %c188] : memref<32x316xf32, #tpu.memory_space<vmem>>, vector<32x128xf32>
    tpu.vector_store %arg11[%c0_5, %c188], %3 {strides = array<i32>} : memref<32x316xf32, #tpu.memory_space<vmem>>, vector<32x128xf32>,
    %c0_6 = arith.constant 0 : index
    %c0_7 = arith.constant 0 : index
    %7 = vector.load %arg12[%c0_6, %c0_7] : memref<16x316xf32, #tpu.memory_space<vmem>>, vector<16x128xf32>
    tpu.vector_store %arg12[%c0_6, %c0_7], %4 {strides = array<i32>} : memref<16x316xf32, #tpu.memory_space<vmem>>, vector<16x128xf32>,
    %c0_8 = arith.constant 0 : index
    %c188_9 = arith.constant 188 : index
    %8 = vector.load %arg12[%c0_8, %c188_9] : memref<16x316xf32, #tpu.memory_space<vmem>>, vector<16x128xf32>
    tpu.vector_store %arg12[%c0_8, %c188_9], %4 {strides = array<i32>} : memref<16x316xf32, #tpu.memory_space<vmem>>, vector<16x128xf32>,
    %c0_10 = arith.constant 0 : index
    %c0_11 = arith.constant 0 : index
    %9 = vector.load %arg2[%c0_10, %c0_11] : memref<32x12xf32, #tpu.memory_space<vmem>>, vector<32x4xf32>
    %c0_12 = arith.constant 0 : index
    %c0_13 = arith.constant 0 : index
    %c0_14 = arith.constant 0 : index
    %10 = vector.load %arg1[%c0_12, %c0_13, %c0_14] : memref<1x4x62xf32, #tpu.memory_space<vmem>>, vector<1x4x60xf32>
    %11 = vector.shape_cast %10 : vector<1x4x60xf32> to vector<4x60xf32>
    %cst_15 = arith.constant dense<0.000000e+00> : vector<32x60xf32>
    %12 = tpu.matmul %9, %11, %cst_15 {dimension_numbers = #tpu.dot_dimension_numbers<[1], [0], [0], [1], [0, 0, 1, 1], [], []>} : vector<32x4xf32>, vector<4x60xf32>, vector<32x60xf32> -> vector<32x60xf32>
    %c0_16 = arith.constant 0 : index
    %c4 = arith.constant 4 : index
    %13 = vector.load %arg2[%c0_16, %c4] : memref<32x12xf32, #tpu.memory_space<vmem>>, vector<32x4xf32>
    %c0_17 = arith.constant 0 : index
    %c0_18 = arith.constant 0 : index
    %c1 = arith.constant 1 : index
    %14 = vector.load %arg1[%c0_17, %c0_18, %c1] : memref<1x4x62xf32, #tpu.memory_space<vmem>>, vector<1x4x60xf32>
    %15 = vector.shape_cast %14 : vector<1x4x60xf32> to vector<4x60xf32>
    %cst_19 = arith.constant dense<0.000000e+00> : vector<32x60xf32>
    %16 = tpu.matmul %13, %15, %cst_19 {dimension_numbers = #tpu.dot_dimension_numbers<[1], [0], [0], [1], [0, 0, 1, 1], [], []>} : vector<32x4xf32>, vector<4x60xf32>, vector<32x60xf32> -> vector<32x60xf32>
    %17 = arith.addf %12, %16 : vector<32x60xf32>
    %c0_20 = arith.constant 0 : index
    %c8 = arith.constant 8 : index
    %18 = vector.load %arg2[%c0_20, %c8] : memref<32x12xf32, #tpu.memory_space<vmem>>, vector<32x4xf32>
    %c0_21 = arith.constant 0 : index
    %c0_22 = arith.constant 0 : index
    %c2 = arith.constant 2 : index
    %19 = vector.load %arg1[%c0_21, %c0_22, %c2] : memref<1x4x62xf32, #tpu.memory_space<vmem>>, vector<1x4x60xf32>
    %20 = vector.shape_cast %19 : vector<1x4x60xf32> to vector<4x60xf32>
    %cst_23 = arith.constant dense<0.000000e+00> : vector<32x60xf32>
    %21 = tpu.matmul %18, %20, %cst_23 {dimension_numbers = #tpu.dot_dimension_numbers<[1], [0], [0], [1], [0, 0, 1, 1], [], []>} : vector<32x4xf32>, vector<4x60xf32>, vector<32x60xf32> -> vector<32x60xf32>
    %22 = arith.addf %17, %21 : vector<32x60xf32>
    %c0_24 = arith.constant 0 : index
    %c0_25 = arith.constant 0 : index
    %23 = vector.load %arg3[%c0_24, %c0_25] : memref<32x1xf32, #tpu.memory_space<vmem>>, vector<32x1xf32>
    %24 = vector.broadcast %23 : vector<32x1xf32> to vector<32x60xf32>
    %25 = arith.addf %22, %24 : vector<32x60xf32>
    %cst_26 = arith.constant 0.000000e+00 : f32
    %26 = vector.shape_cast %2 : vector<1x60xi1> to vector<1x60xi1>
    %27 = vector.broadcast %26 : vector<1x60xi1> to vector<32x60xi1>
    %28 = vector.broadcast %cst_26 : f32 to vector<32x60xf32>
    %29 = arith.select %27, %25, %28 : vector<32x60xi1>, vector<32x60xf32>
    %c0_27 = arith.constant 0 : index
    %c128 = arith.constant 128 : index
    %30 = vector.load %arg11[%c0_27, %c128] : memref<32x316xf32, #tpu.memory_space<vmem>>, vector<32x60xf32>
    tpu.vector_store %arg11[%c0_27, %c128], %29 {strides = array<i32>} : memref<32x316xf32, #tpu.memory_space<vmem>>, vector<32x60xf32>,
    %c0_28 = arith.constant 0 : index
    %c0_29 = arith.constant 0 : index
    %31 = vector.load %arg4[%c0_28, %c0_29] : memref<16x288xf32, #tpu.memory_space<vmem>>, vector<16x32xf32>
    %c0_30 = arith.constant 0 : index
    %c117 = arith.constant 117 : index
    %32 = vector.load %arg11[%c0_30, %c117] : memref<32x316xf32, #tpu.memory_space<vmem>>, vector<32x60xf32>
    %cst_31 = arith.constant dense<0.000000e+00> : vector<16x60xf32>
    %33 = tpu.matmul %31, %32, %cst_31 {dimension_numbers = #tpu.dot_dimension_numbers<[1], [0], [0], [1], [0, 0, 1, 1], [], []>} : vector<16x32xf32>, vector<32x60xf32>, vector<16x60xf32> -> vector<16x60xf32>
    %c0_32 = arith.constant 0 : index
    %c32 = arith.constant 32 : index
    %34 = vector.load %arg4[%c0_32, %c32] : memref<16x288xf32, #tpu.memory_space<vmem>>, vector<16x32xf32>
    %c0_33 = arith.constant 0 : index
    %c118 = arith.constant 118 : index
    %35 = vector.load %arg11[%c0_33, %c118] : memref<32x316xf32, #tpu.memory_space<vmem>>, vector<32x60xf32>
    %cst_34 = arith.constant dense<0.000000e+00> : vector<16x60xf32>
    %36 = tpu.matmul %34, %35, %cst_34 {dimension_numbers = #tpu.dot_dimension_numbers<[1], [0], [0], [1], [0, 0, 1, 1], [], []>} : vector<16x32xf32>, vector<32x60xf32>, vector<16x60xf32> -> vector<16x60xf32>
    %37 = arith.addf %33, %36 : vector<16x60xf32>
    %c0_35 = arith.constant 0 : index
    %c64 = arith.constant 64 : index
    %38 = vector.load %arg4[%c0_35, %c64] : memref<16x288xf32, #tpu.memory_space<vmem>>, vector<16x32xf32>
    %c0_36 = arith.constant 0 : index
    %c119 = arith.constant 119 : index
    %39 = vector.load %arg11[%c0_36, %c119] : memref<32x316xf32, #tpu.memory_space<vmem>>, vector<32x60xf32>
    %cst_37 = arith.constant dense<0.000000e+00> : vector<16x60xf32>
    %40 = tpu.matmul %38, %39, %cst_37 {dimension_numbers = #tpu.dot_dimension_numbers<[1], [0], [0], [1], [0, 0, 1, 1], [], []>} : vector<16x32xf32>, vector<32x60xf32>, vector<16x60xf32> -> vector<16x60xf32>
    %41 = arith.addf %37, %40 : vector<16x60xf32>
    %c0_38 = arith.constant 0 : index
    %c96 = arith.constant 96 : index
    %42 = vector.load %arg4[%c0_38, %c96] : memref<16x288xf32, #tpu.memory_space<vmem>>, vector<16x32xf32>
    %c0_39 = arith.constant 0 : index
    %c127 = arith.constant 127 : index
    %43 = vector.load %arg11[%c0_39, %c127] : memref<32x316xf32, #tpu.memory_space<vmem>>, vector<32x60xf32>
    %cst_40 = arith.constant dense<0.000000e+00> : vector<16x60xf32>
    %44 = tpu.matmul %42, %43, %cst_40 {dimension_numbers = #tpu.dot_dimension_numbers<[1], [0], [0], [1], [0, 0, 1, 1], [], []>} : vector<16x32xf32>, vector<32x60xf32>, vector<16x60xf32> -> vector<16x60xf32>
    %45 = arith.addf %41, %44 : vector<16x60xf32>
    %c0_41 = arith.constant 0 : index
    %c128_42 = arith.constant 128 : index
    %46 = vector.load %arg4[%c0_41, %c128_42] : memref<16x288xf32, #tpu.memory_space<vmem>>, vector<16x32xf32>
    %c0_43 = arith.constant 0 : index
    %c128_44 = arith.constant 128 : index
    %47 = vector.load %arg11[%c0_43, %c128_44] : memref<32x316xf32, #tpu.memory_space<vmem>>, vector<32x60xf32>
    %cst_45 = arith.constant dense<0.000000e+00> : vector<16x60xf32>
    %48 = tpu.matmul %46, %47, %cst_45 {dimension_numbers = #tpu.dot_dimension_numbers<[1], [0], [0], [1], [0, 0, 1, 1], [], []>} : vector<16x32xf32>, vector<32x60xf32>, vector<16x60xf32> -> vector<16x60xf32>
    %49 = arith.addf %45, %48 : vector<16x60xf32>
    %c0_46 = arith.constant 0 : index
    %c160 = arith.constant 160 : index
    %50 = vector.load %arg4[%c0_46, %c160] : memref<16x288xf32, #tpu.memory_space<vmem>>, vector<16x32xf32>
    %c0_47 = arith.constant 0 : index
    %c129 = arith.constant 129 : index
    %51 = vector.load %arg11[%c0_47, %c129] : memref<32x316xf32, #tpu.memory_space<vmem>>, vector<32x60xf32>
    %cst_48 = arith.constant dense<0.000000e+00> : vector<16x60xf32>
    %52 = tpu.matmul %50, %51, %cst_48 {dimension_numbers = #tpu.dot_dimension_numbers<[1], [0], [0], [1], [0, 0, 1, 1], [], []>} : vector<16x32xf32>, vector<32x60xf32>, vector<16x60xf32> -> vector<16x60xf32>
    %53 = arith.addf %49, %52 : vector<16x60xf32>
    %c0_49 = arith.constant 0 : index
    %c192 = arith.constant 192 : index
    %54 = vector.load %arg4[%c0_49, %c192] : memref<16x288xf32, #tpu.memory_space<vmem>>, vector<16x32xf32>
    %c0_50 = arith.constant 0 : index
    %c137 = arith.constant 137 : index
    %55 = vector.load %arg11[%c0_50, %c137] : memref<32x316xf32, #tpu.memory_space<vmem>>, vector<32x60xf32>
    %cst_51 = arith.constant dense<0.000000e+00> : vector<16x60xf32>
    %56 = tpu.matmul %54, %55, %cst_51 {dimension_numbers = #tpu.dot_dimension_numbers<[1], [0], [0], [1], [0, 0, 1, 1], [], []>} : vector<16x32xf32>, vector<32x60xf32>, vector<16x60xf32> -> vector<16x60xf32>
    %57 = arith.addf %53, %56 : vector<16x60xf32>
    %c0_52 = arith.constant 0 : index
    %c224 = arith.constant 224 : index
    %58 = vector.load %arg4[%c0_52, %c224] : memref<16x288xf32, #tpu.memory_space<vmem>>, vector<16x32xf32>
    %c0_53 = arith.constant 0 : index
    %c138 = arith.constant 138 : index
    %59 = vector.load %arg11[%c0_53, %c138] : memref<32x316xf32, #tpu.memory_space<vmem>>, vector<32x60xf32>
    %cst_54 = arith.constant dense<0.000000e+00> : vector<16x60xf32>
    %60 = tpu.matmul %58, %59, %cst_54 {dimension_numbers = #tpu.dot_dimension_numbers<[1], [0], [0], [1], [0, 0, 1, 1], [], []>} : vector<16x32xf32>, vector<32x60xf32>, vector<16x60xf32> -> vector<16x60xf32>
    %61 = arith.addf %57, %60 : vector<16x60xf32>
    %c0_55 = arith.constant 0 : index
    %c256 = arith.constant 256 : index
    %62 = vector.load %arg4[%c0_55, %c256] : memref<16x288xf32, #tpu.memory_space<vmem>>, vector<16x32xf32>
    %c0_56 = arith.constant 0 : index
    %c139 = arith.constant 139 : index
    %63 = vector.load %arg11[%c0_56, %c139] : memref<32x316xf32, #tpu.memory_space<vmem>>, vector<32x60xf32>
    %cst_57 = arith.constant dense<0.000000e+00> : vector<16x60xf32>
    %64 = tpu.matmul %62, %63, %cst_57 {dimension_numbers = #tpu.dot_dimension_numbers<[1], [0], [0], [1], [0, 0, 1, 1], [], []>} : vector<16x32xf32>, vector<32x60xf32>, vector<16x60xf32> -> vector<16x60xf32>
    %65 = arith.addf %61, %64 : vector<16x60xf32>
    %c0_58 = arith.constant 0 : index
    %c0_59 = arith.constant 0 : index
    %66 = vector.load %arg5[%c0_58, %c0_59] : memref<16x1xf32, #tpu.memory_space<vmem>>, vector<16x1xf32>
    %67 = vector.broadcast %66 : vector<16x1xf32> to vector<16x60xf32>
    %68 = arith.addf %65, %67 : vector<16x60xf32>
    %cst_60 = arith.constant 0.000000e+00 : f32
    %69 = vector.broadcast %cst_60 : f32 to vector<16x60xf32>
    %70 = arith.maximumf %68, %69 : vector<16x60xf32>
    %cst_61 = arith.constant 0.000000e+00 : f32
    %71 = vector.shape_cast %2 : vector<1x60xi1> to vector<1x60xi1>
    %72 = vector.broadcast %71 : vector<1x60xi1> to vector<16x60xi1>
    %73 = vector.broadcast %cst_61 : f32 to vector<16x60xf32>
    %74 = arith.select %72, %70, %73 : vector<16x60xi1>, vector<16x60xf32>
    %c0_62 = arith.constant 0 : index
    %c128_63 = arith.constant 128 : index
    %75 = vector.load %arg12[%c0_62, %c128_63] : memref<16x316xf32, #tpu.memory_space<vmem>>, vector<16x60xf32>
    tpu.vector_store %arg12[%c0_62, %c128_63], %74 {strides = array<i32>} : memref<16x316xf32, #tpu.memory_space<vmem>>, vector<16x60xf32>,
    %c0_64 = arith.constant 0 : index
    %c0_65 = arith.constant 0 : index
    %76 = vector.load %arg6[%c0_64, %c0_65] : memref<3x144xf32, #tpu.memory_space<vmem>>, vector<3x16xf32>
    %c0_66 = arith.constant 0 : index
    %c117_67 = arith.constant 117 : index
    %77 = vector.load %arg12[%c0_66, %c117_67] : memref<16x316xf32, #tpu.memory_space<vmem>>, vector<16x60xf32>
    %cst_68 = arith.constant dense<0.000000e+00> : vector<3x60xf32>
    %78 = tpu.matmul %76, %77, %cst_68 {dimension_numbers = #tpu.dot_dimension_numbers<[1], [0], [0], [1], [0, 0, 1, 1], [], []>} : vector<3x16xf32>, vector<16x60xf32>, vector<3x60xf32> -> vector<3x60xf32>
    %c0_69 = arith.constant 0 : index
    %c16 = arith.constant 16 : index
    %79 = vector.load %arg6[%c0_69, %c16] : memref<3x144xf32, #tpu.memory_space<vmem>>, vector<3x16xf32>
    %c0_70 = arith.constant 0 : index
    %c118_71 = arith.constant 118 : index
    %80 = vector.load %arg12[%c0_70, %c118_71] : memref<16x316xf32, #tpu.memory_space<vmem>>, vector<16x60xf32>
    %cst_72 = arith.constant dense<0.000000e+00> : vector<3x60xf32>
    %81 = tpu.matmul %79, %80, %cst_72 {dimension_numbers = #tpu.dot_dimension_numbers<[1], [0], [0], [1], [0, 0, 1, 1], [], []>} : vector<3x16xf32>, vector<16x60xf32>, vector<3x60xf32> -> vector<3x60xf32>
    %82 = arith.addf %78, %81 : vector<3x60xf32>
    %c0_73 = arith.constant 0 : index
    %c32_74 = arith.constant 32 : index
    %83 = vector.load %arg6[%c0_73, %c32_74] : memref<3x144xf32, #tpu.memory_space<vmem>>, vector<3x16xf32>
    %c0_75 = arith.constant 0 : index
    %c119_76 = arith.constant 119 : index
    %84 = vector.load %arg12[%c0_75, %c119_76] : memref<16x316xf32, #tpu.memory_space<vmem>>, vector<16x60xf32>
    %cst_77 = arith.constant dense<0.000000e+00> : vector<3x60xf32>
    %85 = tpu.matmul %83, %84, %cst_77 {dimension_numbers = #tpu.dot_dimension_numbers<[1], [0], [0], [1], [0, 0, 1, 1], [], []>} : vector<3x16xf32>, vector<16x60xf32>, vector<3x60xf32> -> vector<3x60xf32>
    %86 = arith.addf %82, %85 : vector<3x60xf32>
    %c0_78 = arith.constant 0 : index
    %c48 = arith.constant 48 : index
    %87 = vector.load %arg6[%c0_78, %c48] : memref<3x144xf32, #tpu.memory_space<vmem>>, vector<3x16xf32>
    %c0_79 = arith.constant 0 : index
    %c127_80 = arith.constant 127 : index
    %88 = vector.load %arg12[%c0_79, %c127_80] : memref<16x316xf32, #tpu.memory_space<vmem>>, vector<16x60xf32>
    %cst_81 = arith.constant dense<0.000000e+00> : vector<3x60xf32>
    %89 = tpu.matmul %87, %88, %cst_81 {dimension_numbers = #tpu.dot_dimension_numbers<[1], [0], [0], [1], [0, 0, 1, 1], [], []>} : vector<3x16xf32>, vector<16x60xf32>, vector<3x60xf32> -> vector<3x60xf32>
    %90 = arith.addf %86, %89 : vector<3x60xf32>
    %c0_82 = arith.constant 0 : index
    %c64_83 = arith.constant 64 : index
    %91 = vector.load %arg6[%c0_82, %c64_83] : memref<3x144xf32, #tpu.memory_space<vmem>>, vector<3x16xf32>
    %c0_84 = arith.constant 0 : index
    %c128_85 = arith.constant 128 : index
    %92 = vector.load %arg12[%c0_84, %c128_85] : memref<16x316xf32, #tpu.memory_space<vmem>>, vector<16x60xf32>
    %cst_86 = arith.constant dense<0.000000e+00> : vector<3x60xf32>
    %93 = tpu.matmul %91, %92, %cst_86 {dimension_numbers = #tpu.dot_dimension_numbers<[1], [0], [0], [1], [0, 0, 1, 1], [], []>} : vector<3x16xf32>, vector<16x60xf32>, vector<3x60xf32> -> vector<3x60xf32>
    %94 = arith.addf %90, %93 : vector<3x60xf32>
    %c0_87 = arith.constant 0 : index
    %c80 = arith.constant 80 : index
    %95 = vector.load %arg6[%c0_87, %c80] : memref<3x144xf32, #tpu.memory_space<vmem>>, vector<3x16xf32>
    %c0_88 = arith.constant 0 : index
    %c129_89 = arith.constant 129 : index
    %96 = vector.load %arg12[%c0_88, %c129_89] : memref<16x316xf32, #tpu.memory_space<vmem>>, vector<16x60xf32>
    %cst_90 = arith.constant dense<0.000000e+00> : vector<3x60xf32>
    %97 = tpu.matmul %95, %96, %cst_90 {dimension_numbers = #tpu.dot_dimension_numbers<[1], [0], [0], [1], [0, 0, 1, 1], [], []>} : vector<3x16xf32>, vector<16x60xf32>, vector<3x60xf32> -> vector<3x60xf32>
    %98 = arith.addf %94, %97 : vector<3x60xf32>
    %c0_91 = arith.constant 0 : index
    %c96_92 = arith.constant 96 : index
    %99 = vector.load %arg6[%c0_91, %c96_92] : memref<3x144xf32, #tpu.memory_space<vmem>>, vector<3x16xf32>
    %c0_93 = arith.constant 0 : index
    %c137_94 = arith.constant 137 : index
    %100 = vector.load %arg12[%c0_93, %c137_94] : memref<16x316xf32, #tpu.memory_space<vmem>>, vector<16x60xf32>
    %cst_95 = arith.constant dense<0.000000e+00> : vector<3x60xf32>
    %101 = tpu.matmul %99, %100, %cst_95 {dimension_numbers = #tpu.dot_dimension_numbers<[1], [0], [0], [1], [0, 0, 1, 1], [], []>} : vector<3x16xf32>, vector<16x60xf32>, vector<3x60xf32> -> vector<3x60xf32>
    %102 = arith.addf %98, %101 : vector<3x60xf32>
    %c0_96 = arith.constant 0 : index
    %c112 = arith.constant 112 : index
    %103 = vector.load %arg6[%c0_96, %c112] : memref<3x144xf32, #tpu.memory_space<vmem>>, vector<3x16xf32>
    %c0_97 = arith.constant 0 : index
    %c138_98 = arith.constant 138 : index
    %104 = vector.load %arg12[%c0_97, %c138_98] : memref<16x316xf32, #tpu.memory_space<vmem>>, vector<16x60xf32>
    %cst_99 = arith.constant dense<0.000000e+00> : vector<3x60xf32>
    %105 = tpu.matmul %103, %104, %cst_99 {dimension_numbers = #tpu.dot_dimension_numbers<[1], [0], [0], [1], [0, 0, 1, 1], [], []>} : vector<3x16xf32>, vector<16x60xf32>, vector<3x60xf32> -> vector<3x60xf32>
    %106 = arith.addf %102, %105 : vector<3x60xf32>
    %c0_100 = arith.constant 0 : index
    %c128_101 = arith.constant 128 : index
    %107 = vector.load %arg6[%c0_100, %c128_101] : memref<3x144xf32, #tpu.memory_space<vmem>>, vector<3x16xf32>
    %c0_102 = arith.constant 0 : index
    %c139_103 = arith.constant 139 : index
    %108 = vector.load %arg12[%c0_102, %c139_103] : memref<16x316xf32, #tpu.memory_space<vmem>>, vector<16x60xf32>
    %cst_104 = arith.constant dense<0.000000e+00> : vector<3x60xf32>
    %109 = tpu.matmul %107, %108, %cst_104 {dimension_numbers = #tpu.dot_dimension_numbers<[1], [0], [0], [1], [0, 0, 1, 1], [], []>} : vector<3x16xf32>, vector<16x60xf32>, vector<3x60xf32> -> vector<3x60xf32>
    %110 = arith.addf %106, %109 : vector<3x60xf32>
    %c0_105 = arith.constant 0 : index
    %c0_106 = arith.constant 0 : index
    %111 = vector.load %arg7[%c0_105, %c0_106] : memref<3x1xf32, #tpu.memory_space<vmem>>, vector<3x1xf32>
    %112 = vector.broadcast %111 : vector<3x1xf32> to vector<3x60xf32>
    %113 = arith.addf %110, %112 : vector<3x60xf32>
    %cst_107 = arith.constant 0.000000e+00 : f32
    %114 = vector.broadcast %cst_107 : f32 to vector<3x60xf32>
    %115 = arith.maximumf %113, %114 : vector<3x60xf32>
    %cst_108 = arith.constant 0.000000e+00 : f32
    %116 = vector.shape_cast %2 : vector<1x60xi1> to vector<1x60xi1>
    %117 = vector.broadcast %116 : vector<1x60xi1> to vector<3x60xi1>
    %118 = vector.broadcast %cst_108 : f32 to vector<3x60xf32>
    %119 = arith.select %117, %115, %118 : vector<3x60xi1>, vector<3x60xf32>
    %c0_109 = arith.constant 0 : index
    %c0_110 = arith.constant 0 : index
    %120 = vector.load %arg9[%c0_109, %c0_110] : memref<60x256xf32, #tpu.memory_space<vmem>>, vector<60x256xf32>
    %cst_111 = arith.constant dense<0.000000e+00> : vector<3x256xf32>
    %121 = tpu.matmul %119, %120, %cst_111 {dimension_numbers = #tpu.dot_dimension_numbers<[1], [0], [0], [1], [0, 0, 1, 1], [], []>} : vector<3x60xf32>, vector<60x256xf32>, vector<3x256xf32> -> vector<3x256xf32>
    %c0_112 = arith.constant 0 : index
    %c0_113 = arith.constant 0 : index
    %c0_114 = arith.constant 0 : index
    %122 = vector.load %arg10[%c0_112, %c0_113, %c0_114] : memref<1x3x256xf32, #tpu.memory_space<vmem>>, vector<1x3x256xf32>
    %123 = vector.shape_cast %122 : vector<1x3x256xf32> to vector<3x256xf32>
    %124 = vector.shape_cast %121 : vector<3x256xf32> to vector<1x3x256xf32>
    tpu.vector_store %arg10[%c0_112, %c0_113, %c0_114], %124 {strides = array<i32>} : memref<1x3x256xf32, #tpu.memory_space<vmem>>, vector<1x3x256xf32>,
    return
  }
  func.func @transform_0(%arg0: i32) -> (i32, i32, i32) {
    %c0_i32 = arith.constant 0 : i32
    %c0_i32_0 = arith.constant 0 : i32
    %c0_i32_1 = arith.constant 0 : i32
    return %arg0, %c0_i32, %c0_i32_0 : i32, i32, i32
  }
  func.func @transform_1(%arg0: i32) -> (i32, i32) {
    %c0_i32 = arith.constant 0 : i32
    %c0_i32_0 = arith.constant 0 : i32
    %c0_i32_1 = arith.constant 0 : i32
    return %c0_i32, %c0_i32_0 : i32, i32
  }
  func.func @transform_2(%arg0: i32) -> (i32, i32) {
    %c0_i32 = arith.constant 0 : i32
    %c0_i32_0 = arith.constant 0 : i32
    %c0_i32_1 = arith.constant 0 : i32
    return %c0_i32, %c0_i32_0 : i32, i32
  }
  func.func @transform_3(%arg0: i32) -> (i32, i32) {
    %c0_i32 = arith.constant 0 : i32
    %c0_i32_0 = arith.constant 0 : i32
    %c0_i32_1 = arith.constant 0 : i32
    return %c0_i32, %c0_i32_0 : i32, i32
  }
  func.func @transform_4(%arg0: i32) -> (i32, i32) {
    %c0_i32 = arith.constant 0 : i32
    %c0_i32_0 = arith.constant 0 : i32
    %c0_i32_1 = arith.constant 0 : i32
    return %c0_i32, %c0_i32_0 : i32, i32
  }
  func.func @transform_5(%arg0: i32) -> (i32, i32) {
    %c0_i32 = arith.constant 0 : i32
    %c0_i32_0 = arith.constant 0 : i32
    %c0_i32_1 = arith.constant 0 : i32
    return %c0_i32, %c0_i32_0 : i32, i32
  }
  func.func @transform_6(%arg0: i32) -> (i32, i32) {
    %c0_i32 = arith.constant 0 : i32
    %c0_i32_0 = arith.constant 0 : i32
    %c0_i32_1 = arith.constant 0 : i32
    return %c0_i32, %c0_i32_0 : i32, i32
  }
  func.func @transform_7(%arg0: i32) -> (i32, i32) {
    %c0_i32 = arith.constant 0 : i32
    %c0_i32_0 = arith.constant 0 : i32
    %c0_i32_1 = arith.constant 0 : i32
    return %c0_i32, %c0_i32_0 : i32, i32
  }
  func.func @transform_8(%arg0: i32) -> (i32, i32) {
    %c0_i32 = arith.constant 0 : i32
    %c0_i32_0 = arith.constant 0 : i32
    %c0_i32_1 = arith.constant 0 : i32
    return %c0_i32, %c0_i32_0 : i32, i32
  }
  func.func @transform_9(%arg0: i32) -> (i32, i32, i32) {
    %c0_i32 = arith.constant 0 : i32
    %c0_i32_0 = arith.constant 0 : i32
    %c0_i32_1 = arith.constant 0 : i32
    return %arg0, %c0_i32, %c0_i32_0 : i32, i32, i32
  }
}

module attributes {stable_mosaic.version = 11 : i64} {
  func.func @_ts2img_kernel(%arg0: i32, %arg1: memref<1x4x62xf32, #tpu.memory_space<vmem>>, %arg2: memref<32x12xf32, #tpu.memory_space<vmem>>, %arg3: memref<32x1xf32, #tpu.memory_space<vmem>>, %arg4: memref<16x288xf32, #tpu.memory_space<vmem>>, %arg5: memref<16x1xf32, #tpu.memory_space<vmem>>, %arg6: memref<3x144xf32, #tpu.memory_space<vmem>>, %arg7: memref<3x1xf32, #tpu.memory_space<vmem>>, %arg8: memref<1x60xf32, #tpu.memory_space<vmem>>, %arg9: memref<60x256xf32, #tpu.memory_space<vmem>>, %arg10: memref<1x3x256xf32, #tpu.memory_space<vmem>>, %arg11: memref<32x316xf32, #tpu.memory_space<vmem>>, %arg12: memref<16x316xf32, #tpu.memory_space<vmem>>) attributes {dimension_semantics = [#tpu.dimension_semantics<parallel>], iteration_bounds = array<i64: 2>, scalar_prefetch = 0 : i64, scratch_operands = 2 : i64, tpu.core_type = #tpu.core_type<tc>, window_params = [{transform_indices = @transform_0, window_bounds = array<i64: 1, 4, 62>}, {pipeline_mode = #tpu.pipeline_mode<synchronous>, transform_indices = @transform_1, window_bounds = array<i64: 32, 12>}, {pipeline_mode = #tpu.pipeline_mode<synchronous>, transform_indices = @transform_2, window_bounds = array<i64: 32, 1>}, {pipeline_mode = #tpu.pipeline_mode<synchronous>, transform_indices = @transform_3, window_bounds = array<i64: 16, 288>}, {pipeline_mode = #tpu.pipeline_mode<synchronous>, transform_indices = @transform_4, window_bounds = array<i64: 16, 1>}, {pipeline_mode = #tpu.pipeline_mode<synchronous>, transform_indices = @transform_5, window_bounds = array<i64: 3, 144>}, {pipeline_mode = #tpu.pipeline_mode<synchronous>, transform_indices = @transform_6, window_bounds = array<i64: 3, 1>}, {pipeline_mode = #tpu.pipeline_mode<synchronous>, transform_indices = @transform_7, window_bounds = array<i64: 1, 60>}, {pipeline_mode = #tpu.pipeline_mode<synchronous>, transform_indices = @transform_8, window_bounds = array<i64: 60, 256>}, {transform_indices = @transform_9, window_bounds = array<i64: 1, 3, 256>}]} {
    %c0 = arith.constant 0 : index
    %c0_0 = arith.constant 0 : index
    %0 = vector.load %arg8[%c0, %c0_0] : memref<1x60xf32, #tpu.memory_space<vmem>>, vector<1x60xf32>
    %cst = arith.constant 5.000000e-01 : f32
    %1 = vector.broadcast %cst : f32 to vector<1x60xf32>
    %2 = arith.cmpf ogt, %0, %1 : vector<1x60xf32>
    %cst_1 = arith.constant 0.000000e+00 : f32
    %3 = vector.broadcast %cst_1 : f32 to vector<32x128xf32>
    %cst_2 = arith.constant 0.000000e+00 : f32
    %4 = vector.broadcast %cst_2 : f32 to vector<16x128xf32>
    %c0_3 = arith.constant 0 : index
    %c0_4 = arith.constant 0 : index
    %5 = vector.load %arg11[%c0_3, %c0_4] : memref<32x316xf32, #tpu.memory_space<vmem>>, vector<32x128xf32>
    tpu.vector_store %arg11[%c0_3, %c0_4], %3 {strides = array<i32>} : memref<32x316xf32, #tpu.memory_space<vmem>>, vector<32x128xf32>,
    %c0_5 = arith.constant 0 : index
    %c188 = arith.constant 188 : index
    %6 = vector.load %arg11[%c0_5, %c188] : memref<32x316xf32, #tpu.memory_space<vmem>>, vector<32x128xf32>
    tpu.vector_store %arg11[%c0_5, %c188], %3 {strides = array<i32>} : memref<32x316xf32, #tpu.memory_space<vmem>>, vector<32x128xf32>,
    %c0_6 = arith.constant 0 : index
    %c0_7 = arith.constant 0 : index
    %7 = vector.load %arg12[%c0_6, %c0_7] : memref<16x316xf32, #tpu.memory_space<vmem>>, vector<16x128xf32>
    tpu.vector_store %arg12[%c0_6, %c0_7], %4 {strides = array<i32>} : memref<16x316xf32, #tpu.memory_space<vmem>>, vector<16x128xf32>,
    %c0_8 = arith.constant 0 : index
    %c188_9 = arith.constant 188 : index
    %8 = vector.load %arg12[%c0_8, %c188_9] : memref<16x316xf32, #tpu.memory_space<vmem>>, vector<16x128xf32>
    tpu.vector_store %arg12[%c0_8, %c188_9], %4 {strides = array<i32>} : memref<16x316xf32, #tpu.memory_space<vmem>>, vector<16x128xf32>,
    %c0_10 = arith.constant 0 : index
    %c0_11 = arith.constant 0 : index
    %9 = vector.load %arg2[%c0_10, %c0_11] : memref<32x12xf32, #tpu.memory_space<vmem>>, vector<32x4xf32>
    %c0_12 = arith.constant 0 : index
    %c0_13 = arith.constant 0 : index
    %c0_14 = arith.constant 0 : index
    %10 = vector.load %arg1[%c0_12, %c0_13, %c0_14] : memref<1x4x62xf32, #tpu.memory_space<vmem>>, vector<1x4x60xf32>
    %11 = vector.shape_cast %10 : vector<1x4x60xf32> to vector<4x60xf32>
    %cst_15 = arith.constant dense<0.000000e+00> : vector<32x60xf32>
    %12 = tpu.matmul %9, %11, %cst_15 {dimension_numbers = #tpu.dot_dimension_numbers<[1], [0], [0], [1], [0, 0, 1, 1], [], []>} : vector<32x4xf32>, vector<4x60xf32>, vector<32x60xf32> -> vector<32x60xf32>
    %c0_16 = arith.constant 0 : index
    %c4 = arith.constant 4 : index
    %13 = vector.load %arg2[%c0_16, %c4] : memref<32x12xf32, #tpu.memory_space<vmem>>, vector<32x4xf32>
    %c0_17 = arith.constant 0 : index
    %c0_18 = arith.constant 0 : index
    %c1 = arith.constant 1 : index
    %14 = vector.load %arg1[%c0_17, %c0_18, %c1] : memref<1x4x62xf32, #tpu.memory_space<vmem>>, vector<1x4x60xf32>
    %15 = vector.shape_cast %14 : vector<1x4x60xf32> to vector<4x60xf32>
    %cst_19 = arith.constant dense<0.000000e+00> : vector<32x60xf32>
    %16 = tpu.matmul %13, %15, %cst_19 {dimension_numbers = #tpu.dot_dimension_numbers<[1], [0], [0], [1], [0, 0, 1, 1], [], []>} : vector<32x4xf32>, vector<4x60xf32>, vector<32x60xf32> -> vector<32x60xf32>
    %17 = arith.addf %12, %16 : vector<32x60xf32>
    %c0_20 = arith.constant 0 : index
    %c8 = arith.constant 8 : index
    %18 = vector.load %arg2[%c0_20, %c8] : memref<32x12xf32, #tpu.memory_space<vmem>>, vector<32x4xf32>
    %c0_21 = arith.constant 0 : index
    %c0_22 = arith.constant 0 : index
    %c2 = arith.constant 2 : index
    %19 = vector.load %arg1[%c0_21, %c0_22, %c2] : memref<1x4x62xf32, #tpu.memory_space<vmem>>, vector<1x4x60xf32>
    %20 = vector.shape_cast %19 : vector<1x4x60xf32> to vector<4x60xf32>
    %cst_23 = arith.constant dense<0.000000e+00> : vector<32x60xf32>
    %21 = tpu.matmul %18, %20, %cst_23 {dimension_numbers = #tpu.dot_dimension_numbers<[1], [0], [0], [1], [0, 0, 1, 1], [], []>} : vector<32x4xf32>, vector<4x60xf32>, vector<32x60xf32> -> vector<32x60xf32>
    %22 = arith.addf %17, %21 : vector<32x60xf32>
    %c0_24 = arith.constant 0 : index
    %c0_25 = arith.constant 0 : index
    %23 = vector.load %arg3[%c0_24, %c0_25] : memref<32x1xf32, #tpu.memory_space<vmem>>, vector<32x1xf32>
    %24 = vector.broadcast %23 : vector<32x1xf32> to vector<32x60xf32>
    %25 = arith.addf %22, %24 : vector<32x60xf32>
    %cst_26 = arith.constant 0.000000e+00 : f32
    %26 = vector.shape_cast %2 : vector<1x60xi1> to vector<1x60xi1>
    %27 = vector.broadcast %26 : vector<1x60xi1> to vector<32x60xi1>
    %28 = vector.broadcast %cst_26 : f32 to vector<32x60xf32>
    %29 = arith.select %27, %25, %28 : vector<32x60xi1>, vector<32x60xf32>
    %c0_27 = arith.constant 0 : index
    %c128 = arith.constant 128 : index
    %30 = vector.load %arg11[%c0_27, %c128] : memref<32x316xf32, #tpu.memory_space<vmem>>, vector<32x60xf32>
    tpu.vector_store %arg11[%c0_27, %c128], %29 {strides = array<i32>} : memref<32x316xf32, #tpu.memory_space<vmem>>, vector<32x60xf32>,
    %c0_28 = arith.constant 0 : index
    %c0_29 = arith.constant 0 : index
    %31 = vector.load %arg4[%c0_28, %c0_29] : memref<16x288xf32, #tpu.memory_space<vmem>>, vector<16x32xf32>
    %c0_30 = arith.constant 0 : index
    %c117 = arith.constant 117 : index
    %32 = vector.load %arg11[%c0_30, %c117] : memref<32x316xf32, #tpu.memory_space<vmem>>, vector<32x60xf32>
    %cst_31 = arith.constant dense<0.000000e+00> : vector<16x60xf32>
    %33 = tpu.matmul %31, %32, %cst_31 {dimension_numbers = #tpu.dot_dimension_numbers<[1], [0], [0], [1], [0, 0, 1, 1], [], []>} : vector<16x32xf32>, vector<32x60xf32>, vector<16x60xf32> -> vector<16x60xf32>
    %c0_32 = arith.constant 0 : index
    %c32 = arith.constant 32 : index
    %34 = vector.load %arg4[%c0_32, %c32] : memref<16x288xf32, #tpu.memory_space<vmem>>, vector<16x32xf32>
    %c0_33 = arith.constant 0 : index
    %c118 = arith.constant 118 : index
    %35 = vector.load %arg11[%c0_33, %c118] : memref<32x316xf32, #tpu.memory_space<vmem>>, vector<32x60xf32>
    %cst_34 = arith.constant dense<0.000000e+00> : vector<16x60xf32>
    %36 = tpu.matmul %34, %35, %cst_34 {dimension_numbers = #tpu.dot_dimension_numbers<[1], [0], [0], [1], [0, 0, 1, 1], [], []>} : vector<16x32xf32>, vector<32x60xf32>, vector<16x60xf32> -> vector<16x60xf32>
    %37 = arith.addf %33, %36 : vector<16x60xf32>
    %c0_35 = arith.constant 0 : index
    %c64 = arith.constant 64 : index
    %38 = vector.load %arg4[%c0_35, %c64] : memref<16x288xf32, #tpu.memory_space<vmem>>, vector<16x32xf32>
    %c0_36 = arith.constant 0 : index
    %c119 = arith.constant 119 : index
    %39 = vector.load %arg11[%c0_36, %c119] : memref<32x316xf32, #tpu.memory_space<vmem>>, vector<32x60xf32>
    %cst_37 = arith.constant dense<0.000000e+00> : vector<16x60xf32>
    %40 = tpu.matmul %38, %39, %cst_37 {dimension_numbers = #tpu.dot_dimension_numbers<[1], [0], [0], [1], [0, 0, 1, 1], [], []>} : vector<16x32xf32>, vector<32x60xf32>, vector<16x60xf32> -> vector<16x60xf32>
    %41 = arith.addf %37, %40 : vector<16x60xf32>
    %c0_38 = arith.constant 0 : index
    %c96 = arith.constant 96 : index
    %42 = vector.load %arg4[%c0_38, %c96] : memref<16x288xf32, #tpu.memory_space<vmem>>, vector<16x32xf32>
    %c0_39 = arith.constant 0 : index
    %c127 = arith.constant 127 : index
    %43 = vector.load %arg11[%c0_39, %c127] : memref<32x316xf32, #tpu.memory_space<vmem>>, vector<32x60xf32>
    %cst_40 = arith.constant dense<0.000000e+00> : vector<16x60xf32>
    %44 = tpu.matmul %42, %43, %cst_40 {dimension_numbers = #tpu.dot_dimension_numbers<[1], [0], [0], [1], [0, 0, 1, 1], [], []>} : vector<16x32xf32>, vector<32x60xf32>, vector<16x60xf32> -> vector<16x60xf32>
    %45 = arith.addf %41, %44 : vector<16x60xf32>
    %c0_41 = arith.constant 0 : index
    %c128_42 = arith.constant 128 : index
    %46 = vector.load %arg4[%c0_41, %c128_42] : memref<16x288xf32, #tpu.memory_space<vmem>>, vector<16x32xf32>
    %c0_43 = arith.constant 0 : index
    %c128_44 = arith.constant 128 : index
    %47 = vector.load %arg11[%c0_43, %c128_44] : memref<32x316xf32, #tpu.memory_space<vmem>>, vector<32x60xf32>
    %cst_45 = arith.constant dense<0.000000e+00> : vector<16x60xf32>
    %48 = tpu.matmul %46, %47, %cst_45 {dimension_numbers = #tpu.dot_dimension_numbers<[1], [0], [0], [1], [0, 0, 1, 1], [], []>} : vector<16x32xf32>, vector<32x60xf32>, vector<16x60xf32> -> vector<16x60xf32>
    %49 = arith.addf %45, %48 : vector<16x60xf32>
    %c0_46 = arith.constant 0 : index
    %c160 = arith.constant 160 : index
    %50 = vector.load %arg4[%c0_46, %c160] : memref<16x288xf32, #tpu.memory_space<vmem>>, vector<16x32xf32>
    %c0_47 = arith.constant 0 : index
    %c129 = arith.constant 129 : index
    %51 = vector.load %arg11[%c0_47, %c129] : memref<32x316xf32, #tpu.memory_space<vmem>>, vector<32x60xf32>
    %cst_48 = arith.constant dense<0.000000e+00> : vector<16x60xf32>
    %52 = tpu.matmul %50, %51, %cst_48 {dimension_numbers = #tpu.dot_dimension_numbers<[1], [0], [0], [1], [0, 0, 1, 1], [], []>} : vector<16x32xf32>, vector<32x60xf32>, vector<16x60xf32> -> vector<16x60xf32>
    %53 = arith.addf %49, %52 : vector<16x60xf32>
    %c0_49 = arith.constant 0 : index
    %c192 = arith.constant 192 : index
    %54 = vector.load %arg4[%c0_49, %c192] : memref<16x288xf32, #tpu.memory_space<vmem>>, vector<16x32xf32>
    %c0_50 = arith.constant 0 : index
    %c137 = arith.constant 137 : index
    %55 = vector.load %arg11[%c0_50, %c137] : memref<32x316xf32, #tpu.memory_space<vmem>>, vector<32x60xf32>
    %cst_51 = arith.constant dense<0.000000e+00> : vector<16x60xf32>
    %56 = tpu.matmul %54, %55, %cst_51 {dimension_numbers = #tpu.dot_dimension_numbers<[1], [0], [0], [1], [0, 0, 1, 1], [], []>} : vector<16x32xf32>, vector<32x60xf32>, vector<16x60xf32> -> vector<16x60xf32>
    %57 = arith.addf %53, %56 : vector<16x60xf32>
    %c0_52 = arith.constant 0 : index
    %c224 = arith.constant 224 : index
    %58 = vector.load %arg4[%c0_52, %c224] : memref<16x288xf32, #tpu.memory_space<vmem>>, vector<16x32xf32>
    %c0_53 = arith.constant 0 : index
    %c138 = arith.constant 138 : index
    %59 = vector.load %arg11[%c0_53, %c138] : memref<32x316xf32, #tpu.memory_space<vmem>>, vector<32x60xf32>
    %cst_54 = arith.constant dense<0.000000e+00> : vector<16x60xf32>
    %60 = tpu.matmul %58, %59, %cst_54 {dimension_numbers = #tpu.dot_dimension_numbers<[1], [0], [0], [1], [0, 0, 1, 1], [], []>} : vector<16x32xf32>, vector<32x60xf32>, vector<16x60xf32> -> vector<16x60xf32>
    %61 = arith.addf %57, %60 : vector<16x60xf32>
    %c0_55 = arith.constant 0 : index
    %c256 = arith.constant 256 : index
    %62 = vector.load %arg4[%c0_55, %c256] : memref<16x288xf32, #tpu.memory_space<vmem>>, vector<16x32xf32>
    %c0_56 = arith.constant 0 : index
    %c139 = arith.constant 139 : index
    %63 = vector.load %arg11[%c0_56, %c139] : memref<32x316xf32, #tpu.memory_space<vmem>>, vector<32x60xf32>
    %cst_57 = arith.constant dense<0.000000e+00> : vector<16x60xf32>
    %64 = tpu.matmul %62, %63, %cst_57 {dimension_numbers = #tpu.dot_dimension_numbers<[1], [0], [0], [1], [0, 0, 1, 1], [], []>} : vector<16x32xf32>, vector<32x60xf32>, vector<16x60xf32> -> vector<16x60xf32>
    %65 = arith.addf %61, %64 : vector<16x60xf32>
    %c0_58 = arith.constant 0 : index
    %c0_59 = arith.constant 0 : index
    %66 = vector.load %arg5[%c0_58, %c0_59] : memref<16x1xf32, #tpu.memory_space<vmem>>, vector<16x1xf32>
    %67 = vector.broadcast %66 : vector<16x1xf32> to vector<16x60xf32>
    %68 = arith.addf %65, %67 : vector<16x60xf32>
    %cst_60 = arith.constant 0.000000e+00 : f32
    %69 = vector.broadcast %cst_60 : f32 to vector<16x60xf32>
    %70 = arith.maximumf %68, %69 : vector<16x60xf32>
    %cst_61 = arith.constant 0.000000e+00 : f32
    %71 = vector.shape_cast %2 : vector<1x60xi1> to vector<1x60xi1>
    %72 = vector.broadcast %71 : vector<1x60xi1> to vector<16x60xi1>
    %73 = vector.broadcast %cst_61 : f32 to vector<16x60xf32>
    %74 = arith.select %72, %70, %73 : vector<16x60xi1>, vector<16x60xf32>
    %c0_62 = arith.constant 0 : index
    %c128_63 = arith.constant 128 : index
    %75 = vector.load %arg12[%c0_62, %c128_63] : memref<16x316xf32, #tpu.memory_space<vmem>>, vector<16x60xf32>
    tpu.vector_store %arg12[%c0_62, %c128_63], %74 {strides = array<i32>} : memref<16x316xf32, #tpu.memory_space<vmem>>, vector<16x60xf32>,
    %c0_64 = arith.constant 0 : index
    %c0_65 = arith.constant 0 : index
    %76 = vector.load %arg6[%c0_64, %c0_65] : memref<3x144xf32, #tpu.memory_space<vmem>>, vector<3x16xf32>
    %c0_66 = arith.constant 0 : index
    %c117_67 = arith.constant 117 : index
    %77 = vector.load %arg12[%c0_66, %c117_67] : memref<16x316xf32, #tpu.memory_space<vmem>>, vector<16x60xf32>
    %cst_68 = arith.constant dense<0.000000e+00> : vector<3x60xf32>
    %78 = tpu.matmul %76, %77, %cst_68 {dimension_numbers = #tpu.dot_dimension_numbers<[1], [0], [0], [1], [0, 0, 1, 1], [], []>} : vector<3x16xf32>, vector<16x60xf32>, vector<3x60xf32> -> vector<3x60xf32>
    %c0_69 = arith.constant 0 : index
    %c16 = arith.constant 16 : index
    %79 = vector.load %arg6[%c0_69, %c16] : memref<3x144xf32, #tpu.memory_space<vmem>>, vector<3x16xf32>
    %c0_70 = arith.constant 0 : index
    %c118_71 = arith.constant 118 : index
    %80 = vector.load %arg12[%c0_70, %c118_71] : memref<16x316xf32, #tpu.memory_space<vmem>>, vector<16x60xf32>
    %cst_72 = arith.constant dense<0.000000e+00> : vector<3x60xf32>
    %81 = tpu.matmul %79, %80, %cst_72 {dimension_numbers = #tpu.dot_dimension_numbers<[1], [0], [0], [1], [0, 0, 1, 1], [], []>} : vector<3x16xf32>, vector<16x60xf32>, vector<3x60xf32> -> vector<3x60xf32>
    %82 = arith.addf %78, %81 : vector<3x60xf32>
    %c0_73 = arith.constant 0 : index
    %c32_74 = arith.constant 32 : index
    %83 = vector.load %arg6[%c0_73, %c32_74] : memref<3x144xf32, #tpu.memory_space<vmem>>, vector<3x16xf32>
    %c0_75 = arith.constant 0 : index
    %c119_76 = arith.constant 119 : index
    %84 = vector.load %arg12[%c0_75, %c119_76] : memref<16x316xf32, #tpu.memory_space<vmem>>, vector<16x60xf32>
    %cst_77 = arith.constant dense<0.000000e+00> : vector<3x60xf32>
    %85 = tpu.matmul %83, %84, %cst_77 {dimension_numbers = #tpu.dot_dimension_numbers<[1], [0], [0], [1], [0, 0, 1, 1], [], []>} : vector<3x16xf32>, vector<16x60xf32>, vector<3x60xf32> -> vector<3x60xf32>
    %86 = arith.addf %82, %85 : vector<3x60xf32>
    %c0_78 = arith.constant 0 : index
    %c48 = arith.constant 48 : index
    %87 = vector.load %arg6[%c0_78, %c48] : memref<3x144xf32, #tpu.memory_space<vmem>>, vector<3x16xf32>
    %c0_79 = arith.constant 0 : index
    %c127_80 = arith.constant 127 : index
    %88 = vector.load %arg12[%c0_79, %c127_80] : memref<16x316xf32, #tpu.memory_space<vmem>>, vector<16x60xf32>
    %cst_81 = arith.constant dense<0.000000e+00> : vector<3x60xf32>
    %89 = tpu.matmul %87, %88, %cst_81 {dimension_numbers = #tpu.dot_dimension_numbers<[1], [0], [0], [1], [0, 0, 1, 1], [], []>} : vector<3x16xf32>, vector<16x60xf32>, vector<3x60xf32> -> vector<3x60xf32>
    %90 = arith.addf %86, %89 : vector<3x60xf32>
    %c0_82 = arith.constant 0 : index
    %c64_83 = arith.constant 64 : index
    %91 = vector.load %arg6[%c0_82, %c64_83] : memref<3x144xf32, #tpu.memory_space<vmem>>, vector<3x16xf32>
    %c0_84 = arith.constant 0 : index
    %c128_85 = arith.constant 128 : index
    %92 = vector.load %arg12[%c0_84, %c128_85] : memref<16x316xf32, #tpu.memory_space<vmem>>, vector<16x60xf32>
    %cst_86 = arith.constant dense<0.000000e+00> : vector<3x60xf32>
    %93 = tpu.matmul %91, %92, %cst_86 {dimension_numbers = #tpu.dot_dimension_numbers<[1], [0], [0], [1], [0, 0, 1, 1], [], []>} : vector<3x16xf32>, vector<16x60xf32>, vector<3x60xf32> -> vector<3x60xf32>
    %94 = arith.addf %90, %93 : vector<3x60xf32>
    %c0_87 = arith.constant 0 : index
    %c80 = arith.constant 80 : index
    %95 = vector.load %arg6[%c0_87, %c80] : memref<3x144xf32, #tpu.memory_space<vmem>>, vector<3x16xf32>
    %c0_88 = arith.constant 0 : index
    %c129_89 = arith.constant 129 : index
    %96 = vector.load %arg12[%c0_88, %c129_89] : memref<16x316xf32, #tpu.memory_space<vmem>>, vector<16x60xf32>
    %cst_90 = arith.constant dense<0.000000e+00> : vector<3x60xf32>
    %97 = tpu.matmul %95, %96, %cst_90 {dimension_numbers = #tpu.dot_dimension_numbers<[1], [0], [0], [1], [0, 0, 1, 1], [], []>} : vector<3x16xf32>, vector<16x60xf32>, vector<3x60xf32> -> vector<3x60xf32>
    %98 = arith.addf %94, %97 : vector<3x60xf32>
    %c0_91 = arith.constant 0 : index
    %c96_92 = arith.constant 96 : index
    %99 = vector.load %arg6[%c0_91, %c96_92] : memref<3x144xf32, #tpu.memory_space<vmem>>, vector<3x16xf32>
    %c0_93 = arith.constant 0 : index
    %c137_94 = arith.constant 137 : index
    %100 = vector.load %arg12[%c0_93, %c137_94] : memref<16x316xf32, #tpu.memory_space<vmem>>, vector<16x60xf32>
    %cst_95 = arith.constant dense<0.000000e+00> : vector<3x60xf32>
    %101 = tpu.matmul %99, %100, %cst_95 {dimension_numbers = #tpu.dot_dimension_numbers<[1], [0], [0], [1], [0, 0, 1, 1], [], []>} : vector<3x16xf32>, vector<16x60xf32>, vector<3x60xf32> -> vector<3x60xf32>
    %102 = arith.addf %98, %101 : vector<3x60xf32>
    %c0_96 = arith.constant 0 : index
    %c112 = arith.constant 112 : index
    %103 = vector.load %arg6[%c0_96, %c112] : memref<3x144xf32, #tpu.memory_space<vmem>>, vector<3x16xf32>
    %c0_97 = arith.constant 0 : index
    %c138_98 = arith.constant 138 : index
    %104 = vector.load %arg12[%c0_97, %c138_98] : memref<16x316xf32, #tpu.memory_space<vmem>>, vector<16x60xf32>
    %cst_99 = arith.constant dense<0.000000e+00> : vector<3x60xf32>
    %105 = tpu.matmul %103, %104, %cst_99 {dimension_numbers = #tpu.dot_dimension_numbers<[1], [0], [0], [1], [0, 0, 1, 1], [], []>} : vector<3x16xf32>, vector<16x60xf32>, vector<3x60xf32> -> vector<3x60xf32>
    %106 = arith.addf %102, %105 : vector<3x60xf32>
    %c0_100 = arith.constant 0 : index
    %c128_101 = arith.constant 128 : index
    %107 = vector.load %arg6[%c0_100, %c128_101] : memref<3x144xf32, #tpu.memory_space<vmem>>, vector<3x16xf32>
    %c0_102 = arith.constant 0 : index
    %c139_103 = arith.constant 139 : index
    %108 = vector.load %arg12[%c0_102, %c139_103] : memref<16x316xf32, #tpu.memory_space<vmem>>, vector<16x60xf32>
    %cst_104 = arith.constant dense<0.000000e+00> : vector<3x60xf32>
    %109 = tpu.matmul %107, %108, %cst_104 {dimension_numbers = #tpu.dot_dimension_numbers<[1], [0], [0], [1], [0, 0, 1, 1], [], []>} : vector<3x16xf32>, vector<16x60xf32>, vector<3x60xf32> -> vector<3x60xf32>
    %110 = arith.addf %106, %109 : vector<3x60xf32>
    %c0_105 = arith.constant 0 : index
    %c0_106 = arith.constant 0 : index
    %111 = vector.load %arg7[%c0_105, %c0_106] : memref<3x1xf32, #tpu.memory_space<vmem>>, vector<3x1xf32>
    %112 = vector.broadcast %111 : vector<3x1xf32> to vector<3x60xf32>
    %113 = arith.addf %110, %112 : vector<3x60xf32>
    %cst_107 = arith.constant 0.000000e+00 : f32
    %114 = vector.broadcast %cst_107 : f32 to vector<3x60xf32>
    %115 = arith.maximumf %113, %114 : vector<3x60xf32>
    %cst_108 = arith.constant 0.000000e+00 : f32
    %116 = vector.shape_cast %2 : vector<1x60xi1> to vector<1x60xi1>
    %117 = vector.broadcast %116 : vector<1x60xi1> to vector<3x60xi1>
    %118 = vector.broadcast %cst_108 : f32 to vector<3x60xf32>
    %119 = arith.select %117, %115, %118 : vector<3x60xi1>, vector<3x60xf32>
    %c0_109 = arith.constant 0 : index
    %c0_110 = arith.constant 0 : index
    %120 = vector.load %arg9[%c0_109, %c0_110] : memref<60x256xf32, #tpu.memory_space<vmem>>, vector<60x256xf32>
    %cst_111 = arith.constant dense<0.000000e+00> : vector<3x256xf32>
    %121 = tpu.matmul %119, %120, %cst_111 {dimension_numbers = #tpu.dot_dimension_numbers<[1], [0], [0], [1], [0, 0, 1, 1], [], []>} : vector<3x60xf32>, vector<60x256xf32>, vector<3x256xf32> -> vector<3x256xf32>
    %c0_112 = arith.constant 0 : index
    %c0_113 = arith.constant 0 : index
    %c0_114 = arith.constant 0 : index
    %122 = vector.load %arg10[%c0_112, %c0_113, %c0_114] : memref<1x3x256xf32, #tpu.memory_space<vmem>>, vector<1x3x256xf32>
    %123 = vector.shape_cast %122 : vector<1x3x256xf32> to vector<3x256xf32>
    %124 = vector.shape_cast %121 : vector<3x256xf32> to vector<1x3x256xf32>
    tpu.vector_store %arg10[%c0_112, %c0_113, %c0_114], %124 {strides = array<i32>} : memref<1x3x256xf32, #tpu.memory_space<vmem>>, vector<1x3x256xf32>,
    return
  }
  func.func @transform_0(%arg0: i32) -> (i32, i32, i32) {
    %c0_i32 = arith.constant 0 : i32
    %c0_i32_0 = arith.constant 0 : i32
    %c0_i32_1 = arith.constant 0 : i32
    return %arg0, %c0_i32, %c0_i32_0 : i32, i32, i32
  }
  func.func @transform_1(%arg0: i32) -> (i32, i32) {
    %c0_i32 = arith.constant 0 : i32
    %c0_i32_0 = arith.constant 0 : i32
    %c0_i32_1 = arith.constant 0 : i32
    return %c0_i32, %c0_i32_0 : i32, i32
  }
  func.func @transform_2(%arg0: i32) -> (i32, i32) {
    %c0_i32 = arith.constant 0 : i32
    %c0_i32_0 = arith.constant 0 : i32
    %c0_i32_1 = arith.constant 0 : i32
    return %c0_i32, %c0_i32_0 : i32, i32
  }
  func.func @transform_3(%arg0: i32) -> (i32, i32) {
    %c0_i32 = arith.constant 0 : i32
    %c0_i32_0 = arith.constant 0 : i32
    %c0_i32_1 = arith.constant 0 : i32
    return %c0_i32, %c0_i32_0 : i32, i32
  }
  func.func @transform_4(%arg0: i32) -> (i32, i32) {
    %c0_i32 = arith.constant 0 : i32
    %c0_i32_0 = arith.constant 0 : i32
    %c0_i32_1 = arith.constant 0 : i32
    return %c0_i32, %c0_i32_0 : i32, i32
  }
  func.func @transform_5(%arg0: i32) -> (i32, i32) {
    %c0_i32 = arith.constant 0 : i32
    %c0_i32_0 = arith.constant 0 : i32
    %c0_i32_1 = arith.constant 0 : i32
    return %c0_i32, %c0_i32_0 : i32, i32
  }
  func.func @transform_6(%arg0: i32) -> (i32, i32) {
    %c0_i32 = arith.constant 0 : i32
    %c0_i32_0 = arith.constant 0 : i32
    %c0_i32_1 = arith.constant 0 : i32
    return %c0_i32, %c0_i32_0 : i32, i32
  }
  func.func @transform_7(%arg0: i32) -> (i32, i32) {
    %c0_i32 = arith.constant 0 : i32
    %c0_i32_0 = arith.constant 0 : i32
    %c0_i32_1 = arith.constant 0 : i32
    return %c0_i32, %c0_i32_0 : i32, i32
  }
  func.func @transform_8(%arg0: i32) -> (i32, i32) {
    %c0_i32 = arith.constant 0 : i32
    %c0_i32_0 = arith.constant 0 : i32
    %c0_i32_1 = arith.constant 0 : i32
    return %c0_i32, %c0_i32_0 : i32, i32
  }
  func.func @transform_9(%arg0: i32) -> (i32, i32, i32) {
    %c0_i32 = arith.constant 0 : i32
    %c0_i32_0 = arith.constant 0 : i32
    %c0_i32_1 = arith.constant 0 : i32
    return %arg0, %c0_i32, %c0_i32_0 : i32, i32, i32
  }
}

</mosaic_0001>

<llo_original>
// kernel: tpu_custom_call.1
$region0: #{tpu_custom_call.1}
  #allocation0 [shape = 'u32[]', space=smem, size = 0x4, offset = 0x4, fixed_abs, tag = 'smem constant byte address 0x4 - core index']
  #allocation1 [shape = 'u32[144,128]{1,0:T(1,128)}', space=vmem, size = 0x12000, scoped, tag = 'internal scratch']
  #allocation2 [shape = 'f32[32,316]{1,0:T(8,128)}', space=vmem, size = 0xc000, scoped, tag = 'scratch operand']
  #allocation3 [shape = 'f32[16,316]{1,0:T(8,128)}', space=vmem, size = 0x6000, scoped, tag = 'scratch operand']
  %s0 = inlined_call_operand.hbm [shape: f32[2,4,62], index: 0, kind: input, shape index: {}]
  %s1 = inlined_call_operand.vmem [shape: f32[32,12], index: 1, kind: input, shape index: {}]
  %s2 = inlined_call_operand.vmem [shape: f32[32,1], index: 2, kind: input, shape index: {}]
  %s3 = inlined_call_operand.hbm [shape: f32[16,288], index: 3, kind: input, shape index: {}]
  %s4 = inlined_call_operand.vmem [shape: f32[16,1], index: 4, kind: input, shape index: {}]
  %s5 = inlined_call_operand.hbm [shape: f32[3,144], index: 5, kind: input, shape index: {}]
  %s6 = inlined_call_operand.vmem [shape: f32[3,1], index: 6, kind: input, shape index: {}]
  %s7 = inlined_call_operand.vmem [shape: f32[1,60], index: 7, kind: input, shape index: {}]
  %s8 = inlined_call_operand.vmem [shape: f32[60,256], index: 8, kind: input, shape index: {}]
  %s9 = inlined_call_operand.vmem [shape: f32[2,3,256], index: 9, kind: output, shape index: {}]
  %s10 = sld [smem:[#allocation0]]
  $region81: #{tpu_custom_call.1} parent=0
    _
  %s12 = ssub.s32 1, %s10
  %s13 = scalar_select 0, %s12, %s10
  $region1: #{tpu_custom_call.1} parent=0
    #allocation4 [shape = 'u8[4096]{0}', space=vmem, size = 0x1000, scoped, tag = 'input window, operand 0']
    #allocation5 [shape = 's32[2]{0}', space=sflag, size = 0x8, scoped, tag = 'scoped memory for tpu_custom_call.1']
    #allocation6 [shape = 'u8[24576]{0}', space=vmem, size = 0x6000, scoped, tag = 'input window, operand 3, single buffered']
    #allocation7 [shape = 's32[1]{0}', space=sflag, size = 0x4, scoped, tag = 'scoped memory for tpu_custom_call.1']
    #allocation8 [shape = 'u8[4096]{0}', space=vmem, size = 0x1000, scoped, tag = 'input window, operand 5, single buffered']
    %14 = vsyncpa [#allocation5], 0
    %s15 = scalar_lea.sflag [#allocation5], 1
    %16 = vsyncpa %s15, 0
    %17 = vsyncpa [#allocation7], 0
    loop: start=0, step=1, limit=4
    $region2: #{tpu_custom_call.1} parent=1 // loop_pre_header
      _
    $region3: #{tpu_custom_call.1} parent=1 // loop_header
      %s19 = sphi 0, %s23
      %p20 = scmp.ge.s32.totalorder %s19, 4
      %s29 = sphi 0, %s31
      %s32 = sphi 0, %s29
      %s33 = sphi 0, %s32
      %s49 = sphi 0, %s33
      %s53 = sphi 0, %s53
      %s55 = sphi 0, %s53
      %s56 = sphi 0, %s55
      %s70 = sphi 0, %s56
      %s74 = sphi 0, %s74
      %s76 = sphi 0, %s74
      %s77 = sphi 0, %s76
      %s91 = sphi 0, %s77
      %s95 = sphi 0, %s95
      %s97 = sphi 0, %s95
      %s98 = sphi 0, %s97
      %s112 = sphi 0, %s98
      %s116 = sphi 0, %s116
      %s118 = sphi 0, %s116
      %s119 = sphi 0, %s118
      %s133 = sphi 0, %s119
      %s137 = sphi 0, %s137
      %s139 = sphi 0, %s137
      %s140 = sphi 0, %s139
      %s154 = sphi 0, %s140
      %s158 = sphi 0, %s158
      %s160 = sphi 0, %s158
      %s161 = sphi 0, %s160
      %s175 = sphi 0, %s161
      %s179 = sphi 0, %s179
      %s181 = sphi 0, %s179
      %s182 = sphi 0, %s181
      %s196 = sphi 0, %s182
      %s200 = sphi 0, %s200
      %s202 = sphi 0, %s200
      %s203 = sphi 0, %s202
      %s217 = sphi 0, %s203
      %s223 = sphi 0, %s225
      %s226 = sphi 0, %s223
      %s227 = sphi 0, %s226
      %s243 = sphi 0, %s227
    $region4: #{tpu_custom_call.1} parent=1 // loop_header_branch
      %22 = sbr.rel (%p20) target = $region8
    $region5: #{tpu_custom_call.1} parent=1 // loop_body
      %s24 = ssub.s32 %s19, 1
      %s25 = ssub.s32 %s19, 2
      %s26 = sadd.s32 %s19, 1
      %s27 = ssub.s32 %s19, %s26
      %p28 = scmp.eq.s32.totalorder %s27, 0
      %s30 = sadd.s32 %s29, 1
      %s31 = scalar_select %p28, %s29, %s30
      %p34 = pneg %p28
      %p35 = scmp.eq.s32.totalorder %s19, 1
      %p36 = por %p34, %p35
      %p37 = scmp.ne.s32.totalorder %s29, %s32
      %p38 = scmp.eq.s32.totalorder %s19, 0
      %p39 = por %p37, %p38
      %p40 = scmp.ne.s32.totalorder %s29, %s32
      %p41 = scmp.eq.s32.totalorder %s24, 1
      %p42 = por %p40, %p41
      %p43 = scmp.ne.s32.totalorder %s32, %s33
      %p44 = scmp.eq.s32.totalorder %s24, 0
      %p45 = por %p43, %p44
      %p46 = scmp.ne.s32.totalorder %s32, %s33
      %p47 = scmp.eq.s32.totalorder %s25, 1
      %p48 = por %p46, %p47
      %p50 = scmp.ne.s32.totalorder %s33, %s49
      %p51 = scmp.eq.s32.totalorder %s25, 0
      %p52 = por %p50, %p51
      %s54 = sadd.s32 %s53, 1
      %p57 = scmp.eq.s32.totalorder %s19, 1
      %p58 = scmp.ne.s32.totalorder %s53, %s55
      %p59 = scmp.eq.s32.totalorder %s19, 0
      %p60 = por %p58, %p59
      %p61 = scmp.ne.s32.totalorder %s53, %s55
      %p62 = scmp.eq.s32.totalorder %s24, 1
      %p63 = por %p61, %p62
      %p64 = scmp.ne.s32.totalorder %s55, %s56
      %p65 = scmp.eq.s32.totalorder %s24, 0
      %p66 = por %p64, %p65
      %p67 = scmp.ne.s32.totalorder %s55, %s56
      %p68 = scmp.eq.s32.totalorder %s25, 1
      %p69 = por %p67, %p68
      %p71 = scmp.ne.s32.totalorder %s56, %s70
      %p72 = scmp.eq.s32.totalorder %s25, 0
      %p73 = por %p71, %p72
      %s75 = sadd.s32 %s74, 1
      %p78 = scmp.eq.s32.totalorder %s19, 1
      %p79 = scmp.ne.s32.totalorder %s74, %s76
      %p80 = scmp.eq.s32.totalorder %s19, 0
      %p81 = por %p79, %p80
      %p82 = scmp.ne.s32.totalorder %s74, %s76
      %p83 = scmp.eq.s32.totalorder %s24, 1
      %p84 = por %p82, %p83
      %p85 = scmp.ne.s32.totalorder %s76, %s77
      %p86 = scmp.eq.s32.totalorder %s24, 0
      %p87 = por %p85, %p86
      %p88 = scmp.ne.s32.totalorder %s76, %s77
      %p89 = scmp.eq.s32.totalorder %s25, 1
      %p90 = por %p88, %p89
      %p92 = scmp.ne.s32.totalorder %s77, %s91
      %p93 = scmp.eq.s32.totalorder %s25, 0
      %p94 = por %p92, %p93
      %s96 = sadd.s32 %s95, 1
      %p99 = scmp.eq.s32.totalorder %s19, 1
      %p100 = scmp.ne.s32.totalorder %s95, %s97
      %p101 = scmp.eq.s32.totalorder %s19, 0
      %p102 = por %p100, %p101
      %p103 = scmp.ne.s32.totalorder %s95, %s97
      %p104 = scmp.eq.s32.totalorder %s24, 1
      %p105 = por %p103, %p104
      %p106 = scmp.ne.s32.totalorder %s97, %s98
      %p107 = scmp.eq.s32.totalorder %s24, 0
      %p108 = por %p106, %p107
      %p109 = scmp.ne.s32.totalorder %s97, %s98
      %p110 = scmp.eq.s32.totalorder %s25, 1
      %p111 = por %p109, %p110
      %p113 = scmp.ne.s32.totalorder %s98, %s112
      %p114 = scmp.eq.s32.totalorder %s25, 0
      %p115 = por %p113, %p114
      %s117 = sadd.s32 %s116, 1
      %p120 = scmp.eq.s32.totalorder %s19, 1
      %p121 = scmp.ne.s32.totalorder %s116, %s118
      %p122 = scmp.eq.s32.totalorder %s19, 0
      %p123 = por %p121, %p122
      %p124 = scmp.ne.s32.totalorder %s116, %s118
      %p125 = scmp.eq.s32.totalorder %s24, 1
      %p126 = por %p124, %p125
      %p127 = scmp.ne.s32.totalorder %s118, %s119
      %p128 = scmp.eq.s32.totalorder %s24, 0
      %p129 = por %p127, %p128
      %p130 = scmp.ne.s32.totalorder %s118, %s119
      %p131 = scmp.eq.s32.totalorder %s25, 1
      %p132 = por %p130, %p131
      %p134 = scmp.ne.s32.totalorder %s119, %s133
      %p135 = scmp.eq.s32.totalorder %s25, 0
      %p136 = por %p134, %p135
      %s138 = sadd.s32 %s137, 1
      %p141 = scmp.eq.s32.totalorder %s19, 1
      %p142 = scmp.ne.s32.totalorder %s137, %s139
      %p143 = scmp.eq.s32.totalorder %s19, 0
      %p144 = por %p142, %p143
      %p145 = scmp.ne.s32.totalorder %s137, %s139
      %p146 = scmp.eq.s32.totalorder %s24, 1
      %p147 = por %p145, %p146
      %p148 = scmp.ne.s32.totalorder %s139, %s140
      %p149 = scmp.eq.s32.totalorder %s24, 0
      %p150 = por %p148, %p149
      %p151 = scmp.ne.s32.totalorder %s139, %s140
      %p152 = scmp.eq.s32.totalorder %s25, 1
      %p153 = por %p151, %p152
      %p155 = scmp.ne.s32.totalorder %s140, %s154
      %p156 = scmp.eq.s32.totalorder %s25, 0
      %p157 = por %p155, %p156
      %s159 = sadd.s32 %s158, 1
      %p162 = scmp.eq.s32.totalorder %s19, 1
      %p163 = scmp.ne.s32.totalorder %s158, %s160
      %p164 = scmp.eq.s32.totalorder %s19, 0
      %p165 = por %p163, %p164
      %p166 = scmp.ne.s32.totalorder %s158, %s160
      %p167 = scmp.eq.s32.totalorder %s24, 1
      %p168 = por %p166, %p167
      %p169 = scmp.ne.s32.totalorder %s160, %s161
      %p170 = scmp.eq.s32.totalorder %s24, 0
      %p171 = por %p169, %p170
      %p172 = scmp.ne.s32.totalorder %s160, %s161
      %p173 = scmp.eq.s32.totalorder %s25, 1
      %p174 = por %p172, %p173
      %p176 = scmp.ne.s32.totalorder %s161, %s175
      %p177 = scmp.eq.s32.totalorder %s25, 0
      %p178 = por %p176, %p177
      %s180 = sadd.s32 %s179, 1
      %p183 = scmp.eq.s32.totalorder %s19, 1
      %p184 = scmp.ne.s32.totalorder %s179, %s181
      %p185 = scmp.eq.s32.totalorder %s19, 0
      %p186 = por %p184, %p185
      %p187 = scmp.ne.s32.totalorder %s179, %s181
      %p188 = scmp.eq.s32.totalorder %s24, 1
      %p189 = por %p187, %p188
      %p190 = scmp.ne.s32.totalorder %s181, %s182
      %p191 = scmp.eq.s32.totalorder %s24, 0
      %p192 = por %p190, %p191
      %p193 = scmp.ne.s32.totalorder %s181, %s182
      %p194 = scmp.eq.s32.totalorder %s25, 1
      %p195 = por %p193, %p194
      %p197 = scmp.ne.s32.totalorder %s182, %s196
      %p198 = scmp.eq.s32.totalorder %s25, 0
      %p199 = por %p197, %p198
      %s201 = sadd.s32 %s200, 1
      %p204 = scmp.eq.s32.totalorder %s19, 1
      %p205 = scmp.ne.s32.totalorder %s200, %s202
      %p206 = scmp.eq.s32.totalorder %s19, 0
      %p207 = por %p205, %p206
      %p208 = scmp.ne.s32.totalorder %s200, %s202
      %p209 = scmp.eq.s32.totalorder %s24, 1
      %p210 = por %p208, %p209
      %p211 = scmp.ne.s32.totalorder %s202, %s203
      %p212 = scmp.eq.s32.totalorder %s24, 0
      %p213 = por %p211, %p212
      %p214 = scmp.ne.s32.totalorder %s202, %s203
      %p215 = scmp.eq.s32.totalorder %s25, 1
      %p216 = por %p214, %p215
      %p218 = scmp.ne.s32.totalorder %s203, %s217
      %p219 = scmp.eq.s32.totalorder %s25, 0
      %p220 = por %p218, %p219
      %s221 = ssub.s32 %s19, %s26
      %p222 = scmp.eq.s32.totalorder %s221, 0
      %s224 = sadd.s32 %s223, 1
      %s225 = scalar_select %p222, %s223, %s224
      %p228 = pneg %p222
      %p229 = scmp.eq.s32.totalorder %s19, 1
      %p230 = por %p228, %p229
      %p231 = scmp.ne.s32.totalorder %s223, %s226
      %p232 = scmp.eq.s32.totalorder %s19, 0
      %p233 = por %p231, %p232
      %p234 = scmp.ne.s32.totalorder %s223, %s226
      %p235 = scmp.eq.s32.totalorder %s24, 1
      %p236 = por %p234, %p235
      %p237 = scmp.ne.s32.totalorder %s226, %s227
      %p238 = scmp.eq.s32.totalorder %s24, 0
      %p239 = por %p237, %p238
      %p240 = scmp.ne.s32.totalorder %s226, %s227
      %p241 = scmp.eq.s32.totalorder %s25, 1
      %p242 = por %p240, %p241
      %p244 = scmp.ne.s32.totalorder %s227, %s243
      %p245 = scmp.eq.s32.totalorder %s25, 0
      %p246 = por %p244, %p245
      %p247 = scmp.le.s32.totalorder 1, %s19
      %p248 = scmp.lt.s32.totalorder %s19, 3
      %p249 = pnand %p247, %p248
      %p250 = pneg %p249
      // Predicated region
      $region9: #{tpu_custom_call.1} parent=5 // pred_check
        _
      $region10: #{tpu_custom_call.1} parent=5 // pred_check_branch
        %252 = sbr.rel (%p249) target = $region12
      $region11: #{tpu_custom_call.1} parent=5 // pred_region
        %s253 = ssub.s32 %s19, 1
        // Predicated region
        $region13: #{tpu_custom_call.1} parent=11 // pred_check
          %p254 = pneg %p66
        $region14: #{tpu_custom_call.1} parent=11 // pred_check_branch
          %256 = sbr.rel (%p254) target = $region16
        $region15: #{tpu_custom_call.1} parent=11 // pred_region
          _
        $region16: #{tpu_custom_call.1} parent=11 // pred_fallthru
          _
        // Predicated region
        $region17: #{tpu_custom_call.1} parent=11 // pred_check
          %p257 = pneg %p87
        $region18: #{tpu_custom_call.1} parent=11 // pred_check_branch
          %259 = sbr.rel (%p257) target = $region20
        $region19: #{tpu_custom_call.1} parent=11 // pred_region
          _
        $region20: #{tpu_custom_call.1} parent=11 // pred_fallthru
          _
        // Predicated region
        $region21: #{tpu_custom_call.1} parent=11 // pred_check
          %p260 = pneg %p108
        $region22: #{tpu_custom_call.1} parent=11 // pred_check_branch
          %262 = sbr.rel (%p260) target = $region24
        $region23: #{tpu_custom_call.1} parent=11 // pred_region
          %s264 = ssub.s32 768, 768
          %265 = vsyncadd [#allocation7], %s264
          %s266 = sshll.u32 [#allocation6], 4
          %s267 = int_to_ptr.vmem [resolvable:$true] %s266
          %272 = dma.hbm_to_vmem [thread:$0]  %s3, 768, %s267, [#allocation7], 384, 384, 24
        $region24: #{tpu_custom_call.1} parent=11 // pred_fallthru
          _
        // Predicated region
        $region25: #{tpu_custom_call.1} parent=11 // pred_check
          %p273 = pneg %p129
        $region26: #{tpu_custom_call.1} parent=11 // pred_check_branch
          %275 = sbr.rel (%p273) target = $region28
        $region27: #{tpu_custom_call.1} parent=11 // pred_region
          _
        $region28: #{tpu_custom_call.1} parent=11 // pred_fallthru
          _
        // Predicated region
        $region29: #{tpu_custom_call.1} parent=11 // pred_check
          %p276 = pneg %p150
        $region30: #{tpu_custom_call.1} parent=11 // pred_check_branch
          %278 = sbr.rel (%p276) target = $region32
        $region31: #{tpu_custom_call.1} parent=11 // pred_region
          %s280 = ssub.s32 128, 128
          %281 = vsyncadd [#allocation7], %s280
          %s283 = sshll.u32 [#allocation8], 4
          %s284 = int_to_ptr.vmem [resolvable:$true] %s283
          %286 = dma.hbm_to_vmem [thread:$0]  %s5, 128, %s284, [#allocation7]
        $region32: #{tpu_custom_call.1} parent=11 // pred_fallthru
          _
        // Predicated region
        $region33: #{tpu_custom_call.1} parent=11 // pred_check
          %p287 = pneg %p171
        $region34: #{tpu_custom_call.1} parent=11 // pred_check_branch
          %289 = sbr.rel (%p287) target = $region36
        $region35: #{tpu_custom_call.1} parent=11 // pred_region
          _
        $region36: #{tpu_custom_call.1} parent=11 // pred_fallthru
          _
        // Predicated region
        $region37: #{tpu_custom_call.1} parent=11 // pred_check
          %p290 = pneg %p192
        $region38: #{tpu_custom_call.1} parent=11 // pred_check_branch
          %292 = sbr.rel (%p290) target = $region40
        $region39: #{tpu_custom_call.1} parent=11 // pred_region
          _
        $region40: #{tpu_custom_call.1} parent=11 // pred_fallthru
          _
        // Predicated region
        $region41: #{tpu_custom_call.1} parent=11 // pred_check
          %p293 = pneg %p213
        $region42: #{tpu_custom_call.1} parent=11 // pred_check_branch
          %295 = sbr.rel (%p293) target = $region44
        $region43: #{tpu_custom_call.1} parent=11 // pred_region
          _
        $region44: #{tpu_custom_call.1} parent=11 // pred_fallthru
          _
      $region12: #{tpu_custom_call.1} parent=5 // pred_fallthru
        _
      %p296 = scmp.lt.s32.totalorder %s19, 2
      // Predicated region
      $region45: #{tpu_custom_call.1} parent=5 // pred_check
        %p297 = pneg %p296
      $region46: #{tpu_custom_call.1} parent=5 // pred_check_branch
        %299 = sbr.rel (%p297) target = $region48
      $region47: #{tpu_custom_call.1} parent=5 // pred_region
        // Predicated region
        $region49: #{tpu_custom_call.1} parent=47 // pred_check
          %p300 = pneg %p39
        $region50: #{tpu_custom_call.1} parent=47 // pred_check_branch
          %302 = sbr.rel (%p300) target = $region52
        $region51: #{tpu_custom_call.1} parent=47 // pred_region
          %s303 = sand.u32 %s29, 1
          %s304 = scalar_lea.sflag [#allocation5], %s303
          %s305 = sand.u32 %s29, 1
          %s306 = smul.addr %s305, 4
          %s307 = scalar_lea.vmem [#allocation4], %s306
          %s309 = ssub.s32 64, 64
          %310 = vsyncadd %s304, %s309
          %s311 = smul.addr %s19, 64
          %s312 = scalar_lea.hbm %s0, %s311
          %s314 = sshll.u32 %s307, 4
          %s315 = int_to_ptr.vmem [resolvable:$true] %s314
          %317 = dma.hbm_to_vmem [thread:$0]  %s312, 64, %s315, %s304
        $region52: #{tpu_custom_call.1} parent=47 // pred_fallthru
          _
      $region48: #{tpu_custom_call.1} parent=5 // pred_fallthru
        _
      %p318 = scmp.le.s32.totalorder 1, %s19
      %p319 = scmp.lt.s32.totalorder %s19, 3
      %p320 = pnand %p318, %p319
      %p321 = pneg %p320
      // Predicated region
      $region53: #{tpu_custom_call.1} parent=5 // pred_check
        _
      $region54: #{tpu_custom_call.1} parent=5 // pred_check_branch
        %323 = sbr.rel (%p320) target = $region56
      $region55: #{tpu_custom_call.1} parent=5 // pred_region
        %s324 = ssub.s32 %s19, 1
        %s325 = sand.u32 %s32, 1
        %s326 = scalar_lea.sflag [#allocation5], %s325
        %s327 = sand.u32 %s32, 1
        %s328 = smul.addr %s327, 4
        %s329 = scalar_lea.vmem [#allocation4], %s328
        // Predicated region
        $region57: #{tpu_custom_call.1} parent=55 // pred_check
          %p330 = pneg %p45
        $region58: #{tpu_custom_call.1} parent=55 // pred_check_branch
          %332 = sbr.rel (%p330) target = $region60
        $region59: #{tpu_custom_call.1} parent=55 // pred_region
          %333 = dma.done %s326, 64
        $region60: #{tpu_custom_call.1} parent=55 // pred_fallthru
          _
        // Predicated region
        $region61: #{tpu_custom_call.1} parent=55 // pred_check
          %p334 = pneg %p108
        $region62: #{tpu_custom_call.1} parent=55 // pred_check_branch
          %336 = sbr.rel (%p334) target = $region64
        $region63: #{tpu_custom_call.1} parent=55 // pred_region
          %337 = dma.done [#allocation7], 768
        $region64: #{tpu_custom_call.1} parent=55 // pred_fallthru
          _
        // Predicated region
        $region65: #{tpu_custom_call.1} parent=55 // pred_check
          %p338 = pneg %p150
        $region66: #{tpu_custom_call.1} parent=55 // pred_check_branch
          %340 = sbr.rel (%p338) target = $region68
        $region67: #{tpu_custom_call.1} parent=55 // pred_region
          %341 = dma.done [#allocation7], 128
        $region68: #{tpu_custom_call.1} parent=55 // pred_fallthru
          _
        %s342 = sand.u32 %s32, 1
        %s343 = scalar_lea.sflag [#allocation5], %s342
        %s344 = sand.u32 %s32, 1
        %s345 = smul.addr %s344, 4
        %s346 = scalar_lea.vmem [#allocation4], %s345
        %p347 = pneg %p45
        %p348 = pneg %p42
        %p349 = pneg %p66
        %p350 = pneg %p63
        %p351 = pneg %p87
        %p352 = pneg %p84
        %p353 = pneg %p108
        %p354 = pneg %p105
        %p355 = pneg %p129
        %p356 = pneg %p126
        %p357 = pneg %p150
        %p358 = pneg %p147
        %p359 = pneg %p171
        %p360 = pneg %p168
        %p361 = pneg %p192
        %p362 = pneg %p189
        %p363 = pneg %p213
        %p364 = pneg %p210
        %p365 = pneg %p239
        %p366 = pneg %p236
        %p367 = scmp.lt.s32.totalorder %s24, 1
        %s368 = scalar_select %p367, %s24, 1
        %s369 = smul.addr %s368, 2
        %s370 = smul.addr %s369, 4
        %s371 = scalar_lea.vmem %s9, %s370
        %p372 = scmp.lt.s32.totalorder %s24, 1
        %s373 = scalar_select %p372, %s24, 1
        %s374 = smul.addr %s373, 2
        %s375 = smul.addr %s374, 4
        %s376 = scalar_lea.vmem %s9, %s375
        %v377 = vld [vmem:[%s7] sm:$0x1]
        %vm378 = vcmp.gt.f32.partialorder %v377, 0.5
        %379 = vst [vmem:[#allocation2] sm:$0xff] 0.0
        %380 = vst [vmem:[#allocation2 + $0x18] sm:$0xff] 0.0
        %381 = vst [vmem:[#allocation2 + $0x30] sm:$0xff] 0.0
        %382 = vst [vmem:[#allocation2 + $0x48] sm:$0xff] 0.0
        %vm383 = vcmask 1048032
        %384 = vst.msk [vmem:[#allocation2 + $0x8] sm:$0xff] %vm383, 0.0
        %vm385 = vcmask 490496
        %386 = vst.msk [vmem:[#allocation2 + $0x10] sm:$0xff] %vm385, 0.0
        %387 = vst.msk [vmem:[#allocation2 + $0x20] sm:$0xff] %vm383, 0.0
        %388 = vst.msk [vmem:[#allocation2 + $0x28] sm:$0xff] %vm385, 0.0
        %389 = vst.msk [vmem:[#allocation2 + $0x38] sm:$0xff] %vm383, 0.0
        %390 = vst.msk [vmem:[#allocation2 + $0x40] sm:$0xff] %vm385, 0.0
        %391 = vst.msk [vmem:[#allocation2 + $0x50] sm:$0xff] %vm383, 0.0
        %392 = vst.msk [vmem:[#allocation2 + $0x58] sm:$0xff] %vm385, 0.0
        %393 = vst [vmem:[#allocation3] sm:$0xff] 0.0
        %394 = vst [vmem:[#allocation3 + $0x18] sm:$0xff] 0.0
        %395 = vst.msk [vmem:[#allocation3 + $0x8] sm:$0xff] %vm383, 0.0
        %396 = vst.msk [vmem:[#allocation3 + $0x10] sm:$0xff] %vm385, 0.0
        %397 = vst.msk [vmem:[#allocation3 + $0x20] sm:$0xff] %vm383, 0.0
        %398 = vst.msk [vmem:[#allocation3 + $0x28] sm:$0xff] %vm385, 0.0
        %v399 = vld [vmem:[%s1] sm:$0xff]
        %v400 = vld [vmem:[%s1 + $0x8] sm:$0xff]
        %v401 = vld [vmem:[%s1 + $0x10] sm:$0xff]
        %v402 = vld [vmem:[%s1 + $0x18] sm:$0xff]
        %v403 = vld [vmem:[%s329] sm:$0xf]
        %408 = vrot.lane.b32.xlu0 %v399, 124
        %v409 = vpop.permute.xlu0 %408
        %410 = vrot.lane.b32.xlu0 %v400, 124
        %v411 = vpop.permute.xlu0 %410
        %412 = vrot.lane.b32.xlu0 %v401, 124
        %v413 = vpop.permute.xlu0 %412
        %414 = vrot.lane.b32.xlu0 %v402, 124
        %v415 = vpop.permute.xlu0 %414
        %417 = vrot.lane.b32.xlu0 %v403, 127
        %v418 = vpop.permute.xlu0 %417
        %vm419 = vcmask 31744
        %v420 = vsel %vm419, %v409, 0
        %v422 = vsel %vm419, %v411, 0
        %v424 = vsel %vm419, %v413, 0
        %v426 = vsel %vm419, %v415, 0
        %vm428 = vcmask 1043456
        %v429 = vsel %vm428, %v418, 0
        %431 = vmatprep.subr.mxu0 0.0
        %432 = vmatpush1.msra.mxu0 %v429
        %433 = vmatprep.subr.mxu0 0.0
        %434 = vmatpush1.msra.mxu0 0.0
        %435 = vmatprep.subr.mxu0 0.0
        %436 = vmatpush1.msra.mxu0 0.0
        %437 = vmatprep.subr.mxu0 0.0
        %438 = vmatpush1.msra.mxu0 0.0
        %439 = vmatprep.subr.mxu0 0.0
        %440 = vmatpush1.msra.mxu0 0.0
        %441 = vmatprep.subr.mxu0 0.0
        %442 = vmatpush1.msra.mxu0 0.0
        %443 = vmatprep.subr.mxu0 0.0
        %444 = vmatpush1.msra.mxu0 0.0
        %445 = vmatprep.subr.mxu0 0.0
        %446 = vmatpush1.msra.mxu0 0.0
        %447 = vmatprep.subr.mxu0 0.0
        %448 = vmatpush1.msra.mxu0 0.0
        %449 = vmatprep.subr.mxu0 0.0
        %450 = vmatpush1.msra.mxu0 0.0
        %451 = vmatprep.subr.mxu0 0.0
        %452 = vmatpush1.msra.mxu0 0.0
        %453 = vmatprep.subr.mxu0 0.0
        %454 = vmatpush1.msra.mxu0 0.0
        %455 = vmatprep.subr.mxu0 0.0
        %456 = vmatpush1.msra.mxu0 0.0
        %457 = vmatprep.subr.mxu0 0.0
        %458 = vmatpush1.msra.mxu0 0.0
        %459 = vmatprep.subr.mxu0 0.0
        %460 = vmatpush1.msra.mxu0 0.0
        %461 = vmatprep.subr.mxu0 0.0
        %462 = vmatpush1.msra.mxu0 0.0
        %463 = vmatprep.subr.mxu0 0.0
        %464 = vmatpush1.msra.mxu0 0.0
        %465 = vmatprep.subr.mxu0 0.0
        %466 = vmatpush1.msra.mxu0 0.0
        %467 = vmatprep.subr.mxu0 0.0
        %468 = vmatpush1.msra.mxu0 0.0
        %469 = vmatprep.subr.mxu0 0.0
        %470 = vmatpush1.msra.mxu0 0.0
        %471 = vmatprep.subr.mxu0 0.0
        %472 = vmatpush1.msra.mxu0 0.0
        %473 = vmatprep.subr.mxu0 0.0
        %474 = vmatpush1.msra.mxu0 0.0
        %475 = vmatprep.subr.mxu0 0.0
        %476 = vmatpush1.msra.mxu0 0.0
        %477 = vmatprep.subr.mxu0 0.0
        %478 = vmatpush1.msra.mxu0 0.0
        %479 = vmatprep.subr.mxu0 0.0
        %480 = vmatpush1.msra.mxu0 0.0
        %481 = vmatprep.subr.mxu0 0.0
        %482 = vmatpush1.msra.mxu0 0.0
        %483 = vmatprep.subr.mxu0 0.0
        %484 = vmatpush1.msra.mxu0 0.0
        %485 = vmatprep.subr.mxu0 0.0
        %486 = vmatpush1.msra.mxu0 0.0
        %487 = vmatprep.subr.mxu0 0.0
        %488 = vmatpush1.msra.mxu0 0.0
        %489 = vmatprep.subr.mxu0 0.0
        %490 = vmatpush1.msra.mxu0 0.0
        %491 = vmatprep.subr.mxu0 0.0
        %492 = vmatpush1.msra.mxu0 0.0
        %493 = vmatprep.subr.mxu0 0.0
        %494 = vmatpush1.msra.mxu0 0.0
        %495 = vmatprep.mubr.f32.mxu0 0.0
        %496 = vmatmul.mubr.f32.gmra.mrb[0].mxu0 %v420
        %v497 = vpop.f32.mrb[0].mxu0
        %v498 = vadd.f32 0.0, %v497
        %v499 = vpop.f32.mrb[0].mxu0
        %500 = vmatprep.mubr.f32.mxu0 0.0
        %501 = vmatmul.mubr.f32.gmra.mrb[0].mxu0 %v422
        %v502 = vpop.f32.mrb[0].mxu0
        %v503 = vadd.f32 0.0, %v502
        %v504 = vpop.f32.mrb[0].mxu0
        %505 = vmatprep.mubr.f32.mxu0 0.0
        %506 = vmatmul.mubr.f32.gmra.mrb[0].mxu0 %v424
        %v507 = vpop.f32.mrb[0].mxu0
        %v508 = vadd.f32 0.0, %v507
        %v509 = vpop.f32.mrb[0].mxu0
        %510 = vmatprep.mubr.f32.mxu0 0.0
        %511 = vmatmul.mubr.f32.gmra.mrb[0].mxu0 %v426
        %v512 = vpop.f32.mrb[0].mxu0
        %v513 = vadd.f32 0.0, %v512
        %v514 = vpop.f32.mrb[0].mxu0
        %515 = vdwg.mxu0
        %v516 = vsel %vm419, %v399, 0
        %v518 = vsel %vm419, %v400, 0
        %v520 = vsel %vm419, %v401, 0
        %v522 = vsel %vm419, %v402, 0
        %v524 = vsel %vm428, %v403, 0
        %526 = vmatprep.subr.mxu0 0.0
        %527 = vmatpush1.msra.mxu0 %v524
        %528 = vmatprep.subr.mxu0 0.0
        %529 = vmatpush1.msra.mxu0 0.0
        %530 = vmatprep.subr.mxu0 0.0
        %531 = vmatpush1.msra.mxu0 0.0
        %532 = vmatprep.subr.mxu0 0.0
        %533 = vmatpush1.msra.mxu0 0.0
        %534 = vmatprep.subr.mxu0 0.0
        %535 = vmatpush1.msra.mxu0 0.0
        %536 = vmatprep.subr.mxu0 0.0
        %537 = vmatpush1.msra.mxu0 0.0
        %538 = vmatprep.subr.mxu0 0.0
        %539 = vmatpush1.msra.mxu0 0.0
        %540 = vmatprep.subr.mxu0 0.0
        %541 = vmatpush1.msra.mxu0 0.0
        %542 = vmatprep.subr.mxu0 0.0
        %543 = vmatpush1.msra.mxu0 0.0
        %544 = vmatprep.subr.mxu0 0.0
        %545 = vmatpush1.msra.mxu0 0.0
        %546 = vmatprep.subr.mxu0 0.0
        %547 = vmatpush1.msra.mxu0 0.0
        %548 = vmatprep.subr.mxu0 0.0
        %549 = vmatpush1.msra.mxu0 0.0
        %550 = vmatprep.subr.mxu0 0.0
        %551 = vmatpush1.msra.mxu0 0.0
        %552 = vmatprep.subr.mxu0 0.0
        %553 = vmatpush1.msra.mxu0 0.0
        %554 = vmatprep.subr.mxu0 0.0
        %555 = vmatpush1.msra.mxu0 0.0
        %556 = vmatprep.subr.mxu0 0.0
        %557 = vmatpush1.msra.mxu0 0.0
        %558 = vmatprep.subr.mxu0 0.0
        %559 = vmatpush1.msra.mxu0 0.0
        %560 = vmatprep.subr.mxu0 0.0
        %561 = vmatpush1.msra.mxu0 0.0
        %562 = vmatprep.subr.mxu0 0.0
        %563 = vmatpush1.msra.mxu0 0.0
        %564 = vmatprep.subr.mxu0 0.0
        %565 = vmatpush1.msra.mxu0 0.0
        %566 = vmatprep.subr.mxu0 0.0
        %567 = vmatpush1.msra.mxu0 0.0
        %568 = vmatprep.subr.mxu0 0.0
        %569 = vmatpush1.msra.mxu0 0.0
        %570 = vmatprep.subr.mxu0 0.0
        %571 = vmatpush1.msra.mxu0 0.0
        %572 = vmatprep.subr.mxu0 0.0
        %573 = vmatpush1.msra.mxu0 0.0
        %574 = vmatprep.subr.mxu0 0.0
        %575 = vmatpush1.msra.mxu0 0.0
        %576 = vmatprep.subr.mxu0 0.0
        %577 = vmatpush1.msra.mxu0 0.0
        %578 = vmatprep.subr.mxu0 0.0
        %579 = vmatpush1.msra.mxu0 0.0
        %580 = vmatprep.subr.mxu0 0.0
        %581 = vmatpush1.msra.mxu0 0.0
        %582 = vmatprep.subr.mxu0 0.0
        %583 = vmatpush1.msra.mxu0 0.0
        %584 = vmatprep.subr.mxu0 0.0
        %585 = vmatpush1.msra.mxu0 0.0
        %586 = vmatprep.subr.mxu0 0.0
        %587 = vmatpush1.msra.mxu0 0.0
        %588 = vmatprep.subr.mxu0 0.0
        %589 = vmatpush1.msra.mxu0 0.0
        %590 = vmatprep.mubr.f32.mxu0 0.0
        %591 = vmatmul.mubr.f32.gmra.mrb[0].mxu0 %v516
        %v592 = vpop.f32.mrb[0].mxu0
        %v593 = vadd.f32 %v498, %v592
        %v594 = vpop.f32.mrb[0].mxu0
        %595 = vmatprep.mubr.f32.mxu0 0.0
        %596 = vmatmul.mubr.f32.gmra.mrb[0].mxu0 %v518
        %v597 = vpop.f32.mrb[0].mxu0
        %v598 = vadd.f32 %v503, %v597
        %v599 = vpop.f32.mrb[0].mxu0
        %600 = vmatprep.mubr.f32.mxu0 0.0
        %601 = vmatmul.mubr.f32.gmra.mrb[0].mxu0 %v520
        %v602 = vpop.f32.mrb[0].mxu0
        %v603 = vadd.f32 %v508, %v602
        %v604 = vpop.f32.mrb[0].mxu0
        %605 = vmatprep.mubr.f32.mxu0 0.0
        %606 = vmatmul.mubr.f32.gmra.mrb[0].mxu0 %v522
        %v607 = vpop.f32.mrb[0].mxu0
        %v608 = vadd.f32 %v513, %v607
        %v609 = vpop.f32.mrb[0].mxu0
        %610 = vdwg.mxu0
        %611 = vrot.lane.b32.xlu0 %v399, 120
        %v612 = vpop.permute.xlu0 %611
        %613 = vrot.lane.b32.xlu0 %v400, 120
        %v614 = vpop.permute.xlu0 %613
        %615 = vrot.lane.b32.xlu0 %v401, 120
        %v616 = vpop.permute.xlu0 %615
        %617 = vrot.lane.b32.xlu0 %v402, 120
        %v618 = vpop.permute.xlu0 %617
        %619 = vrot.lane.b32.xlu0 %v403, 126
        %v620 = vpop.permute.xlu0 %619
        %v621 = vsel %vm419, %v612, 0
        %v623 = vsel %vm419, %v614, 0
        %v625 = vsel %vm419, %v616, 0
        %v627 = vsel %vm419, %v618, 0
        %v629 = vsel %vm428, %v620, 0
        %631 = vmatprep.subr.mxu0 0.0
        %632 = vmatpush1.msra.mxu0 %v629
        %633 = vmatprep.subr.mxu0 0.0
        %634 = vmatpush1.msra.mxu0 0.0
        %635 = vmatprep.subr.mxu0 0.0
        %636 = vmatpush1.msra.mxu0 0.0
        %637 = vmatprep.subr.mxu0 0.0
        %638 = vmatpush1.msra.mxu0 0.0
        %639 = vmatprep.subr.mxu0 0.0
        %640 = vmatpush1.msra.mxu0 0.0
        %641 = vmatprep.subr.mxu0 0.0
        %642 = vmatpush1.msra.mxu0 0.0
        %643 = vmatprep.subr.mxu0 0.0
        %644 = vmatpush1.msra.mxu0 0.0
        %645 = vmatprep.subr.mxu0 0.0
        %646 = vmatpush1.msra.mxu0 0.0
        %647 = vmatprep.subr.mxu0 0.0
        %648 = vmatpush1.msra.mxu0 0.0
        %649 = vmatprep.subr.mxu0 0.0
        %650 = vmatpush1.msra.mxu0 0.0
        %651 = vmatprep.subr.mxu0 0.0
        %652 = vmatpush1.msra.mxu0 0.0
        %653 = vmatprep.subr.mxu0 0.0
        %654 = vmatpush1.msra.mxu0 0.0
        %655 = vmatprep.subr.mxu0 0.0
        %656 = vmatpush1.msra.mxu0 0.0
        %657 = vmatprep.subr.mxu0 0.0
        %658 = vmatpush1.msra.mxu0 0.0
        %659 = vmatprep.subr.mxu0 0.0
        %660 = vmatpush1.msra.mxu0 0.0
        %661 = vmatprep.subr.mxu0 0.0
        %662 = vmatpush1.msra.mxu0 0.0
        %663 = vmatprep.subr.mxu0 0.0
        %664 = vmatpush1.msra.mxu0 0.0
        %665 = vmatprep.subr.mxu0 0.0
        %666 = vmatpush1.msra.mxu0 0.0
        %667 = vmatprep.subr.mxu0 0.0
        %668 = vmatpush1.msra.mxu0 0.0
        %669 = vmatprep.subr.mxu0 0.0
        %670 = vmatpush1.msra.mxu0 0.0
        %671 = vmatprep.subr.mxu0 0.0
        %672 = vmatpush1.msra.mxu0 0.0
        %673 = vmatprep.subr.mxu0 0.0
        %674 = vmatpush1.msra.mxu0 0.0
        %675 = vmatprep.subr.mxu0 0.0
        %676 = vmatpush1.msra.mxu0 0.0
        %677 = vmatprep.subr.mxu0 0.0
        %678 = vmatpush1.msra.mxu0 0.0
        %679 = vmatprep.subr.mxu0 0.0
        %680 = vmatpush1.msra.mxu0 0.0
        %681 = vmatprep.subr.mxu0 0.0
        %682 = vmatpush1.msra.mxu0 0.0
        %683 = vmatprep.subr.mxu0 0.0
        %684 = vmatpush1.msra.mxu0 0.0
        %685 = vmatprep.subr.mxu0 0.0
        %686 = vmatpush1.msra.mxu0 0.0
        %687 = vmatprep.subr.mxu0 0.0
        %688 = vmatpush1.msra.mxu0 0.0
        %689 = vmatprep.subr.mxu0 0.0
        %690 = vmatpush1.msra.mxu0 0.0
        %691 = vmatprep.subr.mxu0 0.0
        %692 = vmatpush1.msra.mxu0 0.0
        %693 = vmatprep.subr.mxu0 0.0
        %694 = vmatpush1.msra.mxu0 0.0
        %695 = vmatprep.mubr.f32.mxu0 0.0
        %696 = vmatmul.mubr.f32.gmra.mrb[0].mxu0 %v621
        %v697 = vpop.f32.mrb[0].mxu0
        %v698 = vadd.f32 0.0, %v697
        %v699 = vpop.f32.mrb[0].mxu0
        %700 = vmatprep.mubr.f32.mxu0 0.0
        %701 = vmatmul.mubr.f32.gmra.mrb[0].mxu0 %v623
        %v702 = vpop.f32.mrb[0].mxu0
        %v703 = vadd.f32 0.0, %v702
        %v704 = vpop.f32.mrb[0].mxu0
        %705 = vmatprep.mubr.f32.mxu0 0.0
        %706 = vmatmul.mubr.f32.gmra.mrb[0].mxu0 %v625
        %v707 = vpop.f32.mrb[0].mxu0
        %v708 = vadd.f32 0.0, %v707
        %v709 = vpop.f32.mrb[0].mxu0
        %710 = vmatprep.mubr.f32.mxu0 0.0
        %711 = vmatmul.mubr.f32.gmra.mrb[0].mxu0 %v627
        %v712 = vpop.f32.mrb[0].mxu0
        %v713 = vadd.f32 0.0, %v712
        %v714 = vpop.f32.mrb[0].mxu0
        %715 = vdwg.mxu0
        %v716 = vadd.f32 %v593, %v698
        %v717 = vadd.f32 %v598, %v703
        %v718 = vadd.f32 %v603, %v708
        %v719 = vadd.f32 %v608, %v713
        %v720 = vld [vmem:[%s2] sm:$0xff]
        %v721 = vld [vmem:[%s2 + $0x8] sm:$0xff]
        %v722 = vld [vmem:[%s2 + $0x10] sm:$0xff]
        %v723 = vld [vmem:[%s2 + $0x18] sm:$0xff]
        %725 = vset.pattern.permute.xlu0 0
        %726 = vperm.xlu0 %725, %v720
        %v727 = vpop.permute.xlu0 %726
        %730 = vset.pattern.permute.xlu0 0
        %731 = vperm.xlu0 %730, %v721
        %v732 = vpop.permute.xlu0 %731
        %735 = vset.pattern.permute.xlu0 0
        %736 = vperm.xlu0 %735, %v722
        %v737 = vpop.permute.xlu0 %736
        %740 = vset.pattern.permute.xlu0 0
        %741 = vperm.xlu0 %740, %v723
        %v742 = vpop.permute.xlu0 %741
        %v744 = vadd.f32 %v716, %v727
        %v745 = vadd.f32 %v717, %v732
        %v746 = vadd.f32 %v718, %v737
        %v747 = vadd.f32 %v719, %v742
        %v748 = vsel %vm378, 1, 0
        %v749 = vlaneseq
        %v750 = vshrl.u32 %v749, 7
        %v751 = vsub.s32 0, %v750
        %v752 = vrot.slane %v748, %v751
        %vm753 = vcmp.eq.s32.totalorder %v752, 1
        %v754 = vsel %vm753, %v744, 0.0
        %v755 = vsel %vm753, %v745, 0.0
        %v756 = vsel %vm753, %v746, 0.0
        %v757 = vsel %vm753, %v747, 0.0
        %758 = vst.msk [vmem:[#allocation2 + $0x8] sm:$0xff] %vm385, %v754
        %759 = vst.msk [vmem:[#allocation2 + $0x20] sm:$0xff] %vm385, %v755
        %760 = vst.msk [vmem:[#allocation2 + $0x38] sm:$0xff] %vm385, %v756
        %761 = vst.msk [vmem:[#allocation2 + $0x50] sm:$0xff] %vm385, %v757
        %v762 = vld [vmem:[#allocation6] sm:$0xff]
        %v763 = vld [vmem:[#allocation6 + $0x18] sm:$0xff]
        %v764 = vld [vmem:[#allocation2] sm:$0xff]
        %v765 = vld [vmem:[#allocation2 + $0x8] sm:$0xff]
        %v766 = vld [vmem:[#allocation2 + $0x18] sm:$0xff]
        %v767 = vld [vmem:[#allocation2 + $0x20] sm:$0xff]
        %v768 = vld [vmem:[#allocation2 + $0x30] sm:$0xff]
        %v769 = vld [vmem:[#allocation2 + $0x38] sm:$0xff]
        %v770 = vld [vmem:[#allocation2 + $0x48] sm:$0xff]
        %v771 = vld [vmem:[#allocation2 + $0x50] sm:$0xff]
        %774 = vrot.lane.b32.xlu0 %v762, 96
        %v775 = vpop.permute.xlu0 %774
        %776 = vrot.lane.b32.xlu0 %v763, 96
        %v777 = vpop.permute.xlu0 %776
        %786 = vrot.lane.b32.xlu0 %v764, 10
        %v787 = vpop.permute.xlu0 %786
        %788 = vrot.lane.b32.xlu0 %v765, 10
        %v789 = vpop.permute.xlu0 %788
        %790 = vrot.lane.b32.xlu0 %v766, 10
        %v791 = vpop.permute.xlu0 %790
        %792 = vrot.lane.b32.xlu0 %v767, 10
        %v793 = vpop.permute.xlu0 %792
        %794 = vrot.lane.b32.xlu0 %v768, 10
        %v795 = vpop.permute.xlu0 %794
        %796 = vrot.lane.b32.xlu0 %v769, 10
        %v797 = vpop.permute.xlu0 %796
        %798 = vrot.lane.b32.xlu0 %v770, 10
        %v799 = vpop.permute.xlu0 %798
        %800 = vrot.lane.b32.xlu0 %v771, 10
        %v801 = vpop.permute.xlu0 %800
        %vm802 = vcmask 80896
        %v803 = vsel %vm802, %v787, %v789
        %v804 = vsel %vm802, %v791, %v793
        %v805 = vsel %vm802, %v795, %v797
        %v806 = vsel %vm802, %v799, %v801
        %vm811 = vcmask 261120
        %v812 = vsel %vm811, %v775, 0
        %v814 = vsel %vm811, %v777, 0
        %816 = vmatprep.subr.mxu0 0.0
        %817 = vmatpush1.msra.mxu0 %v803
        %818 = vmatprep.subr.mxu0 0.0
        %819 = vmatpush1.msra.mxu0 %v804
        %820 = vmatprep.subr.mxu0 0.0
        %821 = vmatpush1.msra.mxu0 %v805
        %822 = vmatprep.subr.mxu0 0.0
        %823 = vmatpush1.msra.mxu0 %v806
        %824 = vmatprep.subr.mxu0 0.0
        %825 = vmatpush1.msra.mxu0 0.0
        %826 = vmatprep.subr.mxu0 0.0
        %827 = vmatpush1.msra.mxu0 0.0
        %828 = vmatprep.subr.mxu0 0.0
        %829 = vmatpush1.msra.mxu0 0.0
        %830 = vmatprep.subr.mxu0 0.0
        %831 = vmatpush1.msra.mxu0 0.0
        %832 = vmatprep.subr.mxu0 0.0
        %833 = vmatpush1.msra.mxu0 0.0
        %834 = vmatprep.subr.mxu0 0.0
        %835 = vmatpush1.msra.mxu0 0.0
        %836 = vmatprep.subr.mxu0 0.0
        %837 = vmatpush1.msra.mxu0 0.0
        %838 = vmatprep.subr.mxu0 0.0
        %839 = vmatpush1.msra.mxu0 0.0
        %840 = vmatprep.subr.mxu0 0.0
        %841 = vmatpush1.msra.mxu0 0.0
        %842 = vmatprep.subr.mxu0 0.0
        %843 = vmatpush1.msra.mxu0 0.0
        %844 = vmatprep.subr.mxu0 0.0
        %845 = vmatpush1.msra.mxu0 0.0
        %846 = vmatprep.subr.mxu0 0.0
        %847 = vmatpush1.msra.mxu0 0.0
        %848 = vmatprep.subr.mxu0 0.0
        %849 = vmatpush1.msra.mxu0 0.0
        %850 = vmatprep.subr.mxu0 0.0
        %851 = vmatpush1.msra.mxu0 0.0
        %852 = vmatprep.subr.mxu0 0.0
        %853 = vmatpush1.msra.mxu0 0.0
        %854 = vmatprep.subr.mxu0 0.0
        %855 = vmatpush1.msra.mxu0 0.0
        %856 = vmatprep.subr.mxu0 0.0
        %857 = vmatpush1.msra.mxu0 0.0
        %858 = vmatprep.subr.mxu0 0.0
        %859 = vmatpush1.msra.mxu0 0.0
        %860 = vmatprep.subr.mxu0 0.0
        %861 = vmatpush1.msra.mxu0 0.0
        %862 = vmatprep.subr.mxu0 0.0
        %863 = vmatpush1.msra.mxu0 0.0
        %864 = vmatprep.subr.mxu0 0.0
        %865 = vmatpush1.msra.mxu0 0.0
        %866 = vmatprep.subr.mxu0 0.0
        %867 = vmatpush1.msra.mxu0 0.0
        %868 = vmatprep.subr.mxu0 0.0
        %869 = vmatpush1.msra.mxu0 0.0
        %870 = vmatprep.subr.mxu0 0.0
        %871 = vmatpush1.msra.mxu0 0.0
        %872 = vmatprep.subr.mxu0 0.0
        %873 = vmatpush1.msra.mxu0 0.0
        %874 = vmatprep.subr.mxu0 0.0
        %875 = vmatpush1.msra.mxu0 0.0
        %876 = vmatprep.subr.mxu0 0.0
        %877 = vmatpush1.msra.mxu0 0.0
        %878 = vmatprep.subr.mxu0 0.0
        %879 = vmatpush1.msra.mxu0 0.0
        %880 = vmatprep.mubr.f32.mxu0 0.0
        %881 = vmatmul.mubr.f32.gmra.mrb[0].mxu0 %v812
        %v882 = vpop.f32.mrb[0].mxu0
        %v883 = vadd.f32 0.0, %v882
        %v884 = vpop.f32.mrb[0].mxu0
        %885 = vmatprep.mubr.f32.mxu0 0.0
        %886 = vmatmul.mubr.f32.gmra.mrb[0].mxu0 %v814
        %v887 = vpop.f32.mrb[0].mxu0
        %v888 = vadd.f32 0.0, %v887
        %v889 = vpop.f32.mrb[0].mxu0
        %890 = vdwg.mxu0
        %891 = vrot.lane.b32.xlu0 %v764, 11
        %v892 = vpop.permute.xlu0 %891
        %893 = vrot.lane.b32.xlu0 %v765, 11
        %v894 = vpop.permute.xlu0 %893
        %895 = vrot.lane.b32.xlu0 %v766, 11
        %v896 = vpop.permute.xlu0 %895
        %897 = vrot.lane.b32.xlu0 %v767, 11
        %v898 = vpop.permute.xlu0 %897
        %899 = vrot.lane.b32.xlu0 %v768, 11
        %v900 = vpop.permute.xlu0 %899
        %901 = vrot.lane.b32.xlu0 %v769, 11
        %v902 = vpop.permute.xlu0 %901
        %903 = vrot.lane.b32.xlu0 %v770, 11
        %v904 = vpop.permute.xlu0 %903
        %905 = vrot.lane.b32.xlu0 %v771, 11
        %v906 = vpop.permute.xlu0 %905
        %vm907 = vcmask 89088
        %v908 = vsel %vm907, %v892, %v894
        %v909 = vsel %vm907, %v896, %v898
        %v910 = vsel %vm907, %v900, %v902
        %v911 = vsel %vm907, %v904, %v906
        %v916 = vsel %vm811, %v762, 0
        %v918 = vsel %vm811, %v763, 0
        %920 = vmatprep.subr.mxu0 0.0
        %921 = vmatpush1.msra.mxu0 %v908
        %922 = vmatprep.subr.mxu0 0.0
        %923 = vmatpush1.msra.mxu0 %v909
        %924 = vmatprep.subr.mxu0 0.0
        %925 = vmatpush1.msra.mxu0 %v910
        %926 = vmatprep.subr.mxu0 0.0
        %927 = vmatpush1.msra.mxu0 %v911
        %928 = vmatprep.subr.mxu0 0.0
        %929 = vmatpush1.msra.mxu0 0.0
        %930 = vmatprep.subr.mxu0 0.0
        %931 = vmatpush1.msra.mxu0 0.0
        %932 = vmatprep.subr.mxu0 0.0
        %933 = vmatpush1.msra.mxu0 0.0
        %934 = vmatprep.subr.mxu0 0.0
        %935 = vmatpush1.msra.mxu0 0.0
        %936 = vmatprep.subr.mxu0 0.0
        %937 = vmatpush1.msra.mxu0 0.0
        %938 = vmatprep.subr.mxu0 0.0
        %939 = vmatpush1.msra.mxu0 0.0
        %940 = vmatprep.subr.mxu0 0.0
        %941 = vmatpush1.msra.mxu0 0.0
        %942 = vmatprep.subr.mxu0 0.0
        %943 = vmatpush1.msra.mxu0 0.0
        %944 = vmatprep.subr.mxu0 0.0
        %945 = vmatpush1.msra.mxu0 0.0
        %946 = vmatprep.subr.mxu0 0.0
        %947 = vmatpush1.msra.mxu0 0.0
        %948 = vmatprep.subr.mxu0 0.0
        %949 = vmatpush1.msra.mxu0 0.0
        %950 = vmatprep.subr.mxu0 0.0
        %951 = vmatpush1.msra.mxu0 0.0
        %952 = vmatprep.subr.mxu0 0.0
        %953 = vmatpush1.msra.mxu0 0.0
        %954 = vmatprep.subr.mxu0 0.0
        %955 = vmatpush1.msra.mxu0 0.0
        %956 = vmatprep.subr.mxu0 0.0
        %957 = vmatpush1.msra.mxu0 0.0
        %958 = vmatprep.subr.mxu0 0.0
        %959 = vmatpush1.msra.mxu0 0.0
        %960 = vmatprep.subr.mxu0 0.0
        %961 = vmatpush1.msra.mxu0 0.0
        %962 = vmatprep.subr.mxu0 0.0
        %963 = vmatpush1.msra.mxu0 0.0
        %964 = vmatprep.subr.mxu0 0.0
        %965 = vmatpush1.msra.mxu0 0.0
        %966 = vmatprep.subr.mxu0 0.0
        %967 = vmatpush1.msra.mxu0 0.0
        %968 = vmatprep.subr.mxu0 0.0
        %969 = vmatpush1.msra.mxu0 0.0
        %970 = vmatprep.subr.mxu0 0.0
        %971 = vmatpush1.msra.mxu0 0.0
        %972 = vmatprep.subr.mxu0 0.0
        %973 = vmatpush1.msra.mxu0 0.0
        %974 = vmatprep.subr.mxu0 0.0
        %975 = vmatpush1.msra.mxu0 0.0
        %976 = vmatprep.subr.mxu0 0.0
        %977 = vmatpush1.msra.mxu0 0.0
        %978 = vmatprep.subr.mxu0 0.0
        %979 = vmatpush1.msra.mxu0 0.0
        %980 = vmatprep.subr.mxu0 0.0
        %981 = vmatpush1.msra.mxu0 0.0
        %982 = vmatprep.subr.mxu0 0.0
        %983 = vmatpush1.msra.mxu0 0.0
        %984 = vmatprep.mubr.f32.mxu0 0.0
        %985 = vmatmul.mubr.f32.gmra.mrb[0].mxu0 %v916
        %v986 = vpop.f32.mrb[0].mxu0
        %v987 = vadd.f32 %v883, %v986
        %v988 = vpop.f32.mrb[0].mxu0
        %989 = vmatprep.mubr.f32.mxu0 0.0
        %990 = vmatmul.mubr.f32.gmra.mrb[0].mxu0 %v918
        %v991 = vpop.f32.mrb[0].mxu0
        %v992 = vadd.f32 %v888, %v991
        %v993 = vpop.f32.mrb[0].mxu0
        %994 = vdwg.mxu0
        %995 = vrot.lane.b32.xlu0 %v762, 64
        %v996 = vpop.permute.xlu0 %995
        %997 = vrot.lane.b32.xlu0 %v763, 64
        %v998 = vpop.permute.xlu0 %997
        %999 = vrot.lane.b32.xlu0 %v764, 9
        %v1000 = vpop.permute.xlu0 %999
        %1001 = vrot.lane.b32.xlu0 %v765, 9
        %v1002 = vpop.permute.xlu0 %1001
        %1003 = vrot.lane.b32.xlu0 %v766, 9
        %v1004 = vpop.permute.xlu0 %1003
        %1005 = vrot.lane.b32.xlu0 %v767, 9
        %v1006 = vpop.permute.xlu0 %1005
        %1007 = vrot.lane.b32.xlu0 %v768, 9
        %v1008 = vpop.permute.xlu0 %1007
        %1009 = vrot.lane.b32.xlu0 %v769, 9
        %v1010 = vpop.permute.xlu0 %1009
        %1011 = vrot.lane.b32.xlu0 %v770, 9
        %v1012 = vpop.permute.xlu0 %1011
        %1013 = vrot.lane.b32.xlu0 %v771, 9
        %v1014 = vpop.permute.xlu0 %1013
        %vm1015 = vcmask 72704
        %v1016 = vsel %vm1015, %v1000, %v1002
        %v1017 = vsel %vm1015, %v1004, %v1006
        %v1018 = vsel %vm1015, %v1008, %v1010
        %v1019 = vsel %vm1015, %v1012, %v1014
        %v1024 = vsel %vm811, %v996, 0
        %v1026 = vsel %vm811, %v998, 0
        %1028 = vmatprep.subr.mxu0 0.0
        %1029 = vmatpush1.msra.mxu0 %v1016
        %1030 = vmatprep.subr.mxu0 0.0
        %1031 = vmatpush1.msra.mxu0 %v1017
        %1032 = vmatprep.subr.mxu0 0.0
        %1033 = vmatpush1.msra.mxu0 %v1018
        %1034 = vmatprep.subr.mxu0 0.0
        %1035 = vmatpush1.msra.mxu0 %v1019
        %1036 = vmatprep.subr.mxu0 0.0
        %1037 = vmatpush1.msra.mxu0 0.0
        %1038 = vmatprep.subr.mxu0 0.0
        %1039 = vmatpush1.msra.mxu0 0.0
        %1040 = vmatprep.subr.mxu0 0.0
        %1041 = vmatpush1.msra.mxu0 0.0
        %1042 = vmatprep.subr.mxu0 0.0
        %1043 = vmatpush1.msra.mxu0 0.0
        %1044 = vmatprep.subr.mxu0 0.0
        %1045 = vmatpush1.msra.mxu0 0.0
        %1046 = vmatprep.subr.mxu0 0.0
        %1047 = vmatpush1.msra.mxu0 0.0
        %1048 = vmatprep.subr.mxu0 0.0
        %1049 = vmatpush1.msra.mxu0 0.0
        %1050 = vmatprep.subr.mxu0 0.0
        %1051 = vmatpush1.msra.mxu0 0.0
        %1052 = vmatprep.subr.mxu0 0.0
        %1053 = vmatpush1.msra.mxu0 0.0
        %1054 = vmatprep.subr.mxu0 0.0
        %1055 = vmatpush1.msra.mxu0 0.0
        %1056 = vmatprep.subr.mxu0 0.0
        %1057 = vmatpush1.msra.mxu0 0.0
        %1058 = vmatprep.subr.mxu0 0.0
        %1059 = vmatpush1.msra.mxu0 0.0
        %1060 = vmatprep.subr.mxu0 0.0
        %1061 = vmatpush1.msra.mxu0 0.0
        %1062 = vmatprep.subr.mxu0 0.0
        %1063 = vmatpush1.msra.mxu0 0.0
        %1064 = vmatprep.subr.mxu0 0.0
        %1065 = vmatpush1.msra.mxu0 0.0
        %1066 = vmatprep.subr.mxu0 0.0
        %1067 = vmatpush1.msra.mxu0 0.0
        %1068 = vmatprep.subr.mxu0 0.0
        %1069 = vmatpush1.msra.mxu0 0.0
        %1070 = vmatprep.subr.mxu0 0.0
        %1071 = vmatpush1.msra.mxu0 0.0
        %1072 = vmatprep.subr.mxu0 0.0
        %1073 = vmatpush1.msra.mxu0 0.0
        %1074 = vmatprep.subr.mxu0 0.0
        %1075 = vmatpush1.msra.mxu0 0.0
        %1076 = vmatprep.subr.mxu0 0.0
        %1077 = vmatpush1.msra.mxu0 0.0
        %1078 = vmatprep.subr.mxu0 0.0
        %1079 = vmatpush1.msra.mxu0 0.0
        %1080 = vmatprep.subr.mxu0 0.0
        %1081 = vmatpush1.msra.mxu0 0.0
        %1082 = vmatprep.subr.mxu0 0.0
        %1083 = vmatpush1.msra.mxu0 0.0
        %1084 = vmatprep.subr.mxu0 0.0
        %1085 = vmatpush1.msra.mxu0 0.0
        %1086 = vmatprep.subr.mxu0 0.0
        %1087 = vmatpush1.msra.mxu0 0.0
        %1088 = vmatprep.subr.mxu0 0.0
        %1089 = vmatpush1.msra.mxu0 0.0
        %1090 = vmatprep.subr.mxu0 0.0
        %1091 = vmatpush1.msra.mxu0 0.0
        %1092 = vmatprep.mubr.f32.mxu0 0.0
        %1093 = vmatmul.mubr.f32.gmra.mrb[0].mxu0 %v1024
        %v1094 = vpop.f32.mrb[0].mxu0
        %v1095 = vadd.f32 0.0, %v1094
        %v1096 = vpop.f32.mrb[0].mxu0
        %1097 = vmatprep.mubr.f32.mxu0 0.0
        %1098 = vmatmul.mubr.f32.gmra.mrb[0].mxu0 %v1026
        %v1099 = vpop.f32.mrb[0].mxu0
        %v1100 = vadd.f32 0.0, %v1099
        %v1101 = vpop.f32.mrb[0].mxu0
        %1102 = vdwg.mxu0
        %v1103 = vadd.f32 %v987, %v1095
        %v1104 = vadd.f32 %v992, %v1100
        %1105 = vrot.lane.b32.xlu0 %v762, 32
        %v1106 = vpop.permute.xlu0 %1105
        %1107 = vrot.lane.b32.xlu0 %v763, 32
        %v1108 = vpop.permute.xlu0 %1107
        %1109 = vrot.lane.b32.xlu0 %v764, 1
        %v1110 = vpop.permute.xlu0 %1109
        %1111 = vrot.lane.b32.xlu0 %v765, 1
        %v1112 = vpop.permute.xlu0 %1111
        %1113 = vrot.lane.b32.xlu0 %v766, 1
        %v1114 = vpop.permute.xlu0 %1113
        %1115 = vrot.lane.b32.xlu0 %v767, 1
        %v1116 = vpop.permute.xlu0 %1115
        %1117 = vrot.lane.b32.xlu0 %v768, 1
        %v1118 = vpop.permute.xlu0 %1117
        %1119 = vrot.lane.b32.xlu0 %v769, 1
        %v1120 = vpop.permute.xlu0 %1119
        %1121 = vrot.lane.b32.xlu0 %v770, 1
        %v1122 = vpop.permute.xlu0 %1121
        %1123 = vrot.lane.b32.xlu0 %v771, 1
        %v1124 = vpop.permute.xlu0 %1123
        %vm1125 = vcmask 7168
        %v1126 = vsel %vm1125, %v1110, %v1112
        %v1127 = vsel %vm1125, %v1114, %v1116
        %v1128 = vsel %vm1125, %v1118, %v1120
        %v1129 = vsel %vm1125, %v1122, %v1124
        %v1134 = vsel %vm811, %v1106, 0
        %v1136 = vsel %vm811, %v1108, 0
        %1138 = vmatprep.subr.mxu0 0.0
        %1139 = vmatpush1.msra.mxu0 %v1126
        %1140 = vmatprep.subr.mxu0 0.0
        %1141 = vmatpush1.msra.mxu0 %v1127
        %1142 = vmatprep.subr.mxu0 0.0
        %1143 = vmatpush1.msra.mxu0 %v1128
        %1144 = vmatprep.subr.mxu0 0.0
        %1145 = vmatpush1.msra.mxu0 %v1129
        %1146 = vmatprep.subr.mxu0 0.0
        %1147 = vmatpush1.msra.mxu0 0.0
        %1148 = vmatprep.subr.mxu0 0.0
        %1149 = vmatpush1.msra.mxu0 0.0
        %1150 = vmatprep.subr.mxu0 0.0
        %1151 = vmatpush1.msra.mxu0 0.0
        %1152 = vmatprep.subr.mxu0 0.0
        %1153 = vmatpush1.msra.mxu0 0.0
        %1154 = vmatprep.subr.mxu0 0.0
        %1155 = vmatpush1.msra.mxu0 0.0
        %1156 = vmatprep.subr.mxu0 0.0
        %1157 = vmatpush1.msra.mxu0 0.0
        %1158 = vmatprep.subr.mxu0 0.0
        %1159 = vmatpush1.msra.mxu0 0.0
        %1160 = vmatprep.subr.mxu0 0.0
        %1161 = vmatpush1.msra.mxu0 0.0
        %1162 = vmatprep.subr.mxu0 0.0
        %1163 = vmatpush1.msra.mxu0 0.0
        %1164 = vmatprep.subr.mxu0 0.0
        %1165 = vmatpush1.msra.mxu0 0.0
        %1166 = vmatprep.subr.mxu0 0.0
        %1167 = vmatpush1.msra.mxu0 0.0
        %1168 = vmatprep.subr.mxu0 0.0
        %1169 = vmatpush1.msra.mxu0 0.0
        %1170 = vmatprep.subr.mxu0 0.0
        %1171 = vmatpush1.msra.mxu0 0.0
        %1172 = vmatprep.subr.mxu0 0.0
        %1173 = vmatpush1.msra.mxu0 0.0
        %1174 = vmatprep.subr.mxu0 0.0
        %1175 = vmatpush1.msra.mxu0 0.0
        %1176 = vmatprep.subr.mxu0 0.0
        %1177 = vmatpush1.msra.mxu0 0.0
        %1178 = vmatprep.subr.mxu0 0.0
        %1179 = vmatpush1.msra.mxu0 0.0
        %1180 = vmatprep.subr.mxu0 0.0
        %1181 = vmatpush1.msra.mxu0 0.0
        %1182 = vmatprep.subr.mxu0 0.0
        %1183 = vmatpush1.msra.mxu0 0.0
        %1184 = vmatprep.subr.mxu0 0.0
        %1185 = vmatpush1.msra.mxu0 0.0
        %1186 = vmatprep.subr.mxu0 0.0
        %1187 = vmatpush1.msra.mxu0 0.0
        %1188 = vmatprep.subr.mxu0 0.0
        %1189 = vmatpush1.msra.mxu0 0.0
        %1190 = vmatprep.subr.mxu0 0.0
        %1191 = vmatpush1.msra.mxu0 0.0
        %1192 = vmatprep.subr.mxu0 0.0
        %1193 = vmatpush1.msra.mxu0 0.0
        %1194 = vmatprep.subr.mxu0 0.0
        %1195 = vmatpush1.msra.mxu0 0.0
        %1196 = vmatprep.subr.mxu0 0.0
        %1197 = vmatpush1.msra.mxu0 0.0
        %1198 = vmatprep.subr.mxu0 0.0
        %1199 = vmatpush1.msra.mxu0 0.0
        %1200 = vmatprep.subr.mxu0 0.0
        %1201 = vmatpush1.msra.mxu0 0.0
        %1202 = vmatprep.mubr.f32.mxu0 0.0
        %1203 = vmatmul.mubr.f32.gmra.mrb[0].mxu0 %v1134
        %v1204 = vpop.f32.mrb[0].mxu0
        %v1205 = vadd.f32 0.0, %v1204
        %v1206 = vpop.f32.mrb[0].mxu0
        %1207 = vmatprep.mubr.f32.mxu0 0.0
        %1208 = vmatmul.mubr.f32.gmra.mrb[0].mxu0 %v1136
        %v1209 = vpop.f32.mrb[0].mxu0
        %v1210 = vadd.f32 0.0, %v1209
        %v1211 = vpop.f32.mrb[0].mxu0
        %1212 = vdwg.mxu0
        %v1213 = vadd.f32 %v1103, %v1205
        %v1214 = vadd.f32 %v1104, %v1210
        %v1215 = vld [vmem:[#allocation6 + $0x8] sm:$0xff]
        %v1216 = vld [vmem:[#allocation6 + $0x20] sm:$0xff]
        %v1218 = vsel %vm811, %v1215, 0
        %v1221 = vsel %vm811, %v1216, 0
        %1223 = vmatprep.subr.mxu0 0.0
        %1224 = vmatpush1.msra.mxu0 %v765
        %1225 = vmatprep.subr.mxu0 0.0
        %1226 = vmatpush1.msra.mxu0 %v767
        %1227 = vmatprep.subr.mxu0 0.0
        %1228 = vmatpush1.msra.mxu0 %v769
        %1229 = vmatprep.subr.mxu0 0.0
        %1230 = vmatpush1.msra.mxu0 %v771
        %1231 = vmatprep.subr.mxu0 0.0
        %1232 = vmatpush1.msra.mxu0 0.0
        %1233 = vmatprep.subr.mxu0 0.0
        %1234 = vmatpush1.msra.mxu0 0.0
        %1235 = vmatprep.subr.mxu0 0.0
        %1236 = vmatpush1.msra.mxu0 0.0
        %1237 = vmatprep.subr.mxu0 0.0
        %1238 = vmatpush1.msra.mxu0 0.0
        %1239 = vmatprep.subr.mxu0 0.0
        %1240 = vmatpush1.msra.mxu0 0.0
        %1241 = vmatprep.subr.mxu0 0.0
        %1242 = vmatpush1.msra.mxu0 0.0
        %1243 = vmatprep.subr.mxu0 0.0
        %1244 = vmatpush1.msra.mxu0 0.0
        %1245 = vmatprep.subr.mxu0 0.0
        %1246 = vmatpush1.msra.mxu0 0.0
        %1247 = vmatprep.subr.mxu0 0.0
        %1248 = vmatpush1.msra.mxu0 0.0
        %1249 = vmatprep.subr.mxu0 0.0
        %1250 = vmatpush1.msra.mxu0 0.0
        %1251 = vmatprep.subr.mxu0 0.0
        %1252 = vmatpush1.msra.mxu0 0.0
        %1253 = vmatprep.subr.mxu0 0.0
        %1254 = vmatpush1.msra.mxu0 0.0
        %1255 = vmatprep.subr.mxu0 0.0
        %1256 = vmatpush1.msra.mxu0 0.0
        %1257 = vmatprep.subr.mxu0 0.0
        %1258 = vmatpush1.msra.mxu0 0.0
        %1259 = vmatprep.subr.mxu0 0.0
        %1260 = vmatpush1.msra.mxu0 0.0
        %1261 = vmatprep.subr.mxu0 0.0
        %1262 = vmatpush1.msra.mxu0 0.0
        %1263 = vmatprep.subr.mxu0 0.0
        %1264 = vmatpush1.msra.mxu0 0.0
        %1265 = vmatprep.subr.mxu0 0.0
        %1266 = vmatpush1.msra.mxu0 0.0
        %1267 = vmatprep.subr.mxu0 0.0
        %1268 = vmatpush1.msra.mxu0 0.0
        %1269 = vmatprep.subr.mxu0 0.0
        %1270 = vmatpush1.msra.mxu0 0.0
        %1271 = vmatprep.subr.mxu0 0.0
        %1272 = vmatpush1.msra.mxu0 0.0
        %1273 = vmatprep.subr.mxu0 0.0
        %1274 = vmatpush1.msra.mxu0 0.0
        %1275 = vmatprep.subr.mxu0 0.0
        %1276 = vmatpush1.msra.mxu0 0.0
        %1277 = vmatprep.subr.mxu0 0.0
        %1278 = vmatpush1.msra.mxu0 0.0
        %1279 = vmatprep.subr.mxu0 0.0
        %1280 = vmatpush1.msra.mxu0 0.0
        %1281 = vmatprep.subr.mxu0 0.0
        %1282 = vmatpush1.msra.mxu0 0.0
        %1283 = vmatprep.subr.mxu0 0.0
        %1284 = vmatpush1.msra.mxu0 0.0
        %1285 = vmatprep.subr.mxu0 0.0
        %1286 = vmatpush1.msra.mxu0 0.0
        %1287 = vmatprep.mubr.f32.mxu0 0.0
        %1288 = vmatmul.mubr.f32.gmra.mrb[0].mxu0 %v1218
        %v1289 = vpop.f32.mrb[0].mxu0
        %v1290 = vadd.f32 0.0, %v1289
        %v1291 = vpop.f32.mrb[0].mxu0
        %1292 = vmatprep.mubr.f32.mxu0 0.0
        %1293 = vmatmul.mubr.f32.gmra.mrb[0].mxu0 %v1221
        %v1294 = vpop.f32.mrb[0].mxu0
        %v1295 = vadd.f32 0.0, %v1294
        %v1296 = vpop.f32.mrb[0].mxu0
        %1297 = vdwg.mxu0
        %v1298 = vadd.f32 %v1213, %v1290
        %v1299 = vadd.f32 %v1214, %v1295
        %1300 = vrot.lane.b32.xlu0 %v1215, 96
        %v1301 = vpop.permute.xlu0 %1300
        %1302 = vrot.lane.b32.xlu0 %v1216, 96
        %v1303 = vpop.permute.xlu0 %1302
        %1304 = vrot.lane.b32.xlu0 %v765, 127
        %v1305 = vpop.permute.xlu0 %1304
        %1306 = vrot.lane.b32.xlu0 %v767, 127
        %v1307 = vpop.permute.xlu0 %1306
        %1308 = vrot.lane.b32.xlu0 %v769, 127
        %v1309 = vpop.permute.xlu0 %1308
        %1310 = vrot.lane.b32.xlu0 %v771, 127
        %v1311 = vpop.permute.xlu0 %1310
        %v1316 = vsel %vm811, %v1301, 0
        %v1318 = vsel %vm811, %v1303, 0
        %1320 = vmatprep.subr.mxu0 0.0
        %1321 = vmatpush1.msra.mxu0 %v1305
        %1322 = vmatprep.subr.mxu0 0.0
        %1323 = vmatpush1.msra.mxu0 %v1307
        %1324 = vmatprep.subr.mxu0 0.0
        %1325 = vmatpush1.msra.mxu0 %v1309
        %1326 = vmatprep.subr.mxu0 0.0
        %1327 = vmatpush1.msra.mxu0 %v1311
        %1328 = vmatprep.subr.mxu0 0.0
        %1329 = vmatpush1.msra.mxu0 0.0
        %1330 = vmatprep.subr.mxu0 0.0
        %1331 = vmatpush1.msra.mxu0 0.0
        %1332 = vmatprep.subr.mxu0 0.0
        %1333 = vmatpush1.msra.mxu0 0.0
        %1334 = vmatprep.subr.mxu0 0.0
        %1335 = vmatpush1.msra.mxu0 0.0
        %1336 = vmatprep.subr.mxu0 0.0
        %1337 = vmatpush1.msra.mxu0 0.0
        %1338 = vmatprep.subr.mxu0 0.0
        %1339 = vmatpush1.msra.mxu0 0.0
        %1340 = vmatprep.subr.mxu0 0.0
        %1341 = vmatpush1.msra.mxu0 0.0
        %1342 = vmatprep.subr.mxu0 0.0
        %1343 = vmatpush1.msra.mxu0 0.0
        %1344 = vmatprep.subr.mxu0 0.0
        %1345 = vmatpush1.msra.mxu0 0.0
        %1346 = vmatprep.subr.mxu0 0.0
        %1347 = vmatpush1.msra.mxu0 0.0
        %1348 = vmatprep.subr.mxu0 0.0
        %1349 = vmatpush1.msra.mxu0 0.0
        %1350 = vmatprep.subr.mxu0 0.0
        %1351 = vmatpush1.msra.mxu0 0.0
        %1352 = vmatprep.subr.mxu0 0.0
        %1353 = vmatpush1.msra.mxu0 0.0
        %1354 = vmatprep.subr.mxu0 0.0
        %1355 = vmatpush1.msra.mxu0 0.0
        %1356 = vmatprep.subr.mxu0 0.0
        %1357 = vmatpush1.msra.mxu0 0.0
        %1358 = vmatprep.subr.mxu0 0.0
        %1359 = vmatpush1.msra.mxu0 0.0
        %1360 = vmatprep.subr.mxu0 0.0
        %1361 = vmatpush1.msra.mxu0 0.0
        %1362 = vmatprep.subr.mxu0 0.0
        %1363 = vmatpush1.msra.mxu0 0.0
        %1364 = vmatprep.subr.mxu0 0.0
        %1365 = vmatpush1.msra.mxu0 0.0
        %1366 = vmatprep.subr.mxu0 0.0
        %1367 = vmatpush1.msra.mxu0 0.0
        %1368 = vmatprep.subr.mxu0 0.0
        %1369 = vmatpush1.msra.mxu0 0.0
        %1370 = vmatprep.subr.mxu0 0.0
        %1371 = vmatpush1.msra.mxu0 0.0
        %1372 = vmatprep.subr.mxu0 0.0
        %1373 = vmatpush1.msra.mxu0 0.0
        %1374 = vmatprep.subr.mxu0 0.0
        %1375 = vmatpush1.msra.mxu0 0.0
        %1376 = vmatprep.subr.mxu0 0.0
        %1377 = vmatpush1.msra.mxu0 0.0
        %1378 = vmatprep.subr.mxu0 0.0
        %1379 = vmatpush1.msra.mxu0 0.0
        %1380 = vmatprep.subr.mxu0 0.0
        %1381 = vmatpush1.msra.mxu0 0.0
        %1382 = vmatprep.subr.mxu0 0.0
        %1383 = vmatpush1.msra.mxu0 0.0
        %1384 = vmatprep.mubr.f32.mxu0 0.0
        %1385 = vmatmul.mubr.f32.gmra.mrb[0].mxu0 %v1316
        %v1386 = vpop.f32.mrb[0].mxu0
        %v1387 = vadd.f32 0.0, %v1386
        %v1388 = vpop.f32.mrb[0].mxu0
        %1389 = vmatprep.mubr.f32.mxu0 0.0
        %1390 = vmatmul.mubr.f32.gmra.mrb[0].mxu0 %v1318
        %v1391 = vpop.f32.mrb[0].mxu0
        %v1392 = vadd.f32 0.0, %v1391
        %v1393 = vpop.f32.mrb[0].mxu0
        %1394 = vdwg.mxu0
        %v1395 = vadd.f32 %v1298, %v1387
        %v1396 = vadd.f32 %v1299, %v1392
        %1397 = vrot.lane.b32.xlu0 %v1215, 64
        %v1398 = vpop.permute.xlu0 %1397
        %1399 = vrot.lane.b32.xlu0 %v1216, 64
        %v1400 = vpop.permute.xlu0 %1399
        %1401 = vrot.lane.b32.xlu0 %v765, 119
        %v1402 = vpop.permute.xlu0 %1401
        %1403 = vrot.lane.b32.xlu0 %v767, 119
        %v1404 = vpop.permute.xlu0 %1403
        %1405 = vrot.lane.b32.xlu0 %v769, 119
        %v1406 = vpop.permute.xlu0 %1405
        %1407 = vrot.lane.b32.xlu0 %v771, 119
        %v1408 = vpop.permute.xlu0 %1407
        %v1413 = vsel %vm811, %v1398, 0
        %v1415 = vsel %vm811, %v1400, 0
        %1417 = vmatprep.subr.mxu0 0.0
        %1418 = vmatpush1.msra.mxu0 %v1402
        %1419 = vmatprep.subr.mxu0 0.0
        %1420 = vmatpush1.msra.mxu0 %v1404
        %1421 = vmatprep.subr.mxu0 0.0
        %1422 = vmatpush1.msra.mxu0 %v1406
        %1423 = vmatprep.subr.mxu0 0.0
        %1424 = vmatpush1.msra.mxu0 %v1408
        %1425 = vmatprep.subr.mxu0 0.0
        %1426 = vmatpush1.msra.mxu0 0.0
        %1427 = vmatprep.subr.mxu0 0.0
        %1428 = vmatpush1.msra.mxu0 0.0
        %1429 = vmatprep.subr.mxu0 0.0
        %1430 = vmatpush1.msra.mxu0 0.0
        %1431 = vmatprep.subr.mxu0 0.0
        %1432 = vmatpush1.msra.mxu0 0.0
        %1433 = vmatprep.subr.mxu0 0.0
        %1434 = vmatpush1.msra.mxu0 0.0
        %1435 = vmatprep.subr.mxu0 0.0
        %1436 = vmatpush1.msra.mxu0 0.0
        %1437 = vmatprep.subr.mxu0 0.0
        %1438 = vmatpush1.msra.mxu0 0.0
        %1439 = vmatprep.subr.mxu0 0.0
        %1440 = vmatpush1.msra.mxu0 0.0
        %1441 = vmatprep.subr.mxu0 0.0
        %1442 = vmatpush1.msra.mxu0 0.0
        %1443 = vmatprep.subr.mxu0 0.0
        %1444 = vmatpush1.msra.mxu0 0.0
        %1445 = vmatprep.subr.mxu0 0.0
        %1446 = vmatpush1.msra.mxu0 0.0
        %1447 = vmatprep.subr.mxu0 0.0
        %1448 = vmatpush1.msra.mxu0 0.0
        %1449 = vmatprep.subr.mxu0 0.0
        %1450 = vmatpush1.msra.mxu0 0.0
        %1451 = vmatprep.subr.mxu0 0.0
        %1452 = vmatpush1.msra.mxu0 0.0
        %1453 = vmatprep.subr.mxu0 0.0
        %1454 = vmatpush1.msra.mxu0 0.0
        %1455 = vmatprep.subr.mxu0 0.0
        %1456 = vmatpush1.msra.mxu0 0.0
        %1457 = vmatprep.subr.mxu0 0.0
        %1458 = vmatpush1.msra.mxu0 0.0
        %1459 = vmatprep.subr.mxu0 0.0
        %1460 = vmatpush1.msra.mxu0 0.0
        %1461 = vmatprep.subr.mxu0 0.0
        %1462 = vmatpush1.msra.mxu0 0.0
        %1463 = vmatprep.subr.mxu0 0.0
        %1464 = vmatpush1.msra.mxu0 0.0
        %1465 = vmatprep.subr.mxu0 0.0
        %1466 = vmatpush1.msra.mxu0 0.0
        %1467 = vmatprep.subr.mxu0 0.0
        %1468 = vmatpush1.msra.mxu0 0.0
        %1469 = vmatprep.subr.mxu0 0.0
        %1470 = vmatpush1.msra.mxu0 0.0
        %1471 = vmatprep.subr.mxu0 0.0
        %1472 = vmatpush1.msra.mxu0 0.0
        %1473 = vmatprep.subr.mxu0 0.0
        %1474 = vmatpush1.msra.mxu0 0.0
        %1475 = vmatprep.subr.mxu0 0.0
        %1476 = vmatpush1.msra.mxu0 0.0
        %1477 = vmatprep.subr.mxu0 0.0
        %1478 = vmatpush1.msra.mxu0 0.0
        %1479 = vmatprep.subr.mxu0 0.0
        %1480 = vmatpush1.msra.mxu0 0.0
        %1481 = vmatprep.mubr.f32.mxu0 0.0
        %1482 = vmatmul.mubr.f32.gmra.mrb[0].mxu0 %v1413
        %v1483 = vpop.f32.mrb[0].mxu0
        %v1484 = vadd.f32 0.0, %v1483
        %v1485 = vpop.f32.mrb[0].mxu0
        %1486 = vmatprep.mubr.f32.mxu0 0.0
        %1487 = vmatmul.mubr.f32.gmra.mrb[0].mxu0 %v1415
        %v1488 = vpop.f32.mrb[0].mxu0
        %v1489 = vadd.f32 0.0, %v1488
        %v1490 = vpop.f32.mrb[0].mxu0
        %1491 = vdwg.mxu0
        %v1492 = vadd.f32 %v1395, %v1484
        %v1493 = vadd.f32 %v1396, %v1489
        %1494 = vrot.lane.b32.xlu0 %v1215, 32
        %v1495 = vpop.permute.xlu0 %1494
        %1496 = vrot.lane.b32.xlu0 %v1216, 32
        %v1497 = vpop.permute.xlu0 %1496
        %1498 = vrot.lane.b32.xlu0 %v765, 118
        %v1499 = vpop.permute.xlu0 %1498
        %1500 = vrot.lane.b32.xlu0 %v767, 118
        %v1501 = vpop.permute.xlu0 %1500
        %1502 = vrot.lane.b32.xlu0 %v769, 118
        %v1503 = vpop.permute.xlu0 %1502
        %1504 = vrot.lane.b32.xlu0 %v771, 118
        %v1505 = vpop.permute.xlu0 %1504
        %v1510 = vsel %vm811, %v1495, 0
        %v1512 = vsel %vm811, %v1497, 0
        %1514 = vmatprep.subr.mxu0 0.0
        %1515 = vmatpush1.msra.mxu0 %v1499
        %1516 = vmatprep.subr.mxu0 0.0
        %1517 = vmatpush1.msra.mxu0 %v1501
        %1518 = vmatprep.subr.mxu0 0.0
        %1519 = vmatpush1.msra.mxu0 %v1503
        %1520 = vmatprep.subr.mxu0 0.0
        %1521 = vmatpush1.msra.mxu0 %v1505
        %1522 = vmatprep.subr.mxu0 0.0
        %1523 = vmatpush1.msra.mxu0 0.0
        %1524 = vmatprep.subr.mxu0 0.0
        %1525 = vmatpush1.msra.mxu0 0.0
        %1526 = vmatprep.subr.mxu0 0.0
        %1527 = vmatpush1.msra.mxu0 0.0
        %1528 = vmatprep.subr.mxu0 0.0
        %1529 = vmatpush1.msra.mxu0 0.0
        %1530 = vmatprep.subr.mxu0 0.0
        %1531 = vmatpush1.msra.mxu0 0.0
        %1532 = vmatprep.subr.mxu0 0.0
        %1533 = vmatpush1.msra.mxu0 0.0
        %1534 = vmatprep.subr.mxu0 0.0
        %1535 = vmatpush1.msra.mxu0 0.0
        %1536 = vmatprep.subr.mxu0 0.0
        %1537 = vmatpush1.msra.mxu0 0.0
        %1538 = vmatprep.subr.mxu0 0.0
        %1539 = vmatpush1.msra.mxu0 0.0
        %1540 = vmatprep.subr.mxu0 0.0
        %1541 = vmatpush1.msra.mxu0 0.0
        %1542 = vmatprep.subr.mxu0 0.0
        %1543 = vmatpush1.msra.mxu0 0.0
        %1544 = vmatprep.subr.mxu0 0.0
        %1545 = vmatpush1.msra.mxu0 0.0
        %1546 = vmatprep.subr.mxu0 0.0
        %1547 = vmatpush1.msra.mxu0 0.0
        %1548 = vmatprep.subr.mxu0 0.0
        %1549 = vmatpush1.msra.mxu0 0.0
        %1550 = vmatprep.subr.mxu0 0.0
        %1551 = vmatpush1.msra.mxu0 0.0
        %1552 = vmatprep.subr.mxu0 0.0
        %1553 = vmatpush1.msra.mxu0 0.0
        %1554 = vmatprep.subr.mxu0 0.0
        %1555 = vmatpush1.msra.mxu0 0.0
        %1556 = vmatprep.subr.mxu0 0.0
        %1557 = vmatpush1.msra.mxu0 0.0
        %1558 = vmatprep.subr.mxu0 0.0
        %1559 = vmatpush1.msra.mxu0 0.0
        %1560 = vmatprep.subr.mxu0 0.0
        %1561 = vmatpush1.msra.mxu0 0.0
        %1562 = vmatprep.subr.mxu0 0.0
        %1563 = vmatpush1.msra.mxu0 0.0
        %1564 = vmatprep.subr.mxu0 0.0
        %1565 = vmatpush1.msra.mxu0 0.0
        %1566 = vmatprep.subr.mxu0 0.0
        %1567 = vmatpush1.msra.mxu0 0.0
        %1568 = vmatprep.subr.mxu0 0.0
        %1569 = vmatpush1.msra.mxu0 0.0
        %1570 = vmatprep.subr.mxu0 0.0
        %1571 = vmatpush1.msra.mxu0 0.0
        %1572 = vmatprep.subr.mxu0 0.0
        %1573 = vmatpush1.msra.mxu0 0.0
        %1574 = vmatprep.subr.mxu0 0.0
        %1575 = vmatpush1.msra.mxu0 0.0
        %1576 = vmatprep.subr.mxu0 0.0
        %1577 = vmatpush1.msra.mxu0 0.0
        %1578 = vmatprep.mubr.f32.mxu0 0.0
        %1579 = vmatmul.mubr.f32.gmra.mrb[0].mxu0 %v1510
        %v1580 = vpop.f32.mrb[0].mxu0
        %v1581 = vadd.f32 0.0, %v1580
        %v1582 = vpop.f32.mrb[0].mxu0
        %1583 = vmatprep.mubr.f32.mxu0 0.0
        %1584 = vmatmul.mubr.f32.gmra.mrb[0].mxu0 %v1512
        %v1585 = vpop.f32.mrb[0].mxu0
        %v1586 = vadd.f32 0.0, %v1585
        %v1587 = vpop.f32.mrb[0].mxu0
        %1588 = vdwg.mxu0
        %v1589 = vadd.f32 %v1492, %v1581
        %v1590 = vadd.f32 %v1493, %v1586
        %v1591 = vld [vmem:[#allocation6 + $0x10] sm:$0xff]
        %v1592 = vld [vmem:[#allocation6 + $0x28] sm:$0xff]
        %1593 = vrot.lane.b32.xlu0 %v765, 117
        %v1594 = vpop.permute.xlu0 %1593
        %1595 = vrot.lane.b32.xlu0 %v767, 117
        %v1596 = vpop.permute.xlu0 %1595
        %1597 = vrot.lane.b32.xlu0 %v769, 117
        %v1598 = vpop.permute.xlu0 %1597
        %1599 = vrot.lane.b32.xlu0 %v771, 117
        %v1600 = vpop.permute.xlu0 %1599
        %v1606 = vsel %vm811, %v1591, 0
        %v1609 = vsel %vm811, %v1592, 0
        %1611 = vmatprep.subr.mxu0 0.0
        %1612 = vmatpush1.msra.mxu0 %v1594
        %1613 = vmatprep.subr.mxu0 0.0
        %1614 = vmatpush1.msra.mxu0 %v1596
        %1615 = vmatprep.subr.mxu0 0.0
        %1616 = vmatpush1.msra.mxu0 %v1598
        %1617 = vmatprep.subr.mxu0 0.0
        %1618 = vmatpush1.msra.mxu0 %v1600
        %1619 = vmatprep.subr.mxu0 0.0
        %1620 = vmatpush1.msra.mxu0 0.0
        %1621 = vmatprep.subr.mxu0 0.0
        %1622 = vmatpush1.msra.mxu0 0.0
        %1623 = vmatprep.subr.mxu0 0.0
        %1624 = vmatpush1.msra.mxu0 0.0
        %1625 = vmatprep.subr.mxu0 0.0
        %1626 = vmatpush1.msra.mxu0 0.0
        %1627 = vmatprep.subr.mxu0 0.0
        %1628 = vmatpush1.msra.mxu0 0.0
        %1629 = vmatprep.subr.mxu0 0.0
        %1630 = vmatpush1.msra.mxu0 0.0
        %1631 = vmatprep.subr.mxu0 0.0
        %1632 = vmatpush1.msra.mxu0 0.0
        %1633 = vmatprep.subr.mxu0 0.0
        %1634 = vmatpush1.msra.mxu0 0.0
        %1635 = vmatprep.subr.mxu0 0.0
        %1636 = vmatpush1.msra.mxu0 0.0
        %1637 = vmatprep.subr.mxu0 0.0
        %1638 = vmatpush1.msra.mxu0 0.0
        %1639 = vmatprep.subr.mxu0 0.0
        %1640 = vmatpush1.msra.mxu0 0.0
        %1641 = vmatprep.subr.mxu0 0.0
        %1642 = vmatpush1.msra.mxu0 0.0
        %1643 = vmatprep.subr.mxu0 0.0
        %1644 = vmatpush1.msra.mxu0 0.0
        %1645 = vmatprep.subr.mxu0 0.0
        %1646 = vmatpush1.msra.mxu0 0.0
        %1647 = vmatprep.subr.mxu0 0.0
        %1648 = vmatpush1.msra.mxu0 0.0
        %1649 = vmatprep.subr.mxu0 0.0
        %1650 = vmatpush1.msra.mxu0 0.0
        %1651 = vmatprep.subr.mxu0 0.0
        %1652 = vmatpush1.msra.mxu0 0.0
        %1653 = vmatprep.subr.mxu0 0.0
        %1654 = vmatpush1.msra.mxu0 0.0
        %1655 = vmatprep.subr.mxu0 0.0
        %1656 = vmatpush1.msra.mxu0 0.0
        %1657 = vmatprep.subr.mxu0 0.0
        %1658 = vmatpush1.msra.mxu0 0.0
        %1659 = vmatprep.subr.mxu0 0.0
        %1660 = vmatpush1.msra.mxu0 0.0
        %1661 = vmatprep.subr.mxu0 0.0
        %1662 = vmatpush1.msra.mxu0 0.0
        %1663 = vmatprep.subr.mxu0 0.0
        %1664 = vmatpush1.msra.mxu0 0.0
        %1665 = vmatprep.subr.mxu0 0.0
        %1666 = vmatpush1.msra.mxu0 0.0
        %1667 = vmatprep.subr.mxu0 0.0
        %1668 = vmatpush1.msra.mxu0 0.0
        %1669 = vmatprep.subr.mxu0 0.0
        %1670 = vmatpush1.msra.mxu0 0.0
        %1671 = vmatprep.subr.mxu0 0.0
        %1672 = vmatpush1.msra.mxu0 0.0
        %1673 = vmatprep.subr.mxu0 0.0
        %1674 = vmatpush1.msra.mxu0 0.0
        %1675 = vmatprep.mubr.f32.mxu0 0.0
        %1676 = vmatmul.mubr.f32.gmra.mrb[0].mxu0 %v1606
        %v1677 = vpop.f32.mrb[0].mxu0
        %v1678 = vadd.f32 0.0, %v1677
        %v1679 = vpop.f32.mrb[0].mxu0
        %1680 = vmatprep.mubr.f32.mxu0 0.0
        %1681 = vmatmul.mubr.f32.gmra.mrb[0].mxu0 %v1609
        %v1682 = vpop.f32.mrb[0].mxu0
        %v1683 = vadd.f32 0.0, %v1682
        %v1684 = vpop.f32.mrb[0].mxu0
        %1685 = vdwg.mxu0
        %v1686 = vadd.f32 %v1589, %v1678
        %v1687 = vadd.f32 %v1590, %v1683
        %v1688 = vld [vmem:[%s4] sm:$0xff]
        %v1689 = vld [vmem:[%s4 + $0x8] sm:$0xff]
        %1691 = vset.pattern.permute.xlu0 0
        %1692 = vperm.xlu0 %1691, %v1688
        %v1693 = vpop.permute.xlu0 %1692
        %1696 = vset.pattern.permute.xlu0 0
        %1697 = vperm.xlu0 %1696, %v1689
        %v1698 = vpop.permute.xlu0 %1697
        %v1700 = vadd.f32 %v1686, %v1693
        %v1701 = vadd.f32 %v1687, %v1698
        %v1702 = vmax.f32 %v1700, 0.0
        %v1703 = vmax.f32 %v1701, 0.0
        %v1704 = vsel %vm753, %v1702, 0.0
        %v1705 = vsel %vm753, %v1703, 0.0
        %1706 = vst.msk [vmem:[#allocation3 + $0x8] sm:$0xff] %vm385, %v1704
        %1707 = vst.msk [vmem:[#allocation3 + $0x20] sm:$0xff] %vm385, %v1705
        %v1708 = vld [vmem:[#allocation8] sm:$0x7]
        %v1709 = vld [vmem:[#allocation3] sm:$0xff]
        %v1710 = vld [vmem:[#allocation3 + $0x8] sm:$0xff]
        %v1711 = vld [vmem:[#allocation3 + $0x18] sm:$0xff]
        %v1712 = vld [vmem:[#allocation3 + $0x20] sm:$0xff]
        %1714 = vrot.lane.b32.xlu0 %v1708, 112
        %v1715 = vpop.permute.xlu0 %1714
        %1720 = vrot.lane.b32.xlu0 %v1709, 10
        %v1721 = vpop.permute.xlu0 %1720
        %1722 = vrot.lane.b32.xlu0 %v1710, 10
        %v1723 = vpop.permute.xlu0 %1722
        %1724 = vrot.lane.b32.xlu0 %v1711, 10
        %v1725 = vpop.permute.xlu0 %1724
        %1726 = vrot.lane.b32.xlu0 %v1712, 10
        %v1727 = vpop.permute.xlu0 %1726
        %v1728 = vsel %vm802, %v1721, %v1723
        %v1729 = vsel %vm802, %v1725, %v1727
        %vm1732 = vcmask 130048
        %v1733 = vsel %vm1732, %v1715, 0
        %1735 = vmatprep.subr.mxu0 0.0
        %1736 = vmatpush1.msra.mxu0 %v1728
        %1737 = vmatprep.subr.mxu0 0.0
        %1738 = vmatpush1.msra.mxu0 %v1729
        %1739 = vmatprep.subr.mxu0 0.0
        %1740 = vmatpush1.msra.mxu0 0.0
        %1741 = vmatprep.subr.mxu0 0.0
        %1742 = vmatpush1.msra.mxu0 0.0
        %1743 = vmatprep.subr.mxu0 0.0
        %1744 = vmatpush1.msra.mxu0 0.0
        %1745 = vmatprep.subr.mxu0 0.0
        %1746 = vmatpush1.msra.mxu0 0.0
        %1747 = vmatprep.subr.mxu0 0.0
        %1748 = vmatpush1.msra.mxu0 0.0
        %1749 = vmatprep.subr.mxu0 0.0
        %1750 = vmatpush1.msra.mxu0 0.0
        %1751 = vmatprep.subr.mxu0 0.0
        %1752 = vmatpush1.msra.mxu0 0.0
        %1753 = vmatprep.subr.mxu0 0.0
        %1754 = vmatpush1.msra.mxu0 0.0
        %1755 = vmatprep.subr.mxu0 0.0
        %1756 = vmatpush1.msra.mxu0 0.0
        %1757 = vmatprep.subr.mxu0 0.0
        %1758 = vmatpush1.msra.mxu0 0.0
        %1759 = vmatprep.subr.mxu0 0.0
        %1760 = vmatpush1.msra.mxu0 0.0
        %1761 = vmatprep.subr.mxu0 0.0
        %1762 = vmatpush1.msra.mxu0 0.0
        %1763 = vmatprep.subr.mxu0 0.0
        %1764 = vmatpush1.msra.mxu0 0.0
        %1765 = vmatprep.subr.mxu0 0.0
        %1766 = vmatpush1.msra.mxu0 0.0
        %1767 = vmatprep.subr.mxu0 0.0
        %1768 = vmatpush1.msra.mxu0 0.0
        %1769 = vmatprep.subr.mxu0 0.0
        %1770 = vmatpush1.msra.mxu0 0.0
        %1771 = vmatprep.subr.mxu0 0.0
        %1772 = vmatpush1.msra.mxu0 0.0
        %1773 = vmatprep.subr.mxu0 0.0
        %1774 = vmatpush1.msra.mxu0 0.0
        %1775 = vmatprep.subr.mxu0 0.0
        %1776 = vmatpush1.msra.mxu0 0.0
        %1777 = vmatprep.subr.mxu0 0.0
        %1778 = vmatpush1.msra.mxu0 0.0
        %1779 = vmatprep.subr.mxu0 0.0
        %1780 = vmatpush1.msra.mxu0 0.0
        %1781 = vmatprep.subr.mxu0 0.0
        %1782 = vmatpush1.msra.mxu0 0.0
        %1783 = vmatprep.subr.mxu0 0.0
        %1784 = vmatpush1.msra.mxu0 0.0
        %1785 = vmatprep.subr.mxu0 0.0
        %1786 = vmatpush1.msra.mxu0 0.0
        %1787 = vmatprep.subr.mxu0 0.0
        %1788 = vmatpush1.msra.mxu0 0.0
        %1789 = vmatprep.subr.mxu0 0.0
        %1790 = vmatpush1.msra.mxu0 0.0
        %1791 = vmatprep.subr.mxu0 0.0
        %1792 = vmatpush1.msra.mxu0 0.0
        %1793 = vmatprep.subr.mxu0 0.0
        %1794 = vmatpush1.msra.mxu0 0.0
        %1795 = vmatprep.subr.mxu0 0.0
        %1796 = vmatpush1.msra.mxu0 0.0
        %1797 = vmatprep.subr.mxu0 0.0
        %1798 = vmatpush1.msra.mxu0 0.0
        %1799 = vmatprep.mubr.f32.mxu0 0.0
        %1800 = vmatmul.mubr.f32.gmra.mrb[0].mxu0 %v1733
        %v1801 = vpop.f32.mrb[0].mxu0
        %v1802 = vadd.f32 0.0, %v1801
        %v1803 = vpop.f32.mrb[0].mxu0
        %1804 = vdwg.mxu0
        %1805 = vrot.lane.b32.xlu0 %v1709, 11
        %v1806 = vpop.permute.xlu0 %1805
        %1807 = vrot.lane.b32.xlu0 %v1710, 11
        %v1808 = vpop.permute.xlu0 %1807
        %1809 = vrot.lane.b32.xlu0 %v1711, 11
        %v1810 = vpop.permute.xlu0 %1809
        %1811 = vrot.lane.b32.xlu0 %v1712, 11
        %v1812 = vpop.permute.xlu0 %1811
        %v1813 = vsel %vm907, %v1806, %v1808
        %v1814 = vsel %vm907, %v1810, %v1812
        %v1817 = vsel %vm1732, %v1708, 0
        %1819 = vmatprep.subr.mxu0 0.0
        %1820 = vmatpush1.msra.mxu0 %v1813
        %1821 = vmatprep.subr.mxu0 0.0
        %1822 = vmatpush1.msra.mxu0 %v1814
        %1823 = vmatprep.subr.mxu0 0.0
        %1824 = vmatpush1.msra.mxu0 0.0
        %1825 = vmatprep.subr.mxu0 0.0
        %1826 = vmatpush1.msra.mxu0 0.0
        %1827 = vmatprep.subr.mxu0 0.0
        %1828 = vmatpush1.msra.mxu0 0.0
        %1829 = vmatprep.subr.mxu0 0.0
        %1830 = vmatpush1.msra.mxu0 0.0
        %1831 = vmatprep.subr.mxu0 0.0
        %1832 = vmatpush1.msra.mxu0 0.0
        %1833 = vmatprep.subr.mxu0 0.0
        %1834 = vmatpush1.msra.mxu0 0.0
        %1835 = vmatprep.subr.mxu0 0.0
        %1836 = vmatpush1.msra.mxu0 0.0
        %1837 = vmatprep.subr.mxu0 0.0
        %1838 = vmatpush1.msra.mxu0 0.0
        %1839 = vmatprep.subr.mxu0 0.0
        %1840 = vmatpush1.msra.mxu0 0.0
        %1841 = vmatprep.subr.mxu0 0.0
        %1842 = vmatpush1.msra.mxu0 0.0
        %1843 = vmatprep.subr.mxu0 0.0
        %1844 = vmatpush1.msra.mxu0 0.0
        %1845 = vmatprep.subr.mxu0 0.0
        %1846 = vmatpush1.msra.mxu0 0.0
        %1847 = vmatprep.subr.mxu0 0.0
        %1848 = vmatpush1.msra.mxu0 0.0
        %1849 = vmatprep.subr.mxu0 0.0
        %1850 = vmatpush1.msra.mxu0 0.0
        %1851 = vmatprep.subr.mxu0 0.0
        %1852 = vmatpush1.msra.mxu0 0.0
        %1853 = vmatprep.subr.mxu0 0.0
        %1854 = vmatpush1.msra.mxu0 0.0
        %1855 = vmatprep.subr.mxu0 0.0
        %1856 = vmatpush1.msra.mxu0 0.0
        %1857 = vmatprep.subr.mxu0 0.0
        %1858 = vmatpush1.msra.mxu0 0.0
        %1859 = vmatprep.subr.mxu0 0.0
        %1860 = vmatpush1.msra.mxu0 0.0
        %1861 = vmatprep.subr.mxu0 0.0
        %1862 = vmatpush1.msra.mxu0 0.0
        %1863 = vmatprep.subr.mxu0 0.0
        %1864 = vmatpush1.msra.mxu0 0.0
        %1865 = vmatprep.subr.mxu0 0.0
        %1866 = vmatpush1.msra.mxu0 0.0
        %1867 = vmatprep.subr.mxu0 0.0
        %1868 = vmatpush1.msra.mxu0 0.0
        %1869 = vmatprep.subr.mxu0 0.0
        %1870 = vmatpush1.msra.mxu0 0.0
        %1871 = vmatprep.subr.mxu0 0.0
        %1872 = vmatpush1.msra.mxu0 0.0
        %1873 = vmatprep.subr.mxu0 0.0
        %1874 = vmatpush1.msra.mxu0 0.0
        %1875 = vmatprep.subr.mxu0 0.0
        %1876 = vmatpush1.msra.mxu0 0.0
        %1877 = vmatprep.subr.mxu0 0.0
        %1878 = vmatpush1.msra.mxu0 0.0
        %1879 = vmatprep.subr.mxu0 0.0
        %1880 = vmatpush1.msra.mxu0 0.0
        %1881 = vmatprep.subr.mxu0 0.0
        %1882 = vmatpush1.msra.mxu0 0.0
        %1883 = vmatprep.mubr.f32.mxu0 0.0
        %1884 = vmatmul.mubr.f32.gmra.mrb[0].mxu0 %v1817
        %v1885 = vpop.f32.mrb[0].mxu0
        %v1886 = vadd.f32 %v1802, %v1885
        %v1887 = vpop.f32.mrb[0].mxu0
        %1888 = vdwg.mxu0
        %v1889 = vld [vmem:[#allocation8] sm:$0x7]
        %v1890 = vld [vmem:[#allocation3] sm:$0xff]
        %v1891 = vld [vmem:[#allocation3 + $0x8] sm:$0xff]
        %v1892 = vld [vmem:[#allocation3 + $0x18] sm:$0xff]
        %v1893 = vld [vmem:[#allocation3 + $0x20] sm:$0xff]
        %1895 = vrot.lane.b32.xlu0 %v1889, 96
        %v1896 = vpop.permute.xlu0 %1895
        %1901 = vrot.lane.b32.xlu0 %v1890, 9
        %v1902 = vpop.permute.xlu0 %1901
        %1903 = vrot.lane.b32.xlu0 %v1891, 9
        %v1904 = vpop.permute.xlu0 %1903
        %1905 = vrot.lane.b32.xlu0 %v1892, 9
        %v1906 = vpop.permute.xlu0 %1905
        %1907 = vrot.lane.b32.xlu0 %v1893, 9
        %v1908 = vpop.permute.xlu0 %1907
        %v1909 = vsel %vm1015, %v1902, %v1904
        %v1910 = vsel %vm1015, %v1906, %v1908
        %v1913 = vsel %vm1732, %v1896, 0
        %1915 = vmatprep.subr.mxu0 0.0
        %1916 = vmatpush1.msra.mxu0 %v1909
        %1917 = vmatprep.subr.mxu0 0.0
        %1918 = vmatpush1.msra.mxu0 %v1910
        %1919 = vmatprep.subr.mxu0 0.0
        %1920 = vmatpush1.msra.mxu0 0.0
        %1921 = vmatprep.subr.mxu0 0.0
        %1922 = vmatpush1.msra.mxu0 0.0
        %1923 = vmatprep.subr.mxu0 0.0
        %1924 = vmatpush1.msra.mxu0 0.0
        %1925 = vmatprep.subr.mxu0 0.0
        %1926 = vmatpush1.msra.mxu0 0.0
        %1927 = vmatprep.subr.mxu0 0.0
        %1928 = vmatpush1.msra.mxu0 0.0
        %1929 = vmatprep.subr.mxu0 0.0
        %1930 = vmatpush1.msra.mxu0 0.0
        %1931 = vmatprep.subr.mxu0 0.0
        %1932 = vmatpush1.msra.mxu0 0.0
        %1933 = vmatprep.subr.mxu0 0.0
        %1934 = vmatpush1.msra.mxu0 0.0
        %1935 = vmatprep.subr.mxu0 0.0
        %1936 = vmatpush1.msra.mxu0 0.0
        %1937 = vmatprep.subr.mxu0 0.0
        %1938 = vmatpush1.msra.mxu0 0.0
        %1939 = vmatprep.subr.mxu0 0.0
        %1940 = vmatpush1.msra.mxu0 0.0
        %1941 = vmatprep.subr.mxu0 0.0
        %1942 = vmatpush1.msra.mxu0 0.0
        %1943 = vmatprep.subr.mxu0 0.0
        %1944 = vmatpush1.msra.mxu0 0.0
        %1945 = vmatprep.subr.mxu0 0.0
        %1946 = vmatpush1.msra.mxu0 0.0
        %1947 = vmatprep.subr.mxu0 0.0
        %1948 = vmatpush1.msra.mxu0 0.0
        %1949 = vmatprep.subr.mxu0 0.0
        %1950 = vmatpush1.msra.mxu0 0.0
        %1951 = vmatprep.subr.mxu0 0.0
        %1952 = vmatpush1.msra.mxu0 0.0
        %1953 = vmatprep.subr.mxu0 0.0
        %1954 = vmatpush1.msra.mxu0 0.0
        %1955 = vmatprep.subr.mxu0 0.0
        %1956 = vmatpush1.msra.mxu0 0.0
        %1957 = vmatprep.subr.mxu0 0.0
        %1958 = vmatpush1.msra.mxu0 0.0
        %1959 = vmatprep.subr.mxu0 0.0
        %1960 = vmatpush1.msra.mxu0 0.0
        %1961 = vmatprep.subr.mxu0 0.0
        %1962 = vmatpush1.msra.mxu0 0.0
        %1963 = vmatprep.subr.mxu0 0.0
        %1964 = vmatpush1.msra.mxu0 0.0
        %1965 = vmatprep.subr.mxu0 0.0
        %1966 = vmatpush1.msra.mxu0 0.0
        %1967 = vmatprep.subr.mxu0 0.0
        %1968 = vmatpush1.msra.mxu0 0.0
        %1969 = vmatprep.subr.mxu0 0.0
        %1970 = vmatpush1.msra.mxu0 0.0
        %1971 = vmatprep.subr.mxu0 0.0
        %1972 = vmatpush1.msra.mxu0 0.0
        %1973 = vmatprep.subr.mxu0 0.0
        %1974 = vmatpush1.msra.mxu0 0.0
        %1975 = vmatprep.subr.mxu0 0.0
        %1976 = vmatpush1.msra.mxu0 0.0
        %1977 = vmatprep.subr.mxu0 0.0
        %1978 = vmatpush1.msra.mxu0 0.0
        %1979 = vmatprep.mubr.f32.mxu0 0.0
        %1980 = vmatmul.mubr.f32.gmra.mrb[0].mxu0 %v1913
        %v1981 = vpop.f32.mrb[0].mxu0
        %v1982 = vadd.f32 0.0, %v1981
        %v1983 = vpop.f32.mrb[0].mxu0
        %1984 = vdwg.mxu0
        %v1985 = vadd.f32 %v1886, %v1982
        %v1986 = vld [vmem:[#allocation8] sm:$0x7]
        %v1987 = vld [vmem:[#allocation3] sm:$0xff]
        %v1988 = vld [vmem:[#allocation3 + $0x8] sm:$0xff]
        %v1989 = vld [vmem:[#allocation3 + $0x18] sm:$0xff]
        %v1990 = vld [vmem:[#allocation3 + $0x20] sm:$0xff]
        %1992 = vrot.lane.b32.xlu0 %v1986, 80
        %v1993 = vpop.permute.xlu0 %1992
        %1998 = vrot.lane.b32.xlu0 %v1987, 1
        %v1999 = vpop.permute.xlu0 %1998
        %2000 = vrot.lane.b32.xlu0 %v1988, 1
        %v2001 = vpop.permute.xlu0 %2000
        %2002 = vrot.lane.b32.xlu0 %v1989, 1
        %v2003 = vpop.permute.xlu0 %2002
        %2004 = vrot.lane.b32.xlu0 %v1990, 1
        %v2005 = vpop.permute.xlu0 %2004
        %v2006 = vsel %vm1125, %v1999, %v2001
        %v2007 = vsel %vm1125, %v2003, %v2005
        %v2010 = vsel %vm1732, %v1993, 0
        %2012 = vmatprep.subr.mxu0 0.0
        %2013 = vmatpush1.msra.mxu0 %v2006
        %2014 = vmatprep.subr.mxu0 0.0
        %2015 = vmatpush1.msra.mxu0 %v2007
        %2016 = vmatprep.subr.mxu0 0.0
        %2017 = vmatpush1.msra.mxu0 0.0
        %2018 = vmatprep.subr.mxu0 0.0
        %2019 = vmatpush1.msra.mxu0 0.0
        %2020 = vmatprep.subr.mxu0 0.0
        %2021 = vmatpush1.msra.mxu0 0.0
        %2022 = vmatprep.subr.mxu0 0.0
        %2023 = vmatpush1.msra.mxu0 0.0
        %2024 = vmatprep.subr.mxu0 0.0
        %2025 = vmatpush1.msra.mxu0 0.0
        %2026 = vmatprep.subr.mxu0 0.0
        %2027 = vmatpush1.msra.mxu0 0.0
        %2028 = vmatprep.subr.mxu0 0.0
        %2029 = vmatpush1.msra.mxu0 0.0
        %2030 = vmatprep.subr.mxu0 0.0
        %2031 = vmatpush1.msra.mxu0 0.0
        %2032 = vmatprep.subr.mxu0 0.0
        %2033 = vmatpush1.msra.mxu0 0.0
        %2034 = vmatprep.subr.mxu0 0.0
        %2035 = vmatpush1.msra.mxu0 0.0
        %2036 = vmatprep.subr.mxu0 0.0
        %2037 = vmatpush1.msra.mxu0 0.0
        %2038 = vmatprep.subr.mxu0 0.0
        %2039 = vmatpush1.msra.mxu0 0.0
        %2040 = vmatprep.subr.mxu0 0.0
        %2041 = vmatpush1.msra.mxu0 0.0
        %2042 = vmatprep.subr.mxu0 0.0
        %2043 = vmatpush1.msra.mxu0 0.0
        %2044 = vmatprep.subr.mxu0 0.0
        %2045 = vmatpush1.msra.mxu0 0.0
        %2046 = vmatprep.subr.mxu0 0.0
        %2047 = vmatpush1.msra.mxu0 0.0
        %2048 = vmatprep.subr.mxu0 0.0
        %2049 = vmatpush1.msra.mxu0 0.0
        %2050 = vmatprep.subr.mxu0 0.0
        %2051 = vmatpush1.msra.mxu0 0.0
        %2052 = vmatprep.subr.mxu0 0.0
        %2053 = vmatpush1.msra.mxu0 0.0
        %2054 = vmatprep.subr.mxu0 0.0
        %2055 = vmatpush1.msra.mxu0 0.0
        %2056 = vmatprep.subr.mxu0 0.0
        %2057 = vmatpush1.msra.mxu0 0.0
        %2058 = vmatprep.subr.mxu0 0.0
        %2059 = vmatpush1.msra.mxu0 0.0
        %2060 = vmatprep.subr.mxu0 0.0
        %2061 = vmatpush1.msra.mxu0 0.0
        %2062 = vmatprep.subr.mxu0 0.0
        %2063 = vmatpush1.msra.mxu0 0.0
        %2064 = vmatprep.subr.mxu0 0.0
        %2065 = vmatpush1.msra.mxu0 0.0
        %2066 = vmatprep.subr.mxu0 0.0
        %2067 = vmatpush1.msra.mxu0 0.0
        %2068 = vmatprep.subr.mxu0 0.0
        %2069 = vmatpush1.msra.mxu0 0.0
        %2070 = vmatprep.subr.mxu0 0.0
        %2071 = vmatpush1.msra.mxu0 0.0
        %2072 = vmatprep.subr.mxu0 0.0
        %2073 = vmatpush1.msra.mxu0 0.0
        %2074 = vmatprep.subr.mxu0 0.0
        %2075 = vmatpush1.msra.mxu0 0.0
        %2076 = vmatprep.mubr.f32.mxu0 0.0
        %2077 = vmatmul.mubr.f32.gmra.mrb[0].mxu0 %v2010
        %v2078 = vpop.f32.mrb[0].mxu0
        %v2079 = vadd.f32 0.0, %v2078
        %v2080 = vpop.f32.mrb[0].mxu0
        %2081 = vdwg.mxu0
        %v2082 = vadd.f32 %v1985, %v2079
        %v2083 = vld [vmem:[#allocation8] sm:$0x7]
        %v2084 = vld [vmem:[#allocation3 + $0x8] sm:$0xff]
        %v2085 = vld [vmem:[#allocation3 + $0x20] sm:$0xff]
        %2087 = vrot.lane.b32.xlu0 %v2083, 64
        %v2088 = vpop.permute.xlu0 %2087
        %v2089 = vsel %vm1732, %v2088, 0
        %2091 = vmatprep.subr.mxu0 0.0
        %2092 = vmatpush1.msra.mxu0 %v2084
        %2093 = vmatprep.subr.mxu0 0.0
        %2094 = vmatpush1.msra.mxu0 %v2085
        %2095 = vmatprep.subr.mxu0 0.0
        %2096 = vmatpush1.msra.mxu0 0.0
        %2097 = vmatprep.subr.mxu0 0.0
        %2098 = vmatpush1.msra.mxu0 0.0
        %2099 = vmatprep.subr.mxu0 0.0
        %2100 = vmatpush1.msra.mxu0 0.0
        %2101 = vmatprep.subr.mxu0 0.0
        %2102 = vmatpush1.msra.mxu0 0.0
        %2103 = vmatprep.subr.mxu0 0.0
        %2104 = vmatpush1.msra.mxu0 0.0
        %2105 = vmatprep.subr.mxu0 0.0
        %2106 = vmatpush1.msra.mxu0 0.0
        %2107 = vmatprep.subr.mxu0 0.0
        %2108 = vmatpush1.msra.mxu0 0.0
        %2109 = vmatprep.subr.mxu0 0.0
        %2110 = vmatpush1.msra.mxu0 0.0
        %2111 = vmatprep.subr.mxu0 0.0
        %2112 = vmatpush1.msra.mxu0 0.0
        %2113 = vmatprep.subr.mxu0 0.0
        %2114 = vmatpush1.msra.mxu0 0.0
        %2115 = vmatprep.subr.mxu0 0.0
        %2116 = vmatpush1.msra.mxu0 0.0
        %2117 = vmatprep.subr.mxu0 0.0
        %2118 = vmatpush1.msra.mxu0 0.0
        %2119 = vmatprep.subr.mxu0 0.0
        %2120 = vmatpush1.msra.mxu0 0.0
        %2121 = vmatprep.subr.mxu0 0.0
        %2122 = vmatpush1.msra.mxu0 0.0
        %2123 = vmatprep.subr.mxu0 0.0
        %2124 = vmatpush1.msra.mxu0 0.0
        %2125 = vmatprep.subr.mxu0 0.0
        %2126 = vmatpush1.msra.mxu0 0.0
        %2127 = vmatprep.subr.mxu0 0.0
        %2128 = vmatpush1.msra.mxu0 0.0
        %2129 = vmatprep.subr.mxu0 0.0
        %2130 = vmatpush1.msra.mxu0 0.0
        %2131 = vmatprep.subr.mxu0 0.0
        %2132 = vmatpush1.msra.mxu0 0.0
        %2133 = vmatprep.subr.mxu0 0.0
        %2134 = vmatpush1.msra.mxu0 0.0
        %2135 = vmatprep.subr.mxu0 0.0
        %2136 = vmatpush1.msra.mxu0 0.0
        %2137 = vmatprep.subr.mxu0 0.0
        %2138 = vmatpush1.msra.mxu0 0.0
        %2139 = vmatprep.subr.mxu0 0.0
        %2140 = vmatpush1.msra.mxu0 0.0
        %2141 = vmatprep.subr.mxu0 0.0
        %2142 = vmatpush1.msra.mxu0 0.0
        %2143 = vmatprep.subr.mxu0 0.0
        %2144 = vmatpush1.msra.mxu0 0.0
        %2145 = vmatprep.subr.mxu0 0.0
        %2146 = vmatpush1.msra.mxu0 0.0
        %2147 = vmatprep.subr.mxu0 0.0
        %2148 = vmatpush1.msra.mxu0 0.0
        %2149 = vmatprep.subr.mxu0 0.0
        %2150 = vmatpush1.msra.mxu0 0.0
        %2151 = vmatprep.subr.mxu0 0.0
        %2152 = vmatpush1.msra.mxu0 0.0
        %2153 = vmatprep.subr.mxu0 0.0
        %2154 = vmatpush1.msra.mxu0 0.0
        %2155 = vmatprep.mubr.f32.mxu0 0.0
        %2156 = vmatmul.mubr.f32.gmra.mrb[0].mxu0 %v2089
        %v2157 = vpop.f32.mrb[0].mxu0
        %v2158 = vadd.f32 0.0, %v2157
        %v2159 = vpop.f32.mrb[0].mxu0
        %2160 = vdwg.mxu0
        %v2161 = vadd.f32 %v2082, %v2158
        %v2162 = vld [vmem:[#allocation8] sm:$0x7]
        %v2163 = vld [vmem:[#allocation3 + $0x8] sm:$0xff]
        %v2164 = vld [vmem:[#allocation3 + $0x20] sm:$0xff]
        %2166 = vrot.lane.b32.xlu0 %v2162, 48
        %v2167 = vpop.permute.xlu0 %2166
        %2170 = vrot.lane.b32.xlu0 %v2163, 127
        %v2171 = vpop.permute.xlu0 %2170
        %2172 = vrot.lane.b32.xlu0 %v2164, 127
        %v2173 = vpop.permute.xlu0 %2172
        %v2176 = vsel %vm1732, %v2167, 0
        %2178 = vmatprep.subr.mxu0 0.0
        %2179 = vmatpush1.msra.mxu0 %v2171
        %2180 = vmatprep.subr.mxu0 0.0
        %2181 = vmatpush1.msra.mxu0 %v2173
        %2182 = vmatprep.subr.mxu0 0.0
        %2183 = vmatpush1.msra.mxu0 0.0
        %2184 = vmatprep.subr.mxu0 0.0
        %2185 = vmatpush1.msra.mxu0 0.0
        %2186 = vmatprep.subr.mxu0 0.0
        %2187 = vmatpush1.msra.mxu0 0.0
        %2188 = vmatprep.subr.mxu0 0.0
        %2189 = vmatpush1.msra.mxu0 0.0
        %2190 = vmatprep.subr.mxu0 0.0
        %2191 = vmatpush1.msra.mxu0 0.0
        %2192 = vmatprep.subr.mxu0 0.0
        %2193 = vmatpush1.msra.mxu0 0.0
        %2194 = vmatprep.subr.mxu0 0.0
        %2195 = vmatpush1.msra.mxu0 0.0
        %2196 = vmatprep.subr.mxu0 0.0
        %2197 = vmatpush1.msra.mxu0 0.0
        %2198 = vmatprep.subr.mxu0 0.0
        %2199 = vmatpush1.msra.mxu0 0.0
        %2200 = vmatprep.subr.mxu0 0.0
        %2201 = vmatpush1.msra.mxu0 0.0
        %2202 = vmatprep.subr.mxu0 0.0
        %2203 = vmatpush1.msra.mxu0 0.0
        %2204 = vmatprep.subr.mxu0 0.0
        %2205 = vmatpush1.msra.mxu0 0.0
        %2206 = vmatprep.subr.mxu0 0.0
        %2207 = vmatpush1.msra.mxu0 0.0
        %2208 = vmatprep.subr.mxu0 0.0
        %2209 = vmatpush1.msra.mxu0 0.0
        %2210 = vmatprep.subr.mxu0 0.0
        %2211 = vmatpush1.msra.mxu0 0.0
        %2212 = vmatprep.subr.mxu0 0.0
        %2213 = vmatpush1.msra.mxu0 0.0
        %2214 = vmatprep.subr.mxu0 0.0
        %2215 = vmatpush1.msra.mxu0 0.0
        %2216 = vmatprep.subr.mxu0 0.0
        %2217 = vmatpush1.msra.mxu0 0.0
        %2218 = vmatprep.subr.mxu0 0.0
        %2219 = vmatpush1.msra.mxu0 0.0
        %2220 = vmatprep.subr.mxu0 0.0
        %2221 = vmatpush1.msra.mxu0 0.0
        %2222 = vmatprep.subr.mxu0 0.0
        %2223 = vmatpush1.msra.mxu0 0.0
        %2224 = vmatprep.subr.mxu0 0.0
        %2225 = vmatpush1.msra.mxu0 0.0
        %2226 = vmatprep.subr.mxu0 0.0
        %2227 = vmatpush1.msra.mxu0 0.0
        %2228 = vmatprep.subr.mxu0 0.0
        %2229 = vmatpush1.msra.mxu0 0.0
        %2230 = vmatprep.subr.mxu0 0.0
        %2231 = vmatpush1.msra.mxu0 0.0
        %2232 = vmatprep.subr.mxu0 0.0
        %2233 = vmatpush1.msra.mxu0 0.0
        %2234 = vmatprep.subr.mxu0 0.0
        %2235 = vmatpush1.msra.mxu0 0.0
        %2236 = vmatprep.subr.mxu0 0.0
        %2237 = vmatpush1.msra.mxu0 0.0
        %2238 = vmatprep.subr.mxu0 0.0
        %2239 = vmatpush1.msra.mxu0 0.0
        %2240 = vmatprep.subr.mxu0 0.0
        %2241 = vmatpush1.msra.mxu0 0.0
        %2242 = vmatprep.mubr.f32.mxu0 0.0
        %2243 = vmatmul.mubr.f32.gmra.mrb[0].mxu0 %v2176
        %v2244 = vpop.f32.mrb[0].mxu0
        %v2245 = vadd.f32 0.0, %v2244
        %v2246 = vpop.f32.mrb[0].mxu0
        %2247 = vdwg.mxu0
        %v2248 = vadd.f32 %v2161, %v2245
        %v2249 = vld [vmem:[#allocation8] sm:$0x7]
        %v2250 = vld [vmem:[#allocation3 + $0x8] sm:$0xff]
        %v2251 = vld [vmem:[#allocation3 + $0x20] sm:$0xff]
        %2253 = vrot.lane.b32.xlu0 %v2249, 32
        %v2254 = vpop.permute.xlu0 %2253
        %2257 = vrot.lane.b32.xlu0 %v2250, 119
        %v2258 = vpop.permute.xlu0 %2257
        %2259 = vrot.lane.b32.xlu0 %v2251, 119
        %v2260 = vpop.permute.xlu0 %2259
        %v2263 = vsel %vm1732, %v2254, 0
        %2265 = vmatprep.subr.mxu0 0.0
        %2266 = vmatpush1.msra.mxu0 %v2258
        %2267 = vmatprep.subr.mxu0 0.0
        %2268 = vmatpush1.msra.mxu0 %v2260
        %2269 = vmatprep.subr.mxu0 0.0
        %2270 = vmatpush1.msra.mxu0 0.0
        %2271 = vmatprep.subr.mxu0 0.0
        %2272 = vmatpush1.msra.mxu0 0.0
        %2273 = vmatprep.subr.mxu0 0.0
        %2274 = vmatpush1.msra.mxu0 0.0
        %2275 = vmatprep.subr.mxu0 0.0
        %2276 = vmatpush1.msra.mxu0 0.0
        %2277 = vmatprep.subr.mxu0 0.0
        %2278 = vmatpush1.msra.mxu0 0.0
        %2279 = vmatprep.subr.mxu0 0.0
        %2280 = vmatpush1.msra.mxu0 0.0
        %2281 = vmatprep.subr.mxu0 0.0
        %2282 = vmatpush1.msra.mxu0 0.0
        %2283 = vmatprep.subr.mxu0 0.0
        %2284 = vmatpush1.msra.mxu0 0.0
        %2285 = vmatprep.subr.mxu0 0.0
        %2286 = vmatpush1.msra.mxu0 0.0
        %2287 = vmatprep.subr.mxu0 0.0
        %2288 = vmatpush1.msra.mxu0 0.0
        %2289 = vmatprep.subr.mxu0 0.0
        %2290 = vmatpush1.msra.mxu0 0.0
        %2291 = vmatprep.subr.mxu0 0.0
        %2292 = vmatpush1.msra.mxu0 0.0
        %2293 = vmatprep.subr.mxu0 0.0
        %2294 = vmatpush1.msra.mxu0 0.0
        %2295 = vmatprep.subr.mxu0 0.0
        %2296 = vmatpush1.msra.mxu0 0.0
        %2297 = vmatprep.subr.mxu0 0.0
        %2298 = vmatpush1.msra.mxu0 0.0
        %2299 = vmatprep.subr.mxu0 0.0
        %2300 = vmatpush1.msra.mxu0 0.0
        %2301 = vmatprep.subr.mxu0 0.0
        %2302 = vmatpush1.msra.mxu0 0.0
        %2303 = vmatprep.subr.mxu0 0.0
        %2304 = vmatpush1.msra.mxu0 0.0
        %2305 = vmatprep.subr.mxu0 0.0
        %2306 = vmatpush1.msra.mxu0 0.0
        %2307 = vmatprep.subr.mxu0 0.0
        %2308 = vmatpush1.msra.mxu0 0.0
        %2309 = vmatprep.subr.mxu0 0.0
        %2310 = vmatpush1.msra.mxu0 0.0
        %2311 = vmatprep.subr.mxu0 0.0
        %2312 = vmatpush1.msra.mxu0 0.0
        %2313 = vmatprep.subr.mxu0 0.0
        %2314 = vmatpush1.msra.mxu0 0.0
        %2315 = vmatprep.subr.mxu0 0.0
        %2316 = vmatpush1.msra.mxu0 0.0
        %2317 = vmatprep.subr.mxu0 0.0
        %2318 = vmatpush1.msra.mxu0 0.0
        %2319 = vmatprep.subr.mxu0 0.0
        %2320 = vmatpush1.msra.mxu0 0.0
        %2321 = vmatprep.subr.mxu0 0.0
        %2322 = vmatpush1.msra.mxu0 0.0
        %2323 = vmatprep.subr.mxu0 0.0
        %2324 = vmatpush1.msra.mxu0 0.0
        %2325 = vmatprep.subr.mxu0 0.0
        %2326 = vmatpush1.msra.mxu0 0.0
        %2327 = vmatprep.subr.mxu0 0.0
        %2328 = vmatpush1.msra.mxu0 0.0
        %2329 = vmatprep.mubr.f32.mxu0 0.0
        %2330 = vmatmul.mubr.f32.gmra.mrb[0].mxu0 %v2263
        %v2331 = vpop.f32.mrb[0].mxu0
        %v2332 = vadd.f32 0.0, %v2331
        %v2333 = vpop.f32.mrb[0].mxu0
        %2334 = vdwg.mxu0
        %v2335 = vadd.f32 %v2248, %v2332
        %v2336 = vld [vmem:[#allocation8] sm:$0x7]
        %v2337 = vld [vmem:[#allocation3 + $0x8] sm:$0xff]
        %v2338 = vld [vmem:[#allocation3 + $0x20] sm:$0xff]
        %2340 = vrot.lane.b32.xlu0 %v2336, 16
        %v2341 = vpop.permute.xlu0 %2340
        %2344 = vrot.lane.b32.xlu0 %v2337, 118
        %v2345 = vpop.permute.xlu0 %2344
        %2346 = vrot.lane.b32.xlu0 %v2338, 118
        %v2347 = vpop.permute.xlu0 %2346
        %v2350 = vsel %vm1732, %v2341, 0
        %2352 = vmatprep.subr.mxu0 0.0
        %2353 = vmatpush1.msra.mxu0 %v2345
        %2354 = vmatprep.subr.mxu0 0.0
        %2355 = vmatpush1.msra.mxu0 %v2347
        %2356 = vmatprep.subr.mxu0 0.0
        %2357 = vmatpush1.msra.mxu0 0.0
        %2358 = vmatprep.subr.mxu0 0.0
        %2359 = vmatpush1.msra.mxu0 0.0
        %2360 = vmatprep.subr.mxu0 0.0
        %2361 = vmatpush1.msra.mxu0 0.0
        %2362 = vmatprep.subr.mxu0 0.0
        %2363 = vmatpush1.msra.mxu0 0.0
        %2364 = vmatprep.subr.mxu0 0.0
        %2365 = vmatpush1.msra.mxu0 0.0
        %2366 = vmatprep.subr.mxu0 0.0
        %2367 = vmatpush1.msra.mxu0 0.0
        %2368 = vmatprep.subr.mxu0 0.0
        %2369 = vmatpush1.msra.mxu0 0.0
        %2370 = vmatprep.subr.mxu0 0.0
        %2371 = vmatpush1.msra.mxu0 0.0
        %2372 = vmatprep.subr.mxu0 0.0
        %2373 = vmatpush1.msra.mxu0 0.0
        %2374 = vmatprep.subr.mxu0 0.0
        %2375 = vmatpush1.msra.mxu0 0.0
        %2376 = vmatprep.subr.mxu0 0.0
        %2377 = vmatpush1.msra.mxu0 0.0
        %2378 = vmatprep.subr.mxu0 0.0
        %2379 = vmatpush1.msra.mxu0 0.0
        %2380 = vmatprep.subr.mxu0 0.0
        %2381 = vmatpush1.msra.mxu0 0.0
        %2382 = vmatprep.subr.mxu0 0.0
        %2383 = vmatpush1.msra.mxu0 0.0
        %2384 = vmatprep.subr.mxu0 0.0
        %2385 = vmatpush1.msra.mxu0 0.0
        %2386 = vmatprep.subr.mxu0 0.0
        %2387 = vmatpush1.msra.mxu0 0.0
        %2388 = vmatprep.subr.mxu0 0.0
        %2389 = vmatpush1.msra.mxu0 0.0
        %2390 = vmatprep.subr.mxu0 0.0
        %2391 = vmatpush1.msra.mxu0 0.0
        %2392 = vmatprep.subr.mxu0 0.0
        %2393 = vmatpush1.msra.mxu0 0.0
        %2394 = vmatprep.subr.mxu0 0.0
        %2395 = vmatpush1.msra.mxu0 0.0
        %2396 = vmatprep.subr.mxu0 0.0
        %2397 = vmatpush1.msra.mxu0 0.0
        %2398 = vmatprep.subr.mxu0 0.0
        %2399 = vmatpush1.msra.mxu0 0.0
        %2400 = vmatprep.subr.mxu0 0.0
        %2401 = vmatpush1.msra.mxu0 0.0
        %2402 = vmatprep.subr.mxu0 0.0
        %2403 = vmatpush1.msra.mxu0 0.0
        %2404 = vmatprep.subr.mxu0 0.0
        %2405 = vmatpush1.msra.mxu0 0.0
        %2406 = vmatprep.subr.mxu0 0.0
        %2407 = vmatpush1.msra.mxu0 0.0
        %2408 = vmatprep.subr.mxu0 0.0
        %2409 = vmatpush1.msra.mxu0 0.0
        %2410 = vmatprep.subr.mxu0 0.0
        %2411 = vmatpush1.msra.mxu0 0.0
        %2412 = vmatprep.subr.mxu0 0.0
        %2413 = vmatpush1.msra.mxu0 0.0
        %2414 = vmatprep.subr.mxu0 0.0
        %2415 = vmatpush1.msra.mxu0 0.0
        %2416 = vmatprep.mubr.f32.mxu0 0.0
        %2417 = vmatmul.mubr.f32.gmra.mrb[0].mxu0 %v2350
        %v2418 = vpop.f32.mrb[0].mxu0
        %v2419 = vadd.f32 0.0, %v2418
        %v2420 = vpop.f32.mrb[0].mxu0
        %2421 = vdwg.mxu0
        %v2422 = vadd.f32 %v2335, %v2419
        %v2423 = vld [vmem:[#allocation8 + $0x4] sm:$0x7]
        %v2424 = vld [vmem:[#allocation3 + $0x8] sm:$0xff]
        %v2425 = vld [vmem:[#allocation3 + $0x20] sm:$0xff]
        %2428 = vrot.lane.b32.xlu0 %v2424, 117
        %v2429 = vpop.permute.xlu0 %2428
        %2430 = vrot.lane.b32.xlu0 %v2425, 117
        %v2431 = vpop.permute.xlu0 %2430
        %v2435 = vsel %vm1732, %v2423, 0
        %2437 = vmatprep.subr.mxu0 0.0
        %2438 = vmatpush1.msra.mxu0 %v2429
        %2439 = vmatprep.subr.mxu0 0.0
        %2440 = vmatpush1.msra.mxu0 %v2431
        %2441 = vmatprep.subr.mxu0 0.0
        %2442 = vmatpush1.msra.mxu0 0.0
        %2443 = vmatprep.subr.mxu0 0.0
        %2444 = vmatpush1.msra.mxu0 0.0
        %2445 = vmatprep.subr.mxu0 0.0
        %2446 = vmatpush1.msra.mxu0 0.0
        %2447 = vmatprep.subr.mxu0 0.0
        %2448 = vmatpush1.msra.mxu0 0.0
        %2449 = vmatprep.subr.mxu0 0.0
        %2450 = vmatpush1.msra.mxu0 0.0
        %2451 = vmatprep.subr.mxu0 0.0
        %2452 = vmatpush1.msra.mxu0 0.0
        %2453 = vmatprep.subr.mxu0 0.0
        %2454 = vmatpush1.msra.mxu0 0.0
        %2455 = vmatprep.subr.mxu0 0.0
        %2456 = vmatpush1.msra.mxu0 0.0
        %2457 = vmatprep.subr.mxu0 0.0
        %2458 = vmatpush1.msra.mxu0 0.0
        %2459 = vmatprep.subr.mxu0 0.0
        %2460 = vmatpush1.msra.mxu0 0.0
        %2461 = vmatprep.subr.mxu0 0.0
        %2462 = vmatpush1.msra.mxu0 0.0
        %2463 = vmatprep.subr.mxu0 0.0
        %2464 = vmatpush1.msra.mxu0 0.0
        %2465 = vmatprep.subr.mxu0 0.0
        %2466 = vmatpush1.msra.mxu0 0.0
        %2467 = vmatprep.subr.mxu0 0.0
        %2468 = vmatpush1.msra.mxu0 0.0
        %2469 = vmatprep.subr.mxu0 0.0
        %2470 = vmatpush1.msra.mxu0 0.0
        %2471 = vmatprep.subr.mxu0 0.0
        %2472 = vmatpush1.msra.mxu0 0.0
        %2473 = vmatprep.subr.mxu0 0.0
        %2474 = vmatpush1.msra.mxu0 0.0
        %2475 = vmatprep.subr.mxu0 0.0
        %2476 = vmatpush1.msra.mxu0 0.0
        %2477 = vmatprep.subr.mxu0 0.0
        %2478 = vmatpush1.msra.mxu0 0.0
        %2479 = vmatprep.subr.mxu0 0.0
        %2480 = vmatpush1.msra.mxu0 0.0
        %2481 = vmatprep.subr.mxu0 0.0
        %2482 = vmatpush1.msra.mxu0 0.0
        %2483 = vmatprep.subr.mxu0 0.0
        %2484 = vmatpush1.msra.mxu0 0.0
        %2485 = vmatprep.subr.mxu0 0.0
        %2486 = vmatpush1.msra.mxu0 0.0
        %2487 = vmatprep.subr.mxu0 0.0
        %2488 = vmatpush1.msra.mxu0 0.0
        %2489 = vmatprep.subr.mxu0 0.0
        %2490 = vmatpush1.msra.mxu0 0.0
        %2491 = vmatprep.subr.mxu0 0.0
        %2492 = vmatpush1.msra.mxu0 0.0
        %2493 = vmatprep.subr.mxu0 0.0
        %2494 = vmatpush1.msra.mxu0 0.0
        %2495 = vmatprep.subr.mxu0 0.0
        %2496 = vmatpush1.msra.mxu0 0.0
        %2497 = vmatprep.subr.mxu0 0.0
        %2498 = vmatpush1.msra.mxu0 0.0
        %2499 = vmatprep.subr.mxu0 0.0
        %2500 = vmatpush1.msra.mxu0 0.0
        %2501 = vmatprep.mubr.f32.mxu0 0.0
        %2502 = vmatmul.mubr.f32.gmra.mrb[0].mxu0 %v2435
        %v2503 = vpop.f32.mrb[0].mxu0
        %v2504 = vadd.f32 0.0, %v2503
        %v2505 = vpop.f32.mrb[0].mxu0
        %2506 = vdwg.mxu0
        %v2507 = vadd.f32 %v2422, %v2504
        %v2508 = vld [vmem:[%s6] sm:$0x7]
        %2510 = vset.pattern.permute.xlu0 0
        %2511 = vperm.xlu0 %2510, %v2508
        %v2512 = vpop.permute.xlu0 %2511
        %v2514 = vadd.f32 %v2507, %v2512
        %v2515 = vmax.f32 %v2514, 0.0
        %v2516 = vsel %vm753, %v2515, 0.0
        %v2517 = vld [vmem:[%s8] sm:$0xff]
        %v2518 = vld [vmem:[%s8 + $0x8] sm:$0xff]
        %v2519 = vld [vmem:[%s8 + $0x10] sm:$0xff]
        %v2520 = vld [vmem:[%s8 + $0x18] sm:$0xff]
        %v2521 = vld [vmem:[%s8 + $0x20] sm:$0xff]
        %v2522 = vld [vmem:[%s8 + $0x28] sm:$0xff]
        %v2523 = vld [vmem:[%s8 + $0x30] sm:$0xff]
        %v2524 = vld [vmem:[%s8 + $0x38] sm:$0xff]
        %v2525 = vld [vmem:[%s8 + $0x40] sm:$0xff]
        %v2526 = vld [vmem:[%s8 + $0x48] sm:$0xff]
        %v2527 = vld [vmem:[%s8 + $0x50] sm:$0xff]
        %v2528 = vld [vmem:[%s8 + $0x58] sm:$0xff]
        %v2529 = vld [vmem:[%s8 + $0x60] sm:$0xff]
        %v2530 = vld [vmem:[%s8 + $0x68] sm:$0xff]
        %v2531 = vld [vmem:[%s8 + $0x70] sm:$0xf]
        %v2532 = vld [vmem:[%s8 + $0x78] sm:$0xf]
        %v2534 = vsel %vm385, %v2516, 0
        %v2537 = vsel %vm428, %v2531, 0
        %v2540 = vsel %vm428, %v2532, 0
        %2542 = vmatprep.subr.mxu0 %v2518
        %2543 = vmatpush1.msra.mxu0 %v2517
        %2544 = vmatprep.subr.mxu0 %v2520
        %2545 = vmatpush1.msra.mxu0 %v2519
        %2546 = vmatprep.subr.mxu0 %v2522
        %2547 = vmatpush1.msra.mxu0 %v2521
        %2548 = vmatprep.subr.mxu0 %v2524
        %2549 = vmatpush1.msra.mxu0 %v2523
        %2550 = vmatprep.subr.mxu0 %v2526
        %2551 = vmatpush1.msra.mxu0 %v2525
        %2552 = vmatprep.subr.mxu0 %v2528
        %2553 = vmatpush1.msra.mxu0 %v2527
        %2554 = vmatprep.subr.mxu0 %v2530
        %2555 = vmatpush1.msra.mxu0 %v2529
        %2556 = vmatprep.subr.mxu0 %v2540
        %2557 = vmatpush1.msra.mxu0 %v2537
        %2558 = vmatprep.subr.mxu0 0.0
        %2559 = vmatpush1.msra.mxu0 0.0
        %2560 = vmatprep.subr.mxu0 0.0
        %2561 = vmatpush1.msra.mxu0 0.0
        %2562 = vmatprep.subr.mxu0 0.0
        %2563 = vmatpush1.msra.mxu0 0.0
        %2564 = vmatprep.subr.mxu0 0.0
        %2565 = vmatpush1.msra.mxu0 0.0
        %2566 = vmatprep.subr.mxu0 0.0
        %2567 = vmatpush1.msra.mxu0 0.0
        %2568 = vmatprep.subr.mxu0 0.0
        %2569 = vmatpush1.msra.mxu0 0.0
        %2570 = vmatprep.subr.mxu0 0.0
        %2571 = vmatpush1.msra.mxu0 0.0
        %2572 = vmatprep.subr.mxu0 0.0
        %2573 = vmatpush1.msra.mxu0 0.0
        %2574 = vmatprep.subr.mxu0 0.0
        %2575 = vmatpush1.msra.mxu0 0.0
        %2576 = vmatprep.subr.mxu0 0.0
        %2577 = vmatpush1.msra.mxu0 0.0
        %2578 = vmatprep.subr.mxu0 0.0
        %2579 = vmatpush1.msra.mxu0 0.0
        %2580 = vmatprep.subr.mxu0 0.0
        %2581 = vmatpush1.msra.mxu0 0.0
        %2582 = vmatprep.subr.mxu0 0.0
        %2583 = vmatpush1.msra.mxu0 0.0
        %2584 = vmatprep.subr.mxu0 0.0
        %2585 = vmatpush1.msra.mxu0 0.0
        %2586 = vmatprep.subr.mxu0 0.0
        %2587 = vmatpush1.msra.mxu0 0.0
        %2588 = vmatprep.subr.mxu0 0.0
        %2589 = vmatpush1.msra.mxu0 0.0
        %2590 = vmatprep.subr.mxu0 0.0
        %2591 = vmatpush1.msra.mxu0 0.0
        %2592 = vmatprep.subr.mxu0 0.0
        %2593 = vmatpush1.msra.mxu0 0.0
        %2594 = vmatprep.subr.mxu0 0.0
        %2595 = vmatpush1.msra.mxu0 0.0
        %2596 = vmatprep.subr.mxu0 0.0
        %2597 = vmatpush1.msra.mxu0 0.0
        %2598 = vmatprep.subr.mxu0 0.0
        %2599 = vmatpush1.msra.mxu0 0.0
        %2600 = vmatprep.subr.mxu0 0.0
        %2601 = vmatpush1.msra.mxu0 0.0
        %2602 = vmatprep.subr.mxu0 0.0
        %2603 = vmatpush1.msra.mxu0 0.0
        %2604 = vmatprep.subr.mxu0 0.0
        %2605 = vmatpush1.msra.mxu0 0.0
        %2606 = vmatprep.mubr.f32.mxu0 0.0
        %2607 = vmatmul.mubr.f32.gmra.mrb[0].mxu0 %v2534
        %v2608 = vpop.f32.mrb[0].mxu0
        %v2609 = vadd.f32 0.0, %v2608
        %v2610 = vpop.f32.mrb[0].mxu0
        %v2611 = vadd.f32 0.0, %v2610
        %2612 = vdwg.mxu0
        %v2615 = vcombine.low %v2609, %v2611
        %2617 = vst [vmem:[%s376] sm:$0x77] %v2615
        %p2618 = scmp.lt.s32.totalorder %s24, 1
        %s2619 = scalar_select %p2618, %s24, 1
        %s2620 = smul.addr %s2619, 2
        %s2621 = smul.addr %s2620, 4
        %s2622 = scalar_lea.vmem %s9, %s2621
        // Predicated region
        $region69: #{tpu_custom_call.1} parent=55 // pred_check
          %p2623 = pneg %p236
        $region70: #{tpu_custom_call.1} parent=55 // pred_check_branch
          %2625 = sbr.rel (%p2623) target = $region72
        $region71: #{tpu_custom_call.1} parent=55 // pred_region
          _
        $region72: #{tpu_custom_call.1} parent=55 // pred_fallthru
          _
      $region56: #{tpu_custom_call.1} parent=5 // pred_fallthru
        _
      %p2626 = scmp.le.s32.totalorder 2, %s19
      // Predicated region
      $region73: #{tpu_custom_call.1} parent=5 // pred_check
        %p2627 = pneg %p2626
      $region74: #{tpu_custom_call.1} parent=5 // pred_check_branch
        %2629 = sbr.rel (%p2627) target = $region76
      $region75: #{tpu_custom_call.1} parent=5 // pred_region
        %s2630 = ssub.s32 %s19, 2
        // Predicated region
        $region77: #{tpu_custom_call.1} parent=75 // pred_check
          %p2631 = pneg %p242
        $region78: #{tpu_custom_call.1} parent=75 // pred_check_branch
          %2633 = sbr.rel (%p2631) target = $region80
        $region79: #{tpu_custom_call.1} parent=75 // pred_region
          %p2634 = scmp.lt.s32.totalorder %s25, 1
          %s2635 = scalar_select %p2634, %s25, 1
          %s2636 = smul.addr %s2635, 2
          %s2637 = smul.addr %s2636, 4
          %s2638 = scalar_lea.vmem %s9, %s2637
        $region80: #{tpu_custom_call.1} parent=75 // pred_fallthru
          _
      $region76: #{tpu_custom_call.1} parent=5 // pred_fallthru
        _
    $region6: #{tpu_custom_call.1} parent=1 // loop_footer
      %s23 = sadd.s32 1, %s19
    $region7: #{tpu_custom_call.1} parent=1 // loop_footer_branch
      %18 = sbr.rel target = $region3
    $region8: #{tpu_custom_call.1} parent=1 // loop_exit
      _
    %2639 = vsyncpa [#allocation5], 1
    %s2640 = scalar_lea.sflag [#allocation5], 1
    %2641 = vsyncpa %s2640, 1
    %2642 = vsyncpa [#allocation7], 1

// kernel: tpu_custom_call.1
$region0: #{tpu_custom_call.1}
  #allocation0 [shape = 'u32[]', space=smem, size = 0x4, offset = 0x4, fixed_abs, tag = 'smem constant byte address 0x4 - core index']
  #allocation1 [shape = 'u32[144,128]{1,0:T(1,128)}', space=vmem, size = 0x12000, scoped, tag = 'internal scratch']
  #allocation2 [shape = 'f32[32,316]{1,0:T(8,128)}', space=vmem, size = 0xc000, scoped, tag = 'scratch operand']
  #allocation3 [shape = 'f32[16,316]{1,0:T(8,128)}', space=vmem, size = 0x6000, scoped, tag = 'scratch operand']
  %s0 = inlined_call_operand.hbm [shape: f32[2,4,62], index: 0, kind: input, shape index: {}]
  %s1 = inlined_call_operand.vmem [shape: f32[32,12], index: 1, kind: input, shape index: {}]
  %s2 = inlined_call_operand.vmem [shape: f32[32,1], index: 2, kind: input, shape index: {}]
  %s3 = inlined_call_operand.hbm [shape: f32[16,288], index: 3, kind: input, shape index: {}]
  %s4 = inlined_call_operand.vmem [shape: f32[16,1], index: 4, kind: input, shape index: {}]
  %s5 = inlined_call_operand.hbm [shape: f32[3,144], index: 5, kind: input, shape index: {}]
  %s6 = inlined_call_operand.vmem [shape: f32[3,1], index: 6, kind: input, shape index: {}]
  %s7 = inlined_call_operand.vmem [shape: f32[1,60], index: 7, kind: input, shape index: {}]
  %s8 = inlined_call_operand.vmem [shape: f32[60,256], index: 8, kind: input, shape index: {}]
  %s9 = inlined_call_operand.vmem [shape: f32[2,3,256], index: 9, kind: output, shape index: {}]
  %s10 = sld [smem:[#allocation0]]
  $region81: #{tpu_custom_call.1} parent=0
    _
  %s12 = ssub.s32 1, %s10
  %s13 = scalar_select 0, %s12, %s10
  $region1: #{tpu_custom_call.1} parent=0
    #allocation4 [shape = 'u8[4096]{0}', space=vmem, size = 0x1000, scoped, tag = 'input window, operand 0']
    #allocation5 [shape = 's32[2]{0}', space=sflag, size = 0x8, scoped, tag = 'scoped memory for tpu_custom_call.1']
    #allocation6 [shape = 'u8[24576]{0}', space=vmem, size = 0x6000, scoped, tag = 'input window, operand 3, single buffered']
    #allocation7 [shape = 's32[1]{0}', space=sflag, size = 0x4, scoped, tag = 'scoped memory for tpu_custom_call.1']
    #allocation8 [shape = 'u8[4096]{0}', space=vmem, size = 0x1000, scoped, tag = 'input window, operand 5, single buffered']
    %14 = vsyncpa [#allocation5], 0
    %s15 = scalar_lea.sflag [#allocation5], 1
    %16 = vsyncpa %s15, 0
    %17 = vsyncpa [#allocation7], 0
    loop: start=0, step=1, limit=4
    $region2: #{tpu_custom_call.1} parent=1 // loop_pre_header
      _
    $region3: #{tpu_custom_call.1} parent=1 // loop_header
      %s19 = sphi 0, %s23
      %p20 = scmp.ge.s32.totalorder %s19, 4
      %s29 = sphi 0, %s31
      %s32 = sphi 0, %s29
      %s33 = sphi 0, %s32
      %s49 = sphi 0, %s33
      %s53 = sphi 0, %s53
      %s55 = sphi 0, %s53
      %s56 = sphi 0, %s55
      %s70 = sphi 0, %s56
      %s74 = sphi 0, %s74
      %s76 = sphi 0, %s74
      %s77 = sphi 0, %s76
      %s91 = sphi 0, %s77
      %s95 = sphi 0, %s95
      %s97 = sphi 0, %s95
      %s98 = sphi 0, %s97
      %s112 = sphi 0, %s98
      %s116 = sphi 0, %s116
      %s118 = sphi 0, %s116
      %s119 = sphi 0, %s118
      %s133 = sphi 0, %s119
      %s137 = sphi 0, %s137
      %s139 = sphi 0, %s137
      %s140 = sphi 0, %s139
      %s154 = sphi 0, %s140
      %s158 = sphi 0, %s158
      %s160 = sphi 0, %s158
      %s161 = sphi 0, %s160
      %s175 = sphi 0, %s161
      %s179 = sphi 0, %s179
      %s181 = sphi 0, %s179
      %s182 = sphi 0, %s181
      %s196 = sphi 0, %s182
      %s200 = sphi 0, %s200
      %s202 = sphi 0, %s200
      %s203 = sphi 0, %s202
      %s217 = sphi 0, %s203
      %s223 = sphi 0, %s225
      %s226 = sphi 0, %s223
      %s227 = sphi 0, %s226
      %s243 = sphi 0, %s227
    $region4: #{tpu_custom_call.1} parent=1 // loop_header_branch
      %22 = sbr.rel (%p20) target = $region8
    $region5: #{tpu_custom_call.1} parent=1 // loop_body
      %s24 = ssub.s32 %s19, 1
      %s25 = ssub.s32 %s19, 2
      %s26 = sadd.s32 %s19, 1
      %s27 = ssub.s32 %s19, %s26
      %p28 = scmp.eq.s32.totalorder %s27, 0
      %s30 = sadd.s32 %s29, 1
      %s31 = scalar_select %p28, %s29, %s30
      %p34 = pneg %p28
      %p35 = scmp.eq.s32.totalorder %s19, 1
      %p36 = por %p34, %p35
      %p37 = scmp.ne.s32.totalorder %s29, %s32
      %p38 = scmp.eq.s32.totalorder %s19, 0
      %p39 = por %p37, %p38
      %p40 = scmp.ne.s32.totalorder %s29, %s32
      %p41 = scmp.eq.s32.totalorder %s24, 1
      %p42 = por %p40, %p41
      %p43 = scmp.ne.s32.totalorder %s32, %s33
      %p44 = scmp.eq.s32.totalorder %s24, 0
      %p45 = por %p43, %p44
      %p46 = scmp.ne.s32.totalorder %s32, %s33
      %p47 = scmp.eq.s32.totalorder %s25, 1
      %p48 = por %p46, %p47
      %p50 = scmp.ne.s32.totalorder %s33, %s49
      %p51 = scmp.eq.s32.totalorder %s25, 0
      %p52 = por %p50, %p51
      %s54 = sadd.s32 %s53, 1
      %p57 = scmp.eq.s32.totalorder %s19, 1
      %p58 = scmp.ne.s32.totalorder %s53, %s55
      %p59 = scmp.eq.s32.totalorder %s19, 0
      %p60 = por %p58, %p59
      %p61 = scmp.ne.s32.totalorder %s53, %s55
      %p62 = scmp.eq.s32.totalorder %s24, 1
      %p63 = por %p61, %p62
      %p64 = scmp.ne.s32.totalorder %s55, %s56
      %p65 = scmp.eq.s32.totalorder %s24, 0
      %p66 = por %p64, %p65
      %p67 = scmp.ne.s32.totalorder %s55, %s56
      %p68 = scmp.eq.s32.totalorder %s25, 1
      %p69 = por %p67, %p68
      %p71 = scmp.ne.s32.totalorder %s56, %s70
      %p72 = scmp.eq.s32.totalorder %s25, 0
      %p73 = por %p71, %p72
      %s75 = sadd.s32 %s74, 1
      %p78 = scmp.eq.s32.totalorder %s19, 1
      %p79 = scmp.ne.s32.totalorder %s74, %s76
      %p80 = scmp.eq.s32.totalorder %s19, 0
      %p81 = por %p79, %p80
      %p82 = scmp.ne.s32.totalorder %s74, %s76
      %p83 = scmp.eq.s32.totalorder %s24, 1
      %p84 = por %p82, %p83
      %p85 = scmp.ne.s32.totalorder %s76, %s77
      %p86 = scmp.eq.s32.totalorder %s24, 0
      %p87 = por %p85, %p86
      %p88 = scmp.ne.s32.totalorder %s76, %s77
      %p89 = scmp.eq.s32.totalorder %s25, 1
      %p90 = por %p88, %p89
      %p92 = scmp.ne.s32.totalorder %s77, %s91
      %p93 = scmp.eq.s32.totalorder %s25, 0
      %p94 = por %p92, %p93
      %s96 = sadd.s32 %s95, 1
      %p99 = scmp.eq.s32.totalorder %s19, 1
      %p100 = scmp.ne.s32.totalorder %s95, %s97
      %p101 = scmp.eq.s32.totalorder %s19, 0
      %p102 = por %p100, %p101
      %p103 = scmp.ne.s32.totalorder %s95, %s97
      %p104 = scmp.eq.s32.totalorder %s24, 1
      %p105 = por %p103, %p104
      %p106 = scmp.ne.s32.totalorder %s97, %s98
      %p107 = scmp.eq.s32.totalorder %s24, 0
      %p108 = por %p106, %p107
      %p109 = scmp.ne.s32.totalorder %s97, %s98
      %p110 = scmp.eq.s32.totalorder %s25, 1
      %p111 = por %p109, %p110
      %p113 = scmp.ne.s32.totalorder %s98, %s112
      %p114 = scmp.eq.s32.totalorder %s25, 0
      %p115 = por %p113, %p114
      %s117 = sadd.s32 %s116, 1
      %p120 = scmp.eq.s32.totalorder %s19, 1
      %p121 = scmp.ne.s32.totalorder %s116, %s118
      %p122 = scmp.eq.s32.totalorder %s19, 0
      %p123 = por %p121, %p122
      %p124 = scmp.ne.s32.totalorder %s116, %s118
      %p125 = scmp.eq.s32.totalorder %s24, 1
      %p126 = por %p124, %p125
      %p127 = scmp.ne.s32.totalorder %s118, %s119
      %p128 = scmp.eq.s32.totalorder %s24, 0
      %p129 = por %p127, %p128
      %p130 = scmp.ne.s32.totalorder %s118, %s119
      %p131 = scmp.eq.s32.totalorder %s25, 1
      %p132 = por %p130, %p131
      %p134 = scmp.ne.s32.totalorder %s119, %s133
      %p135 = scmp.eq.s32.totalorder %s25, 0
      %p136 = por %p134, %p135
      %s138 = sadd.s32 %s137, 1
      %p141 = scmp.eq.s32.totalorder %s19, 1
      %p142 = scmp.ne.s32.totalorder %s137, %s139
      %p143 = scmp.eq.s32.totalorder %s19, 0
      %p144 = por %p142, %p143
      %p145 = scmp.ne.s32.totalorder %s137, %s139
      %p146 = scmp.eq.s32.totalorder %s24, 1
      %p147 = por %p145, %p146
      %p148 = scmp.ne.s32.totalorder %s139, %s140
      %p149 = scmp.eq.s32.totalorder %s24, 0
      %p150 = por %p148, %p149
      %p151 = scmp.ne.s32.totalorder %s139, %s140
      %p152 = scmp.eq.s32.totalorder %s25, 1
      %p153 = por %p151, %p152
      %p155 = scmp.ne.s32.totalorder %s140, %s154
      %p156 = scmp.eq.s32.totalorder %s25, 0
      %p157 = por %p155, %p156
      %s159 = sadd.s32 %s158, 1
      %p162 = scmp.eq.s32.totalorder %s19, 1
      %p163 = scmp.ne.s32.totalorder %s158, %s160
      %p164 = scmp.eq.s32.totalorder %s19, 0
      %p165 = por %p163, %p164
      %p166 = scmp.ne.s32.totalorder %s158, %s160
      %p167 = scmp.eq.s32.totalorder %s24, 1
      %p168 = por %p166, %p167
      %p169 = scmp.ne.s32.totalorder %s160, %s161
      %p170 = scmp.eq.s32.totalorder %s24, 0
      %p171 = por %p169, %p170
      %p172 = scmp.ne.s32.totalorder %s160, %s161
      %p173 = scmp.eq.s32.totalorder %s25, 1
      %p174 = por %p172, %p173
      %p176 = scmp.ne.s32.totalorder %s161, %s175
      %p177 = scmp.eq.s32.totalorder %s25, 0
      %p178 = por %p176, %p177
      %s180 = sadd.s32 %s179, 1
      %p183 = scmp.eq.s32.totalorder %s19, 1
      %p184 = scmp.ne.s32.totalorder %s179, %s181
      %p185 = scmp.eq.s32.totalorder %s19, 0
      %p186 = por %p184, %p185
      %p187 = scmp.ne.s32.totalorder %s179, %s181
      %p188 = scmp.eq.s32.totalorder %s24, 1
      %p189 = por %p187, %p188
      %p190 = scmp.ne.s32.totalorder %s181, %s182
      %p191 = scmp.eq.s32.totalorder %s24, 0
      %p192 = por %p190, %p191
      %p193 = scmp.ne.s32.totalorder %s181, %s182
      %p194 = scmp.eq.s32.totalorder %s25, 1
      %p195 = por %p193, %p194
      %p197 = scmp.ne.s32.totalorder %s182, %s196
      %p198 = scmp.eq.s32.totalorder %s25, 0
      %p199 = por %p197, %p198
      %s201 = sadd.s32 %s200, 1
      %p204 = scmp.eq.s32.totalorder %s19, 1
      %p205 = scmp.ne.s32.totalorder %s200, %s202
      %p206 = scmp.eq.s32.totalorder %s19, 0
      %p207 = por %p205, %p206
      %p208 = scmp.ne.s32.totalorder %s200, %s202
      %p209 = scmp.eq.s32.totalorder %s24, 1
      %p210 = por %p208, %p209
      %p211 = scmp.ne.s32.totalorder %s202, %s203
      %p212 = scmp.eq.s32.totalorder %s24, 0
      %p213 = por %p211, %p212
      %p214 = scmp.ne.s32.totalorder %s202, %s203
      %p215 = scmp.eq.s32.totalorder %s25, 1
      %p216 = por %p214, %p215
      %p218 = scmp.ne.s32.totalorder %s203, %s217
      %p219 = scmp.eq.s32.totalorder %s25, 0
      %p220 = por %p218, %p219
      %s221 = ssub.s32 %s19, %s26
      %p222 = scmp.eq.s32.totalorder %s221, 0
      %s224 = sadd.s32 %s223, 1
      %s225 = scalar_select %p222, %s223, %s224
      %p228 = pneg %p222
      %p229 = scmp.eq.s32.totalorder %s19, 1
      %p230 = por %p228, %p229
      %p231 = scmp.ne.s32.totalorder %s223, %s226
      %p232 = scmp.eq.s32.totalorder %s19, 0
      %p233 = por %p231, %p232
      %p234 = scmp.ne.s32.totalorder %s223, %s226
      %p235 = scmp.eq.s32.totalorder %s24, 1
      %p236 = por %p234, %p235
      %p237 = scmp.ne.s32.totalorder %s226, %s227
      %p238 = scmp.eq.s32.totalorder %s24, 0
      %p239 = por %p237, %p238
      %p240 = scmp.ne.s32.totalorder %s226, %s227
      %p241 = scmp.eq.s32.totalorder %s25, 1
      %p242 = por %p240, %p241
      %p244 = scmp.ne.s32.totalorder %s227, %s243
      %p245 = scmp.eq.s32.totalorder %s25, 0
      %p246 = por %p244, %p245
      %p247 = scmp.le.s32.totalorder 1, %s19
      %p248 = scmp.lt.s32.totalorder %s19, 3
      %p249 = pnand %p247, %p248
      %p250 = pneg %p249
      // Predicated region
      $region9: #{tpu_custom_call.1} parent=5 // pred_check
        _
      $region10: #{tpu_custom_call.1} parent=5 // pred_check_branch
        %252 = sbr.rel (%p249) target = $region12
      $region11: #{tpu_custom_call.1} parent=5 // pred_region
        %s253 = ssub.s32 %s19, 1
        // Predicated region
        $region13: #{tpu_custom_call.1} parent=11 // pred_check
          %p254 = pneg %p66
        $region14: #{tpu_custom_call.1} parent=11 // pred_check_branch
          %256 = sbr.rel (%p254) target = $region16
        $region15: #{tpu_custom_call.1} parent=11 // pred_region
          _
        $region16: #{tpu_custom_call.1} parent=11 // pred_fallthru
          _
        // Predicated region
        $region17: #{tpu_custom_call.1} parent=11 // pred_check
          %p257 = pneg %p87
        $region18: #{tpu_custom_call.1} parent=11 // pred_check_branch
          %259 = sbr.rel (%p257) target = $region20
        $region19: #{tpu_custom_call.1} parent=11 // pred_region
          _
        $region20: #{tpu_custom_call.1} parent=11 // pred_fallthru
          _
        // Predicated region
        $region21: #{tpu_custom_call.1} parent=11 // pred_check
          %p260 = pneg %p108
        $region22: #{tpu_custom_call.1} parent=11 // pred_check_branch
          %262 = sbr.rel (%p260) target = $region24
        $region23: #{tpu_custom_call.1} parent=11 // pred_region
          %s264 = ssub.s32 768, 768
          %265 = vsyncadd [#allocation7], %s264
          %s266 = sshll.u32 [#allocation6], 4
          %s267 = int_to_ptr.vmem [resolvable:$true] %s266
          %272 = dma.hbm_to_vmem [thread:$0]  %s3, 768, %s267, [#allocation7], 384, 384, 24
        $region24: #{tpu_custom_call.1} parent=11 // pred_fallthru
          _
        // Predicated region
        $region25: #{tpu_custom_call.1} parent=11 // pred_check
          %p273 = pneg %p129
        $region26: #{tpu_custom_call.1} parent=11 // pred_check_branch
          %275 = sbr.rel (%p273) target = $region28
        $region27: #{tpu_custom_call.1} parent=11 // pred_region
          _
        $region28: #{tpu_custom_call.1} parent=11 // pred_fallthru
          _
        // Predicated region
        $region29: #{tpu_custom_call.1} parent=11 // pred_check
          %p276 = pneg %p150
        $region30: #{tpu_custom_call.1} parent=11 // pred_check_branch
          %278 = sbr.rel (%p276) target = $region32
        $region31: #{tpu_custom_call.1} parent=11 // pred_region
          %s280 = ssub.s32 128, 128
          %281 = vsyncadd [#allocation7], %s280
          %s283 = sshll.u32 [#allocation8], 4
          %s284 = int_to_ptr.vmem [resolvable:$true] %s283
          %286 = dma.hbm_to_vmem [thread:$0]  %s5, 128, %s284, [#allocation7]
        $region32: #{tpu_custom_call.1} parent=11 // pred_fallthru
          _
        // Predicated region
        $region33: #{tpu_custom_call.1} parent=11 // pred_check
          %p287 = pneg %p171
        $region34: #{tpu_custom_call.1} parent=11 // pred_check_branch
          %289 = sbr.rel (%p287) target = $region36
        $region35: #{tpu_custom_call.1} parent=11 // pred_region
          _
        $region36: #{tpu_custom_call.1} parent=11 // pred_fallthru
          _
        // Predicated region
        $region37: #{tpu_custom_call.1} parent=11 // pred_check
          %p290 = pneg %p192
        $region38: #{tpu_custom_call.1} parent=11 // pred_check_branch
          %292 = sbr.rel (%p290) target = $region40
        $region39: #{tpu_custom_call.1} parent=11 // pred_region
          _
        $region40: #{tpu_custom_call.1} parent=11 // pred_fallthru
          _
        // Predicated region
        $region41: #{tpu_custom_call.1} parent=11 // pred_check
          %p293 = pneg %p213
        $region42: #{tpu_custom_call.1} parent=11 // pred_check_branch
          %295 = sbr.rel (%p293) target = $region44
        $region43: #{tpu_custom_call.1} parent=11 // pred_region
          _
        $region44: #{tpu_custom_call.1} parent=11 // pred_fallthru
          _
      $region12: #{tpu_custom_call.1} parent=5 // pred_fallthru
        _
      %p296 = scmp.lt.s32.totalorder %s19, 2
      // Predicated region
      $region45: #{tpu_custom_call.1} parent=5 // pred_check
        %p297 = pneg %p296
      $region46: #{tpu_custom_call.1} parent=5 // pred_check_branch
        %299 = sbr.rel (%p297) target = $region48
      $region47: #{tpu_custom_call.1} parent=5 // pred_region
        // Predicated region
        $region49: #{tpu_custom_call.1} parent=47 // pred_check
          %p300 = pneg %p39
        $region50: #{tpu_custom_call.1} parent=47 // pred_check_branch
          %302 = sbr.rel (%p300) target = $region52
        $region51: #{tpu_custom_call.1} parent=47 // pred_region
          %s303 = sand.u32 %s29, 1
          %s304 = scalar_lea.sflag [#allocation5], %s303
          %s305 = sand.u32 %s29, 1
          %s306 = smul.addr %s305, 4
          %s307 = scalar_lea.vmem [#allocation4], %s306
          %s309 = ssub.s32 64, 64
          %310 = vsyncadd %s304, %s309
          %s311 = smul.addr %s19, 64
          %s312 = scalar_lea.hbm %s0, %s311
          %s314 = sshll.u32 %s307, 4
          %s315 = int_to_ptr.vmem [resolvable:$true] %s314
          %317 = dma.hbm_to_vmem [thread:$0]  %s312, 64, %s315, %s304
        $region52: #{tpu_custom_call.1} parent=47 // pred_fallthru
          _
      $region48: #{tpu_custom_call.1} parent=5 // pred_fallthru
        _
      %p318 = scmp.le.s32.totalorder 1, %s19
      %p319 = scmp.lt.s32.totalorder %s19, 3
      %p320 = pnand %p318, %p319
      %p321 = pneg %p320
      // Predicated region
      $region53: #{tpu_custom_call.1} parent=5 // pred_check
        _
      $region54: #{tpu_custom_call.1} parent=5 // pred_check_branch
        %323 = sbr.rel (%p320) target = $region56
      $region55: #{tpu_custom_call.1} parent=5 // pred_region
        %s324 = ssub.s32 %s19, 1
        %s325 = sand.u32 %s32, 1
        %s326 = scalar_lea.sflag [#allocation5], %s325
        %s327 = sand.u32 %s32, 1
        %s328 = smul.addr %s327, 4
        %s329 = scalar_lea.vmem [#allocation4], %s328
        // Predicated region
        $region57: #{tpu_custom_call.1} parent=55 // pred_check
          %p330 = pneg %p45
        $region58: #{tpu_custom_call.1} parent=55 // pred_check_branch
          %332 = sbr.rel (%p330) target = $region60
        $region59: #{tpu_custom_call.1} parent=55 // pred_region
          %333 = dma.done %s326, 64
        $region60: #{tpu_custom_call.1} parent=55 // pred_fallthru
          _
        // Predicated region
        $region61: #{tpu_custom_call.1} parent=55 // pred_check
          %p334 = pneg %p108
        $region62: #{tpu_custom_call.1} parent=55 // pred_check_branch
          %336 = sbr.rel (%p334) target = $region64
        $region63: #{tpu_custom_call.1} parent=55 // pred_region
          %337 = dma.done [#allocation7], 768
        $region64: #{tpu_custom_call.1} parent=55 // pred_fallthru
          _
        // Predicated region
        $region65: #{tpu_custom_call.1} parent=55 // pred_check
          %p338 = pneg %p150
        $region66: #{tpu_custom_call.1} parent=55 // pred_check_branch
          %340 = sbr.rel (%p338) target = $region68
        $region67: #{tpu_custom_call.1} parent=55 // pred_region
          %341 = dma.done [#allocation7], 128
        $region68: #{tpu_custom_call.1} parent=55 // pred_fallthru
          _
        %s342 = sand.u32 %s32, 1
        %s343 = scalar_lea.sflag [#allocation5], %s342
        %s344 = sand.u32 %s32, 1
        %s345 = smul.addr %s344, 4
        %s346 = scalar_lea.vmem [#allocation4], %s345
        %p347 = pneg %p45
        %p348 = pneg %p42
        %p349 = pneg %p66
        %p350 = pneg %p63
        %p351 = pneg %p87
        %p352 = pneg %p84
        %p353 = pneg %p108
        %p354 = pneg %p105
        %p355 = pneg %p129
        %p356 = pneg %p126
        %p357 = pneg %p150
        %p358 = pneg %p147
        %p359 = pneg %p171
        %p360 = pneg %p168
        %p361 = pneg %p192
        %p362 = pneg %p189
        %p363 = pneg %p213
        %p364 = pneg %p210
        %p365 = pneg %p239
        %p366 = pneg %p236
        %p367 = scmp.lt.s32.totalorder %s24, 1
        %s368 = scalar_select %p367, %s24, 1
        %s369 = smul.addr %s368, 2
        %s370 = smul.addr %s369, 4
        %s371 = scalar_lea.vmem %s9, %s370
        %p372 = scmp.lt.s32.totalorder %s24, 1
        %s373 = scalar_select %p372, %s24, 1
        %s374 = smul.addr %s373, 2
        %s375 = smul.addr %s374, 4
        %s376 = scalar_lea.vmem %s9, %s375
        %v377 = vld [vmem:[%s7] sm:$0x1]
        %vm378 = vcmp.gt.f32.partialorder %v377, 0.5
        %379 = vst [vmem:[#allocation2] sm:$0xff] 0.0
        %380 = vst [vmem:[#allocation2 + $0x18] sm:$0xff] 0.0
        %381 = vst [vmem:[#allocation2 + $0x30] sm:$0xff] 0.0
        %382 = vst [vmem:[#allocation2 + $0x48] sm:$0xff] 0.0
        %vm383 = vcmask 1048032
        %384 = vst.msk [vmem:[#allocation2 + $0x8] sm:$0xff] %vm383, 0.0
        %vm385 = vcmask 490496
        %386 = vst.msk [vmem:[#allocation2 + $0x10] sm:$0xff] %vm385, 0.0
        %387 = vst.msk [vmem:[#allocation2 + $0x20] sm:$0xff] %vm383, 0.0
        %388 = vst.msk [vmem:[#allocation2 + $0x28] sm:$0xff] %vm385, 0.0
        %389 = vst.msk [vmem:[#allocation2 + $0x38] sm:$0xff] %vm383, 0.0
        %390 = vst.msk [vmem:[#allocation2 + $0x40] sm:$0xff] %vm385, 0.0
        %391 = vst.msk [vmem:[#allocation2 + $0x50] sm:$0xff] %vm383, 0.0
        %392 = vst.msk [vmem:[#allocation2 + $0x58] sm:$0xff] %vm385, 0.0
        %393 = vst [vmem:[#allocation3] sm:$0xff] 0.0
        %394 = vst [vmem:[#allocation3 + $0x18] sm:$0xff] 0.0
        %395 = vst.msk [vmem:[#allocation3 + $0x8] sm:$0xff] %vm383, 0.0
        %396 = vst.msk [vmem:[#allocation3 + $0x10] sm:$0xff] %vm385, 0.0
        %397 = vst.msk [vmem:[#allocation3 + $0x20] sm:$0xff] %vm383, 0.0
        %398 = vst.msk [vmem:[#allocation3 + $0x28] sm:$0xff] %vm385, 0.0
        %v399 = vld [vmem:[%s1] sm:$0xff]
        %v400 = vld [vmem:[%s1 + $0x8] sm:$0xff]
        %v401 = vld [vmem:[%s1 + $0x10] sm:$0xff]
        %v402 = vld [vmem:[%s1 + $0x18] sm:$0xff]
        %v403 = vld [vmem:[%s329] sm:$0xf]
        %408 = vrot.lane.b32.xlu0 %v399, 124
        %v409 = vpop.permute.xlu0 %408
        %410 = vrot.lane.b32.xlu0 %v400, 124
        %v411 = vpop.permute.xlu0 %410
        %412 = vrot.lane.b32.xlu0 %v401, 124
        %v413 = vpop.permute.xlu0 %412
        %414 = vrot.lane.b32.xlu0 %v402, 124
        %v415 = vpop.permute.xlu0 %414
        %417 = vrot.lane.b32.xlu0 %v403, 127
        %v418 = vpop.permute.xlu0 %417
        %vm419 = vcmask 31744
        %v420 = vsel %vm419, %v409, 0
        %v422 = vsel %vm419, %v411, 0
        %v424 = vsel %vm419, %v413, 0
        %v426 = vsel %vm419, %v415, 0
        %vm428 = vcmask 1043456
        %v429 = vsel %vm428, %v418, 0
        %431 = vmatprep.subr.mxu0 0.0
        %432 = vmatpush1.msra.mxu0 %v429
        %433 = vmatprep.subr.mxu0 0.0
        %434 = vmatpush1.msra.mxu0 0.0
        %435 = vmatprep.subr.mxu0 0.0
        %436 = vmatpush1.msra.mxu0 0.0
        %437 = vmatprep.subr.mxu0 0.0
        %438 = vmatpush1.msra.mxu0 0.0
        %439 = vmatprep.subr.mxu0 0.0
        %440 = vmatpush1.msra.mxu0 0.0
        %441 = vmatprep.subr.mxu0 0.0
        %442 = vmatpush1.msra.mxu0 0.0
        %443 = vmatprep.subr.mxu0 0.0
        %444 = vmatpush1.msra.mxu0 0.0
        %445 = vmatprep.subr.mxu0 0.0
        %446 = vmatpush1.msra.mxu0 0.0
        %447 = vmatprep.subr.mxu0 0.0
        %448 = vmatpush1.msra.mxu0 0.0
        %449 = vmatprep.subr.mxu0 0.0
        %450 = vmatpush1.msra.mxu0 0.0
        %451 = vmatprep.subr.mxu0 0.0
        %452 = vmatpush1.msra.mxu0 0.0
        %453 = vmatprep.subr.mxu0 0.0
        %454 = vmatpush1.msra.mxu0 0.0
        %455 = vmatprep.subr.mxu0 0.0
        %456 = vmatpush1.msra.mxu0 0.0
        %457 = vmatprep.subr.mxu0 0.0
        %458 = vmatpush1.msra.mxu0 0.0
        %459 = vmatprep.subr.mxu0 0.0
        %460 = vmatpush1.msra.mxu0 0.0
        %461 = vmatprep.subr.mxu0 0.0
        %462 = vmatpush1.msra.mxu0 0.0
        %463 = vmatprep.subr.mxu0 0.0
        %464 = vmatpush1.msra.mxu0 0.0
        %465 = vmatprep.subr.mxu0 0.0
        %466 = vmatpush1.msra.mxu0 0.0
        %467 = vmatprep.subr.mxu0 0.0
        %468 = vmatpush1.msra.mxu0 0.0
        %469 = vmatprep.subr.mxu0 0.0
        %470 = vmatpush1.msra.mxu0 0.0
        %471 = vmatprep.subr.mxu0 0.0
        %472 = vmatpush1.msra.mxu0 0.0
        %473 = vmatprep.subr.mxu0 0.0
        %474 = vmatpush1.msra.mxu0 0.0
        %475 = vmatprep.subr.mxu0 0.0
        %476 = vmatpush1.msra.mxu0 0.0
        %477 = vmatprep.subr.mxu0 0.0
        %478 = vmatpush1.msra.mxu0 0.0
        %479 = vmatprep.subr.mxu0 0.0
        %480 = vmatpush1.msra.mxu0 0.0
        %481 = vmatprep.subr.mxu0 0.0
        %482 = vmatpush1.msra.mxu0 0.0
        %483 = vmatprep.subr.mxu0 0.0
        %484 = vmatpush1.msra.mxu0 0.0
        %485 = vmatprep.subr.mxu0 0.0
        %486 = vmatpush1.msra.mxu0 0.0
        %487 = vmatprep.subr.mxu0 0.0
        %488 = vmatpush1.msra.mxu0 0.0
        %489 = vmatprep.subr.mxu0 0.0
        %490 = vmatpush1.msra.mxu0 0.0
        %491 = vmatprep.subr.mxu0 0.0
        %492 = vmatpush1.msra.mxu0 0.0
        %493 = vmatprep.subr.mxu0 0.0
        %494 = vmatpush1.msra.mxu0 0.0
        %495 = vmatprep.mubr.f32.mxu0 0.0
        %496 = vmatmul.mubr.f32.gmra.mrb[0].mxu0 %v420
        %v497 = vpop.f32.mrb[0].mxu0
        %v498 = vadd.f32 0.0, %v497
        %v499 = vpop.f32.mrb[0].mxu0
        %500 = vmatprep.mubr.f32.mxu0 0.0
        %501 = vmatmul.mubr.f32.gmra.mrb[0].mxu0 %v422
        %v502 = vpop.f32.mrb[0].mxu0
        %v503 = vadd.f32 0.0, %v502
        %v504 = vpop.f32.mrb[0].mxu0
        %505 = vmatprep.mubr.f32.mxu0 0.0
        %506 = vmatmul.mubr.f32.gmra.mrb[0].mxu0 %v424
        %v507 = vpop.f32.mrb[0].mxu0
        %v508 = vadd.f32 0.0, %v507
        %v509 = vpop.f32.mrb[0].mxu0
        %510 = vmatprep.mubr.f32.mxu0 0.0
        %511 = vmatmul.mubr.f32.gmra.mrb[0].mxu0 %v426
        %v512 = vpop.f32.mrb[0].mxu0
        %v513 = vadd.f32 0.0, %v512
        %v514 = vpop.f32.mrb[0].mxu0
        %515 = vdwg.mxu0
        %v516 = vsel %vm419, %v399, 0
        %v518 = vsel %vm419, %v400, 0
        %v520 = vsel %vm419, %v401, 0
        %v522 = vsel %vm419, %v402, 0
        %v524 = vsel %vm428, %v403, 0
        %526 = vmatprep.subr.mxu0 0.0
        %527 = vmatpush1.msra.mxu0 %v524
        %528 = vmatprep.subr.mxu0 0.0
        %529 = vmatpush1.msra.mxu0 0.0
        %530 = vmatprep.subr.mxu0 0.0
        %531 = vmatpush1.msra.mxu0 0.0
        %532 = vmatprep.subr.mxu0 0.0
        %533 = vmatpush1.msra.mxu0 0.0
        %534 = vmatprep.subr.mxu0 0.0
        %535 = vmatpush1.msra.mxu0 0.0
        %536 = vmatprep.subr.mxu0 0.0
        %537 = vmatpush1.msra.mxu0 0.0
        %538 = vmatprep.subr.mxu0 0.0
        %539 = vmatpush1.msra.mxu0 0.0
        %540 = vmatprep.subr.mxu0 0.0
        %541 = vmatpush1.msra.mxu0 0.0
        %542 = vmatprep.subr.mxu0 0.0
        %543 = vmatpush1.msra.mxu0 0.0
        %544 = vmatprep.subr.mxu0 0.0
        %545 = vmatpush1.msra.mxu0 0.0
        %546 = vmatprep.subr.mxu0 0.0
        %547 = vmatpush1.msra.mxu0 0.0
        %548 = vmatprep.subr.mxu0 0.0
        %549 = vmatpush1.msra.mxu0 0.0
        %550 = vmatprep.subr.mxu0 0.0
        %551 = vmatpush1.msra.mxu0 0.0
        %552 = vmatprep.subr.mxu0 0.0
        %553 = vmatpush1.msra.mxu0 0.0
        %554 = vmatprep.subr.mxu0 0.0
        %555 = vmatpush1.msra.mxu0 0.0
        %556 = vmatprep.subr.mxu0 0.0
        %557 = vmatpush1.msra.mxu0 0.0
        %558 = vmatprep.subr.mxu0 0.0
        %559 = vmatpush1.msra.mxu0 0.0
        %560 = vmatprep.subr.mxu0 0.0
        %561 = vmatpush1.msra.mxu0 0.0
        %562 = vmatprep.subr.mxu0 0.0
        %563 = vmatpush1.msra.mxu0 0.0
        %564 = vmatprep.subr.mxu0 0.0
        %565 = vmatpush1.msra.mxu0 0.0
        %566 = vmatprep.subr.mxu0 0.0
        %567 = vmatpush1.msra.mxu0 0.0
        %568 = vmatprep.subr.mxu0 0.0
        %569 = vmatpush1.msra.mxu0 0.0
        %570 = vmatprep.subr.mxu0 0.0
        %571 = vmatpush1.msra.mxu0 0.0
        %572 = vmatprep.subr.mxu0 0.0
        %573 = vmatpush1.msra.mxu0 0.0
        %574 = vmatprep.subr.mxu0 0.0
        %575 = vmatpush1.msra.mxu0 0.0
        %576 = vmatprep.subr.mxu0 0.0
        %577 = vmatpush1.msra.mxu0 0.0
        %578 = vmatprep.subr.mxu0 0.0
        %579 = vmatpush1.msra.mxu0 0.0
        %580 = vmatprep.subr.mxu0 0.0
        %581 = vmatpush1.msra.mxu0 0.0
        %582 = vmatprep.subr.mxu0 0.0
        %583 = vmatpush1.msra.mxu0 0.0
        %584 = vmatprep.subr.mxu0 0.0
        %585 = vmatpush1.msra.mxu0 0.0
        %586 = vmatprep.subr.mxu0 0.0
        %587 = vmatpush1.msra.mxu0 0.0
        %588 = vmatprep.subr.mxu0 0.0
        %589 = vmatpush1.msra.mxu0 0.0
        %590 = vmatprep.mubr.f32.mxu0 0.0
        %591 = vmatmul.mubr.f32.gmra.mrb[0].mxu0 %v516
        %v592 = vpop.f32.mrb[0].mxu0
        %v593 = vadd.f32 %v498, %v592
        %v594 = vpop.f32.mrb[0].mxu0
        %595 = vmatprep.mubr.f32.mxu0 0.0
        %596 = vmatmul.mubr.f32.gmra.mrb[0].mxu0 %v518
        %v597 = vpop.f32.mrb[0].mxu0
        %v598 = vadd.f32 %v503, %v597
        %v599 = vpop.f32.mrb[0].mxu0
        %600 = vmatprep.mubr.f32.mxu0 0.0
        %601 = vmatmul.mubr.f32.gmra.mrb[0].mxu0 %v520
        %v602 = vpop.f32.mrb[0].mxu0
        %v603 = vadd.f32 %v508, %v602
        %v604 = vpop.f32.mrb[0].mxu0
        %605 = vmatprep.mubr.f32.mxu0 0.0
        %606 = vmatmul.mubr.f32.gmra.mrb[0].mxu0 %v522
        %v607 = vpop.f32.mrb[0].mxu0
        %v608 = vadd.f32 %v513, %v607
        %v609 = vpop.f32.mrb[0].mxu0
        %610 = vdwg.mxu0
        %611 = vrot.lane.b32.xlu0 %v399, 120
        %v612 = vpop.permute.xlu0 %611
        %613 = vrot.lane.b32.xlu0 %v400, 120
        %v614 = vpop.permute.xlu0 %613
        %615 = vrot.lane.b32.xlu0 %v401, 120
        %v616 = vpop.permute.xlu0 %615
        %617 = vrot.lane.b32.xlu0 %v402, 120
        %v618 = vpop.permute.xlu0 %617
        %619 = vrot.lane.b32.xlu0 %v403, 126
        %v620 = vpop.permute.xlu0 %619
        %v621 = vsel %vm419, %v612, 0
        %v623 = vsel %vm419, %v614, 0
        %v625 = vsel %vm419, %v616, 0
        %v627 = vsel %vm419, %v618, 0
        %v629 = vsel %vm428, %v620, 0
        %631 = vmatprep.subr.mxu0 0.0
        %632 = vmatpush1.msra.mxu0 %v629
        %633 = vmatprep.subr.mxu0 0.0
        %634 = vmatpush1.msra.mxu0 0.0
        %635 = vmatprep.subr.mxu0 0.0
        %636 = vmatpush1.msra.mxu0 0.0
        %637 = vmatprep.subr.mxu0 0.0
        %638 = vmatpush1.msra.mxu0 0.0
        %639 = vmatprep.subr.mxu0 0.0
        %640 = vmatpush1.msra.mxu0 0.0
        %641 = vmatprep.subr.mxu0 0.0
        %642 = vmatpush1.msra.mxu0 0.0
        %643 = vmatprep.subr.mxu0 0.0
        %644 = vmatpush1.msra.mxu0 0.0
        %645 = vmatprep.subr.mxu0 0.0
        %646 = vmatpush1.msra.mxu0 0.0
        %647 = vmatprep.subr.mxu0 0.0
        %648 = vmatpush1.msra.mxu0 0.0
        %649 = vmatprep.subr.mxu0 0.0
        %650 = vmatpush1.msra.mxu0 0.0
        %651 = vmatprep.subr.mxu0 0.0
        %652 = vmatpush1.msra.mxu0 0.0
        %653 = vmatprep.subr.mxu0 0.0
        %654 = vmatpush1.msra.mxu0 0.0
        %655 = vmatprep.subr.mxu0 0.0
        %656 = vmatpush1.msra.mxu0 0.0
        %657 = vmatprep.subr.mxu0 0.0
        %658 = vmatpush1.msra.mxu0 0.0
        %659 = vmatprep.subr.mxu0 0.0
        %660 = vmatpush1.msra.mxu0 0.0
        %661 = vmatprep.subr.mxu0 0.0
        %662 = vmatpush1.msra.mxu0 0.0
        %663 = vmatprep.subr.mxu0 0.0
        %664 = vmatpush1.msra.mxu0 0.0
        %665 = vmatprep.subr.mxu0 0.0
        %666 = vmatpush1.msra.mxu0 0.0
        %667 = vmatprep.subr.mxu0 0.0
        %668 = vmatpush1.msra.mxu0 0.0
        %669 = vmatprep.subr.mxu0 0.0
        %670 = vmatpush1.msra.mxu0 0.0
        %671 = vmatprep.subr.mxu0 0.0
        %672 = vmatpush1.msra.mxu0 0.0
        %673 = vmatprep.subr.mxu0 0.0
        %674 = vmatpush1.msra.mxu0 0.0
        %675 = vmatprep.subr.mxu0 0.0
        %676 = vmatpush1.msra.mxu0 0.0
        %677 = vmatprep.subr.mxu0 0.0
        %678 = vmatpush1.msra.mxu0 0.0
        %679 = vmatprep.subr.mxu0 0.0
        %680 = vmatpush1.msra.mxu0 0.0
        %681 = vmatprep.subr.mxu0 0.0
        %682 = vmatpush1.msra.mxu0 0.0
        %683 = vmatprep.subr.mxu0 0.0
        %684 = vmatpush1.msra.mxu0 0.0
        %685 = vmatprep.subr.mxu0 0.0
        %686 = vmatpush1.msra.mxu0 0.0
        %687 = vmatprep.subr.mxu0 0.0
        %688 = vmatpush1.msra.mxu0 0.0
        %689 = vmatprep.subr.mxu0 0.0
        %690 = vmatpush1.msra.mxu0 0.0
        %691 = vmatprep.subr.mxu0 0.0
        %692 = vmatpush1.msra.mxu0 0.0
        %693 = vmatprep.subr.mxu0 0.0
        %694 = vmatpush1.msra.mxu0 0.0
        %695 = vmatprep.mubr.f32.mxu0 0.0
        %696 = vmatmul.mubr.f32.gmra.mrb[0].mxu0 %v621
        %v697 = vpop.f32.mrb[0].mxu0
        %v698 = vadd.f32 0.0, %v697
        %v699 = vpop.f32.mrb[0].mxu0
        %700 = vmatprep.mubr.f32.mxu0 0.0
        %701 = vmatmul.mubr.f32.gmra.mrb[0].mxu0 %v623
        %v702 = vpop.f32.mrb[0].mxu0
        %v703 = vadd.f32 0.0, %v702
        %v704 = vpop.f32.mrb[0].mxu0
        %705 = vmatprep.mubr.f32.mxu0 0.0
        %706 = vmatmul.mubr.f32.gmra.mrb[0].mxu0 %v625
        %v707 = vpop.f32.mrb[0].mxu0
        %v708 = vadd.f32 0.0, %v707
        %v709 = vpop.f32.mrb[0].mxu0
        %710 = vmatprep.mubr.f32.mxu0 0.0
        %711 = vmatmul.mubr.f32.gmra.mrb[0].mxu0 %v627
        %v712 = vpop.f32.mrb[0].mxu0
        %v713 = vadd.f32 0.0, %v712
        %v714 = vpop.f32.mrb[0].mxu0
        %715 = vdwg.mxu0
        %v716 = vadd.f32 %v593, %v698
        %v717 = vadd.f32 %v598, %v703
        %v718 = vadd.f32 %v603, %v708
        %v719 = vadd.f32 %v608, %v713
        %v720 = vld [vmem:[%s2] sm:$0xff]
        %v721 = vld [vmem:[%s2 + $0x8] sm:$0xff]
        %v722 = vld [vmem:[%s2 + $0x10] sm:$0xff]
        %v723 = vld [vmem:[%s2 + $0x18] sm:$0xff]
        %725 = vset.pattern.permute.xlu0 0
        %726 = vperm.xlu0 %725, %v720
        %v727 = vpop.permute.xlu0 %726
        %730 = vset.pattern.permute.xlu0 0
        %731 = vperm.xlu0 %730, %v721
        %v732 = vpop.permute.xlu0 %731
        %735 = vset.pattern.permute.xlu0 0
        %736 = vperm.xlu0 %735, %v722
        %v737 = vpop.permute.xlu0 %736
        %740 = vset.pattern.permute.xlu0 0
        %741 = vperm.xlu0 %740, %v723
        %v742 = vpop.permute.xlu0 %741
        %v744 = vadd.f32 %v716, %v727
        %v745 = vadd.f32 %v717, %v732
        %v746 = vadd.f32 %v718, %v737
        %v747 = vadd.f32 %v719, %v742
        %v748 = vsel %vm378, 1, 0
        %v749 = vlaneseq
        %v750 = vshrl.u32 %v749, 7
        %v751 = vsub.s32 0, %v750
        %v752 = vrot.slane %v748, %v751
        %vm753 = vcmp.eq.s32.totalorder %v752, 1
        %v754 = vsel %vm753, %v744, 0.0
        %v755 = vsel %vm753, %v745, 0.0
        %v756 = vsel %vm753, %v746, 0.0
        %v757 = vsel %vm753, %v747, 0.0
        %758 = vst.msk [vmem:[#allocation2 + $0x8] sm:$0xff] %vm385, %v754
        %759 = vst.msk [vmem:[#allocation2 + $0x20] sm:$0xff] %vm385, %v755
        %760 = vst.msk [vmem:[#allocation2 + $0x38] sm:$0xff] %vm385, %v756
        %761 = vst.msk [vmem:[#allocation2 + $0x50] sm:$0xff] %vm385, %v757
        %v762 = vld [vmem:[#allocation6] sm:$0xff]
        %v763 = vld [vmem:[#allocation6 + $0x18] sm:$0xff]
        %v764 = vld [vmem:[#allocation2] sm:$0xff]
        %v765 = vld [vmem:[#allocation2 + $0x8] sm:$0xff]
        %v766 = vld [vmem:[#allocation2 + $0x18] sm:$0xff]
        %v767 = vld [vmem:[#allocation2 + $0x20] sm:$0xff]
        %v768 = vld [vmem:[#allocation2 + $0x30] sm:$0xff]
        %v769 = vld [vmem:[#allocation2 + $0x38] sm:$0xff]
        %v770 = vld [vmem:[#allocation2 + $0x48] sm:$0xff]
        %v771 = vld [vmem:[#allocation2 + $0x50] sm:$0xff]
        %774 = vrot.lane.b32.xlu0 %v762, 96
        %v775 = vpop.permute.xlu0 %774
        %776 = vrot.lane.b32.xlu0 %v763, 96
        %v777 = vpop.permute.xlu0 %776
        %786 = vrot.lane.b32.xlu0 %v764, 10
        %v787 = vpop.permute.xlu0 %786
        %788 = vrot.lane.b32.xlu0 %v765, 10
        %v789 = vpop.permute.xlu0 %788
        %790 = vrot.lane.b32.xlu0 %v766, 10
        %v791 = vpop.permute.xlu0 %790
        %792 = vrot.lane.b32.xlu0 %v767, 10
        %v793 = vpop.permute.xlu0 %792
        %794 = vrot.lane.b32.xlu0 %v768, 10
        %v795 = vpop.permute.xlu0 %794
        %796 = vrot.lane.b32.xlu0 %v769, 10
        %v797 = vpop.permute.xlu0 %796
        %798 = vrot.lane.b32.xlu0 %v770, 10
        %v799 = vpop.permute.xlu0 %798
        %800 = vrot.lane.b32.xlu0 %v771, 10
        %v801 = vpop.permute.xlu0 %800
        %vm802 = vcmask 80896
        %v803 = vsel %vm802, %v787, %v789
        %v804 = vsel %vm802, %v791, %v793
        %v805 = vsel %vm802, %v795, %v797
        %v806 = vsel %vm802, %v799, %v801
        %vm811 = vcmask 261120
        %v812 = vsel %vm811, %v775, 0
        %v814 = vsel %vm811, %v777, 0
        %816 = vmatprep.subr.mxu0 0.0
        %817 = vmatpush1.msra.mxu0 %v803
        %818 = vmatprep.subr.mxu0 0.0
        %819 = vmatpush1.msra.mxu0 %v804
        %820 = vmatprep.subr.mxu0 0.0
        %821 = vmatpush1.msra.mxu0 %v805
        %822 = vmatprep.subr.mxu0 0.0
        %823 = vmatpush1.msra.mxu0 %v806
        %824 = vmatprep.subr.mxu0 0.0
        %825 = vmatpush1.msra.mxu0 0.0
        %826 = vmatprep.subr.mxu0 0.0
        %827 = vmatpush1.msra.mxu0 0.0
        %828 = vmatprep.subr.mxu0 0.0
        %829 = vmatpush1.msra.mxu0 0.0
        %830 = vmatprep.subr.mxu0 0.0
        %831 = vmatpush1.msra.mxu0 0.0
        %832 = vmatprep.subr.mxu0 0.0
        %833 = vmatpush1.msra.mxu0 0.0
        %834 = vmatprep.subr.mxu0 0.0
        %835 = vmatpush1.msra.mxu0 0.0
        %836 = vmatprep.subr.mxu0 0.0
        %837 = vmatpush1.msra.mxu0 0.0
        %838 = vmatprep.subr.mxu0 0.0
        %839 = vmatpush1.msra.mxu0 0.0
        %840 = vmatprep.subr.mxu0 0.0
        %841 = vmatpush1.msra.mxu0 0.0
        %842 = vmatprep.subr.mxu0 0.0
        %843 = vmatpush1.msra.mxu0 0.0
        %844 = vmatprep.subr.mxu0 0.0
        %845 = vmatpush1.msra.mxu0 0.0
        %846 = vmatprep.subr.mxu0 0.0
        %847 = vmatpush1.msra.mxu0 0.0
        %848 = vmatprep.subr.mxu0 0.0
        %849 = vmatpush1.msra.mxu0 0.0
        %850 = vmatprep.subr.mxu0 0.0
        %851 = vmatpush1.msra.mxu0 0.0
        %852 = vmatprep.subr.mxu0 0.0
        %853 = vmatpush1.msra.mxu0 0.0
        %854 = vmatprep.subr.mxu0 0.0
        %855 = vmatpush1.msra.mxu0 0.0
        %856 = vmatprep.subr.mxu0 0.0
        %857 = vmatpush1.msra.mxu0 0.0
        %858 = vmatprep.subr.mxu0 0.0
        %859 = vmatpush1.msra.mxu0 0.0
        %860 = vmatprep.subr.mxu0 0.0
        %861 = vmatpush1.msra.mxu0 0.0
        %862 = vmatprep.subr.mxu0 0.0
        %863 = vmatpush1.msra.mxu0 0.0
        %864 = vmatprep.subr.mxu0 0.0
        %865 = vmatpush1.msra.mxu0 0.0
        %866 = vmatprep.subr.mxu0 0.0
        %867 = vmatpush1.msra.mxu0 0.0
        %868 = vmatprep.subr.mxu0 0.0
        %869 = vmatpush1.msra.mxu0 0.0
        %870 = vmatprep.subr.mxu0 0.0
        %871 = vmatpush1.msra.mxu0 0.0
        %872 = vmatprep.subr.mxu0 0.0
        %873 = vmatpush1.msra.mxu0 0.0
        %874 = vmatprep.subr.mxu0 0.0
        %875 = vmatpush1.msra.mxu0 0.0
        %876 = vmatprep.subr.mxu0 0.0
        %877 = vmatpush1.msra.mxu0 0.0
        %878 = vmatprep.subr.mxu0 0.0
        %879 = vmatpush1.msra.mxu0 0.0
        %880 = vmatprep.mubr.f32.mxu0 0.0
        %881 = vmatmul.mubr.f32.gmra.mrb[0].mxu0 %v812
        %v882 = vpop.f32.mrb[0].mxu0
        %v883 = vadd.f32 0.0, %v882
        %v884 = vpop.f32.mrb[0].mxu0
        %885 = vmatprep.mubr.f32.mxu0 0.0
        %886 = vmatmul.mubr.f32.gmra.mrb[0].mxu0 %v814
        %v887 = vpop.f32.mrb[0].mxu0
        %v888 = vadd.f32 0.0, %v887
        %v889 = vpop.f32.mrb[0].mxu0
        %890 = vdwg.mxu0
        %891 = vrot.lane.b32.xlu0 %v764, 11
        %v892 = vpop.permute.xlu0 %891
        %893 = vrot.lane.b32.xlu0 %v765, 11
        %v894 = vpop.permute.xlu0 %893
        %895 = vrot.lane.b32.xlu0 %v766, 11
        %v896 = vpop.permute.xlu0 %895
        %897 = vrot.lane.b32.xlu0 %v767, 11
        %v898 = vpop.permute.xlu0 %897
        %899 = vrot.lane.b32.xlu0 %v768, 11
        %v900 = vpop.permute.xlu0 %899
        %901 = vrot.lane.b32.xlu0 %v769, 11
        %v902 = vpop.permute.xlu0 %901
        %903 = vrot.lane.b32.xlu0 %v770, 11
        %v904 = vpop.permute.xlu0 %903
        %905 = vrot.lane.b32.xlu0 %v771, 11
        %v906 = vpop.permute.xlu0 %905
        %vm907 = vcmask 89088
        %v908 = vsel %vm907, %v892, %v894
        %v909 = vsel %vm907, %v896, %v898
        %v910 = vsel %vm907, %v900, %v902
        %v911 = vsel %vm907, %v904, %v906
        %v916 = vsel %vm811, %v762, 0
        %v918 = vsel %vm811, %v763, 0
        %920 = vmatprep.subr.mxu0 0.0
        %921 = vmatpush1.msra.mxu0 %v908
        %922 = vmatprep.subr.mxu0 0.0
        %923 = vmatpush1.msra.mxu0 %v909
        %924 = vmatprep.subr.mxu0 0.0
        %925 = vmatpush1.msra.mxu0 %v910
        %926 = vmatprep.subr.mxu0 0.0
        %927 = vmatpush1.msra.mxu0 %v911
        %928 = vmatprep.subr.mxu0 0.0
        %929 = vmatpush1.msra.mxu0 0.0
        %930 = vmatprep.subr.mxu0 0.0
        %931 = vmatpush1.msra.mxu0 0.0
        %932 = vmatprep.subr.mxu0 0.0
        %933 = vmatpush1.msra.mxu0 0.0
        %934 = vmatprep.subr.mxu0 0.0
        %935 = vmatpush1.msra.mxu0 0.0
        %936 = vmatprep.subr.mxu0 0.0
        %937 = vmatpush1.msra.mxu0 0.0
        %938 = vmatprep.subr.mxu0 0.0
        %939 = vmatpush1.msra.mxu0 0.0
        %940 = vmatprep.subr.mxu0 0.0
        %941 = vmatpush1.msra.mxu0 0.0
        %942 = vmatprep.subr.mxu0 0.0
        %943 = vmatpush1.msra.mxu0 0.0
        %944 = vmatprep.subr.mxu0 0.0
        %945 = vmatpush1.msra.mxu0 0.0
        %946 = vmatprep.subr.mxu0 0.0
        %947 = vmatpush1.msra.mxu0 0.0
        %948 = vmatprep.subr.mxu0 0.0
        %949 = vmatpush1.msra.mxu0 0.0
        %950 = vmatprep.subr.mxu0 0.0
        %951 = vmatpush1.msra.mxu0 0.0
        %952 = vmatprep.subr.mxu0 0.0
        %953 = vmatpush1.msra.mxu0 0.0
        %954 = vmatprep.subr.mxu0 0.0
        %955 = vmatpush1.msra.mxu0 0.0
        %956 = vmatprep.subr.mxu0 0.0
        %957 = vmatpush1.msra.mxu0 0.0
        %958 = vmatprep.subr.mxu0 0.0
        %959 = vmatpush1.msra.mxu0 0.0
        %960 = vmatprep.subr.mxu0 0.0
        %961 = vmatpush1.msra.mxu0 0.0
        %962 = vmatprep.subr.mxu0 0.0
        %963 = vmatpush1.msra.mxu0 0.0
        %964 = vmatprep.subr.mxu0 0.0
        %965 = vmatpush1.msra.mxu0 0.0
        %966 = vmatprep.subr.mxu0 0.0
        %967 = vmatpush1.msra.mxu0 0.0
        %968 = vmatprep.subr.mxu0 0.0
        %969 = vmatpush1.msra.mxu0 0.0
        %970 = vmatprep.subr.mxu0 0.0
        %971 = vmatpush1.msra.mxu0 0.0
        %972 = vmatprep.subr.mxu0 0.0
        %973 = vmatpush1.msra.mxu0 0.0
        %974 = vmatprep.subr.mxu0 0.0
        %975 = vmatpush1.msra.mxu0 0.0
        %976 = vmatprep.subr.mxu0 0.0
        %977 = vmatpush1.msra.mxu0 0.0
        %978 = vmatprep.subr.mxu0 0.0
        %979 = vmatpush1.msra.mxu0 0.0
        %980 = vmatprep.subr.mxu0 0.0
        %981 = vmatpush1.msra.mxu0 0.0
        %982 = vmatprep.subr.mxu0 0.0
        %983 = vmatpush1.msra.mxu0 0.0
        %984 = vmatprep.mubr.f32.mxu0 0.0
        %985 = vmatmul.mubr.f32.gmra.mrb[0].mxu0 %v916
        %v986 = vpop.f32.mrb[0].mxu0
        %v987 = vadd.f32 %v883, %v986
        %v988 = vpop.f32.mrb[0].mxu0
        %989 = vmatprep.mubr.f32.mxu0 0.0
        %990 = vmatmul.mubr.f32.gmra.mrb[0].mxu0 %v918
        %v991 = vpop.f32.mrb[0].mxu0
        %v992 = vadd.f32 %v888, %v991
        %v993 = vpop.f32.mrb[0].mxu0
        %994 = vdwg.mxu0
        %995 = vrot.lane.b32.xlu0 %v762, 64
        %v996 = vpop.permute.xlu0 %995
        %997 = vrot.lane.b32.xlu0 %v763, 64
        %v998 = vpop.permute.xlu0 %997
        %999 = vrot.lane.b32.xlu0 %v764, 9
        %v1000 = vpop.permute.xlu0 %999
        %1001 = vrot.lane.b32.xlu0 %v765, 9
        %v1002 = vpop.permute.xlu0 %1001
        %1003 = vrot.lane.b32.xlu0 %v766, 9
        %v1004 = vpop.permute.xlu0 %1003
        %1005 = vrot.lane.b32.xlu0 %v767, 9
        %v1006 = vpop.permute.xlu0 %1005
        %1007 = vrot.lane.b32.xlu0 %v768, 9
        %v1008 = vpop.permute.xlu0 %1007
        %1009 = vrot.lane.b32.xlu0 %v769, 9
        %v1010 = vpop.permute.xlu0 %1009
        %1011 = vrot.lane.b32.xlu0 %v770, 9
        %v1012 = vpop.permute.xlu0 %1011
        %1013 = vrot.lane.b32.xlu0 %v771, 9
        %v1014 = vpop.permute.xlu0 %1013
        %vm1015 = vcmask 72704
        %v1016 = vsel %vm1015, %v1000, %v1002
        %v1017 = vsel %vm1015, %v1004, %v1006
        %v1018 = vsel %vm1015, %v1008, %v1010
        %v1019 = vsel %vm1015, %v1012, %v1014
        %v1024 = vsel %vm811, %v996, 0
        %v1026 = vsel %vm811, %v998, 0
        %1028 = vmatprep.subr.mxu0 0.0
        %1029 = vmatpush1.msra.mxu0 %v1016
        %1030 = vmatprep.subr.mxu0 0.0
        %1031 = vmatpush1.msra.mxu0 %v1017
        %1032 = vmatprep.subr.mxu0 0.0
        %1033 = vmatpush1.msra.mxu0 %v1018
        %1034 = vmatprep.subr.mxu0 0.0
        %1035 = vmatpush1.msra.mxu0 %v1019
        %1036 = vmatprep.subr.mxu0 0.0
        %1037 = vmatpush1.msra.mxu0 0.0
        %1038 = vmatprep.subr.mxu0 0.0
        %1039 = vmatpush1.msra.mxu0 0.0
        %1040 = vmatprep.subr.mxu0 0.0
        %1041 = vmatpush1.msra.mxu0 0.0
        %1042 = vmatprep.subr.mxu0 0.0
        %1043 = vmatpush1.msra.mxu0 0.0
        %1044 = vmatprep.subr.mxu0 0.0
        %1045 = vmatpush1.msra.mxu0 0.0
        %1046 = vmatprep.subr.mxu0 0.0
        %1047 = vmatpush1.msra.mxu0 0.0
        %1048 = vmatprep.subr.mxu0 0.0
        %1049 = vmatpush1.msra.mxu0 0.0
        %1050 = vmatprep.subr.mxu0 0.0
        %1051 = vmatpush1.msra.mxu0 0.0
        %1052 = vmatprep.subr.mxu0 0.0
        %1053 = vmatpush1.msra.mxu0 0.0
        %1054 = vmatprep.subr.mxu0 0.0
        %1055 = vmatpush1.msra.mxu0 0.0
        %1056 = vmatprep.subr.mxu0 0.0
        %1057 = vmatpush1.msra.mxu0 0.0
        %1058 = vmatprep.subr.mxu0 0.0
        %1059 = vmatpush1.msra.mxu0 0.0
        %1060 = vmatprep.subr.mxu0 0.0
        %1061 = vmatpush1.msra.mxu0 0.0
        %1062 = vmatprep.subr.mxu0 0.0
        %1063 = vmatpush1.msra.mxu0 0.0
        %1064 = vmatprep.subr.mxu0 0.0
        %1065 = vmatpush1.msra.mxu0 0.0
        %1066 = vmatprep.subr.mxu0 0.0
        %1067 = vmatpush1.msra.mxu0 0.0
        %1068 = vmatprep.subr.mxu0 0.0
        %1069 = vmatpush1.msra.mxu0 0.0
        %1070 = vmatprep.subr.mxu0 0.0
        %1071 = vmatpush1.msra.mxu0 0.0
        %1072 = vmatprep.subr.mxu0 0.0
        %1073 = vmatpush1.msra.mxu0 0.0
        %1074 = vmatprep.subr.mxu0 0.0
        %1075 = vmatpush1.msra.mxu0 0.0
        %1076 = vmatprep.subr.mxu0 0.0
        %1077 = vmatpush1.msra.mxu0 0.0
        %1078 = vmatprep.subr.mxu0 0.0
        %1079 = vmatpush1.msra.mxu0 0.0
        %1080 = vmatprep.subr.mxu0 0.0
        %1081 = vmatpush1.msra.mxu0 0.0
        %1082 = vmatprep.subr.mxu0 0.0
        %1083 = vmatpush1.msra.mxu0 0.0
        %1084 = vmatprep.subr.mxu0 0.0
        %1085 = vmatpush1.msra.mxu0 0.0
        %1086 = vmatprep.subr.mxu0 0.0
        %1087 = vmatpush1.msra.mxu0 0.0
        %1088 = vmatprep.subr.mxu0 0.0
        %1089 = vmatpush1.msra.mxu0 0.0
        %1090 = vmatprep.subr.mxu0 0.0
        %1091 = vmatpush1.msra.mxu0 0.0
        %1092 = vmatprep.mubr.f32.mxu0 0.0
        %1093 = vmatmul.mubr.f32.gmra.mrb[0].mxu0 %v1024
        %v1094 = vpop.f32.mrb[0].mxu0
        %v1095 = vadd.f32 0.0, %v1094
        %v1096 = vpop.f32.mrb[0].mxu0
        %1097 = vmatprep.mubr.f32.mxu0 0.0
        %1098 = vmatmul.mubr.f32.gmra.mrb[0].mxu0 %v1026
        %v1099 = vpop.f32.mrb[0].mxu0
        %v1100 = vadd.f32 0.0, %v1099
        %v1101 = vpop.f32.mrb[0].mxu0
        %1102 = vdwg.mxu0
        %v1103 = vadd.f32 %v987, %v1095
        %v1104 = vadd.f32 %v992, %v1100
        %1105 = vrot.lane.b32.xlu0 %v762, 32
        %v1106 = vpop.permute.xlu0 %1105
        %1107 = vrot.lane.b32.xlu0 %v763, 32
        %v1108 = vpop.permute.xlu0 %1107
        %1109 = vrot.lane.b32.xlu0 %v764, 1
        %v1110 = vpop.permute.xlu0 %1109
        %1111 = vrot.lane.b32.xlu0 %v765, 1
        %v1112 = vpop.permute.xlu0 %1111
        %1113 = vrot.lane.b32.xlu0 %v766, 1
        %v1114 = vpop.permute.xlu0 %1113
        %1115 = vrot.lane.b32.xlu0 %v767, 1
        %v1116 = vpop.permute.xlu0 %1115
        %1117 = vrot.lane.b32.xlu0 %v768, 1
        %v1118 = vpop.permute.xlu0 %1117
        %1119 = vrot.lane.b32.xlu0 %v769, 1
        %v1120 = vpop.permute.xlu0 %1119
        %1121 = vrot.lane.b32.xlu0 %v770, 1
        %v1122 = vpop.permute.xlu0 %1121
        %1123 = vrot.lane.b32.xlu0 %v771, 1
        %v1124 = vpop.permute.xlu0 %1123
        %vm1125 = vcmask 7168
        %v1126 = vsel %vm1125, %v1110, %v1112
        %v1127 = vsel %vm1125, %v1114, %v1116
        %v1128 = vsel %vm1125, %v1118, %v1120
        %v1129 = vsel %vm1125, %v1122, %v1124
        %v1134 = vsel %vm811, %v1106, 0
        %v1136 = vsel %vm811, %v1108, 0
        %1138 = vmatprep.subr.mxu0 0.0
        %1139 = vmatpush1.msra.mxu0 %v1126
        %1140 = vmatprep.subr.mxu0 0.0
        %1141 = vmatpush1.msra.mxu0 %v1127
        %1142 = vmatprep.subr.mxu0 0.0
        %1143 = vmatpush1.msra.mxu0 %v1128
        %1144 = vmatprep.subr.mxu0 0.0
        %1145 = vmatpush1.msra.mxu0 %v1129
        %1146 = vmatprep.subr.mxu0 0.0
        %1147 = vmatpush1.msra.mxu0 0.0
        %1148 = vmatprep.subr.mxu0 0.0
        %1149 = vmatpush1.msra.mxu0 0.0
        %1150 = vmatprep.subr.mxu0 0.0
        %1151 = vmatpush1.msra.mxu0 0.0
        %1152 = vmatprep.subr.mxu0 0.0
        %1153 = vmatpush1.msra.mxu0 0.0
        %1154 = vmatprep.subr.mxu0 0.0
        %1155 = vmatpush1.msra.mxu0 0.0
        %1156 = vmatprep.subr.mxu0 0.0
        %1157 = vmatpush1.msra.mxu0 0.0
        %1158 = vmatprep.subr.mxu0 0.0
        %1159 = vmatpush1.msra.mxu0 0.0
        %1160 = vmatprep.subr.mxu0 0.0
        %1161 = vmatpush1.msra.mxu0 0.0
        %1162 = vmatprep.subr.mxu0 0.0
        %1163 = vmatpush1.msra.mxu0 0.0
        %1164 = vmatprep.subr.mxu0 0.0
        %1165 = vmatpush1.msra.mxu0 0.0
        %1166 = vmatprep.subr.mxu0 0.0
        %1167 = vmatpush1.msra.mxu0 0.0
        %1168 = vmatprep.subr.mxu0 0.0
        %1169 = vmatpush1.msra.mxu0 0.0
        %1170 = vmatprep.subr.mxu0 0.0
        %1171 = vmatpush1.msra.mxu0 0.0
        %1172 = vmatprep.subr.mxu0 0.0
        %1173 = vmatpush1.msra.mxu0 0.0
        %1174 = vmatprep.subr.mxu0 0.0
        %1175 = vmatpush1.msra.mxu0 0.0
        %1176 = vmatprep.subr.mxu0 0.0
        %1177 = vmatpush1.msra.mxu0 0.0
        %1178 = vmatprep.subr.mxu0 0.0
        %1179 = vmatpush1.msra.mxu0 0.0
        %1180 = vmatprep.subr.mxu0 0.0
        %1181 = vmatpush1.msra.mxu0 0.0
        %1182 = vmatprep.subr.mxu0 0.0
        %1183 = vmatpush1.msra.mxu0 0.0
        %1184 = vmatprep.subr.mxu0 0.0
        %1185 = vmatpush1.msra.mxu0 0.0
        %1186 = vmatprep.subr.mxu0 0.0
        %1187 = vmatpush1.msra.mxu0 0.0
        %1188 = vmatprep.subr.mxu0 0.0
        %1189 = vmatpush1.msra.mxu0 0.0
        %1190 = vmatprep.subr.mxu0 0.0
        %1191 = vmatpush1.msra.mxu0 0.0
        %1192 = vmatprep.subr.mxu0 0.0
        %1193 = vmatpush1.msra.mxu0 0.0
        %1194 = vmatprep.subr.mxu0 0.0
        %1195 = vmatpush1.msra.mxu0 0.0
        %1196 = vmatprep.subr.mxu0 0.0
        %1197 = vmatpush1.msra.mxu0 0.0
        %1198 = vmatprep.subr.mxu0 0.0
        %1199 = vmatpush1.msra.mxu0 0.0
        %1200 = vmatprep.subr.mxu0 0.0
        %1201 = vmatpush1.msra.mxu0 0.0
        %1202 = vmatprep.mubr.f32.mxu0 0.0
        %1203 = vmatmul.mubr.f32.gmra.mrb[0].mxu0 %v1134
        %v1204 = vpop.f32.mrb[0].mxu0
        %v1205 = vadd.f32 0.0, %v1204
        %v1206 = vpop.f32.mrb[0].mxu0
        %1207 = vmatprep.mubr.f32.mxu0 0.0
        %1208 = vmatmul.mubr.f32.gmra.mrb[0].mxu0 %v1136
        %v1209 = vpop.f32.mrb[0].mxu0
        %v1210 = vadd.f32 0.0, %v1209
        %v1211 = vpop.f32.mrb[0].mxu0
        %1212 = vdwg.mxu0
        %v1213 = vadd.f32 %v1103, %v1205
        %v1214 = vadd.f32 %v1104, %v1210
        %v1215 = vld [vmem:[#allocation6 + $0x8] sm:$0xff]
        %v1216 = vld [vmem:[#allocation6 + $0x20] sm:$0xff]
        %v1218 = vsel %vm811, %v1215, 0
        %v1221 = vsel %vm811, %v1216, 0
        %1223 = vmatprep.subr.mxu0 0.0
        %1224 = vmatpush1.msra.mxu0 %v765
        %1225 = vmatprep.subr.mxu0 0.0
        %1226 = vmatpush1.msra.mxu0 %v767
        %1227 = vmatprep.subr.mxu0 0.0
        %1228 = vmatpush1.msra.mxu0 %v769
        %1229 = vmatprep.subr.mxu0 0.0
        %1230 = vmatpush1.msra.mxu0 %v771
        %1231 = vmatprep.subr.mxu0 0.0
        %1232 = vmatpush1.msra.mxu0 0.0
        %1233 = vmatprep.subr.mxu0 0.0
        %1234 = vmatpush1.msra.mxu0 0.0
        %1235 = vmatprep.subr.mxu0 0.0
        %1236 = vmatpush1.msra.mxu0 0.0
        %1237 = vmatprep.subr.mxu0 0.0
        %1238 = vmatpush1.msra.mxu0 0.0
        %1239 = vmatprep.subr.mxu0 0.0
        %1240 = vmatpush1.msra.mxu0 0.0
        %1241 = vmatprep.subr.mxu0 0.0
        %1242 = vmatpush1.msra.mxu0 0.0
        %1243 = vmatprep.subr.mxu0 0.0
        %1244 = vmatpush1.msra.mxu0 0.0
        %1245 = vmatprep.subr.mxu0 0.0
        %1246 = vmatpush1.msra.mxu0 0.0
        %1247 = vmatprep.subr.mxu0 0.0
        %1248 = vmatpush1.msra.mxu0 0.0
        %1249 = vmatprep.subr.mxu0 0.0
        %1250 = vmatpush1.msra.mxu0 0.0
        %1251 = vmatprep.subr.mxu0 0.0
        %1252 = vmatpush1.msra.mxu0 0.0
        %1253 = vmatprep.subr.mxu0 0.0
        %1254 = vmatpush1.msra.mxu0 0.0
        %1255 = vmatprep.subr.mxu0 0.0
        %1256 = vmatpush1.msra.mxu0 0.0
        %1257 = vmatprep.subr.mxu0 0.0
        %1258 = vmatpush1.msra.mxu0 0.0
        %1259 = vmatprep.subr.mxu0 0.0
        %1260 = vmatpush1.msra.mxu0 0.0
        %1261 = vmatprep.subr.mxu0 0.0
        %1262 = vmatpush1.msra.mxu0 0.0
        %1263 = vmatprep.subr.mxu0 0.0
        %1264 = vmatpush1.msra.mxu0 0.0
        %1265 = vmatprep.subr.mxu0 0.0
        %1266 = vmatpush1.msra.mxu0 0.0
        %1267 = vmatprep.subr.mxu0 0.0
        %1268 = vmatpush1.msra.mxu0 0.0
        %1269 = vmatprep.subr.mxu0 0.0
        %1270 = vmatpush1.msra.mxu0 0.0
        %1271 = vmatprep.subr.mxu0 0.0
        %1272 = vmatpush1.msra.mxu0 0.0
        %1273 = vmatprep.subr.mxu0 0.0
        %1274 = vmatpush1.msra.mxu0 0.0
        %1275 = vmatprep.subr.mxu0 0.0
        %1276 = vmatpush1.msra.mxu0 0.0
        %1277 = vmatprep.subr.mxu0 0.0
        %1278 = vmatpush1.msra.mxu0 0.0
        %1279 = vmatprep.subr.mxu0 0.0
        %1280 = vmatpush1.msra.mxu0 0.0
        %1281 = vmatprep.subr.mxu0 0.0
        %1282 = vmatpush1.msra.mxu0 0.0
        %1283 = vmatprep.subr.mxu0 0.0
        %1284 = vmatpush1.msra.mxu0 0.0
        %1285 = vmatprep.subr.mxu0 0.0
        %1286 = vmatpush1.msra.mxu0 0.0
        %1287 = vmatprep.mubr.f32.mxu0 0.0
        %1288 = vmatmul.mubr.f32.gmra.mrb[0].mxu0 %v1218
        %v1289 = vpop.f32.mrb[0].mxu0
        %v1290 = vadd.f32 0.0, %v1289
        %v1291 = vpop.f32.mrb[0].mxu0
        %1292 = vmatprep.mubr.f32.mxu0 0.0
        %1293 = vmatmul.mubr.f32.gmra.mrb[0].mxu0 %v1221
        %v1294 = vpop.f32.mrb[0].mxu0
        %v1295 = vadd.f32 0.0, %v1294
        %v1296 = vpop.f32.mrb[0].mxu0
        %1297 = vdwg.mxu0
        %v1298 = vadd.f32 %v1213, %v1290
        %v1299 = vadd.f32 %v1214, %v1295
        %1300 = vrot.lane.b32.xlu0 %v1215, 96
        %v1301 = vpop.permute.xlu0 %1300
        %1302 = vrot.lane.b32.xlu0 %v1216, 96
        %v1303 = vpop.permute.xlu0 %1302
        %1304 = vrot.lane.b32.xlu0 %v765, 127
        %v1305 = vpop.permute.xlu0 %1304
        %1306 = vrot.lane.b32.xlu0 %v767, 127
        %v1307 = vpop.permute.xlu0 %1306
        %1308 = vrot.lane.b32.xlu0 %v769, 127
        %v1309 = vpop.permute.xlu0 %1308
        %1310 = vrot.lane.b32.xlu0 %v771, 127
        %v1311 = vpop.permute.xlu0 %1310
        %v1316 = vsel %vm811, %v1301, 0
        %v1318 = vsel %vm811, %v1303, 0
        %1320 = vmatprep.subr.mxu0 0.0
        %1321 = vmatpush1.msra.mxu0 %v1305
        %1322 = vmatprep.subr.mxu0 0.0
        %1323 = vmatpush1.msra.mxu0 %v1307
        %1324 = vmatprep.subr.mxu0 0.0
        %1325 = vmatpush1.msra.mxu0 %v1309
        %1326 = vmatprep.subr.mxu0 0.0
        %1327 = vmatpush1.msra.mxu0 %v1311
        %1328 = vmatprep.subr.mxu0 0.0
        %1329 = vmatpush1.msra.mxu0 0.0
        %1330 = vmatprep.subr.mxu0 0.0
        %1331 = vmatpush1.msra.mxu0 0.0
        %1332 = vmatprep.subr.mxu0 0.0
        %1333 = vmatpush1.msra.mxu0 0.0
        %1334 = vmatprep.subr.mxu0 0.0
        %1335 = vmatpush1.msra.mxu0 0.0
        %1336 = vmatprep.subr.mxu0 0.0
        %1337 = vmatpush1.msra.mxu0 0.0
        %1338 = vmatprep.subr.mxu0 0.0
        %1339 = vmatpush1.msra.mxu0 0.0
        %1340 = vmatprep.subr.mxu0 0.0
        %1341 = vmatpush1.msra.mxu0 0.0
        %1342 = vmatprep.subr.mxu0 0.0
        %1343 = vmatpush1.msra.mxu0 0.0
        %1344 = vmatprep.subr.mxu0 0.0
        %1345 = vmatpush1.msra.mxu0 0.0
        %1346 = vmatprep.subr.mxu0 0.0
        %1347 = vmatpush1.msra.mxu0 0.0
        %1348 = vmatprep.subr.mxu0 0.0
        %1349 = vmatpush1.msra.mxu0 0.0
        %1350 = vmatprep.subr.mxu0 0.0
        %1351 = vmatpush1.msra.mxu0 0.0
        %1352 = vmatprep.subr.mxu0 0.0
        %1353 = vmatpush1.msra.mxu0 0.0
        %1354 = vmatprep.subr.mxu0 0.0
        %1355 = vmatpush1.msra.mxu0 0.0
        %1356 = vmatprep.subr.mxu0 0.0
        %1357 = vmatpush1.msra.mxu0 0.0
        %1358 = vmatprep.subr.mxu0 0.0
        %1359 = vmatpush1.msra.mxu0 0.0
        %1360 = vmatprep.subr.mxu0 0.0
        %1361 = vmatpush1.msra.mxu0 0.0
        %1362 = vmatprep.subr.mxu0 0.0
        %1363 = vmatpush1.msra.mxu0 0.0
        %1364 = vmatprep.subr.mxu0 0.0
        %1365 = vmatpush1.msra.mxu0 0.0
        %1366 = vmatprep.subr.mxu0 0.0
        %1367 = vmatpush1.msra.mxu0 0.0
        %1368 = vmatprep.subr.mxu0 0.0
        %1369 = vmatpush1.msra.mxu0 0.0
        %1370 = vmatprep.subr.mxu0 0.0
        %1371 = vmatpush1.msra.mxu0 0.0
        %1372 = vmatprep.subr.mxu0 0.0
        %1373 = vmatpush1.msra.mxu0 0.0
        %1374 = vmatprep.subr.mxu0 0.0
        %1375 = vmatpush1.msra.mxu0 0.0
        %1376 = vmatprep.subr.mxu0 0.0
        %1377 = vmatpush1.msra.mxu0 0.0
        %1378 = vmatprep.subr.mxu0 0.0
        %1379 = vmatpush1.msra.mxu0 0.0
        %1380 = vmatprep.subr.mxu0 0.0
        %1381 = vmatpush1.msra.mxu0 0.0
        %1382 = vmatprep.subr.mxu0 0.0
        %1383 = vmatpush1.msra.mxu0 0.0
        %1384 = vmatprep.mubr.f32.mxu0 0.0
        %1385 = vmatmul.mubr.f32.gmra.mrb[0].mxu0 %v1316
        %v1386 = vpop.f32.mrb[0].mxu0
        %v1387 = vadd.f32 0.0, %v1386
        %v1388 = vpop.f32.mrb[0].mxu0
        %1389 = vmatprep.mubr.f32.mxu0 0.0
        %1390 = vmatmul.mubr.f32.gmra.mrb[0].mxu0 %v1318
        %v1391 = vpop.f32.mrb[0].mxu0
        %v1392 = vadd.f32 0.0, %v1391
        %v1393 = vpop.f32.mrb[0].mxu0
        %1394 = vdwg.mxu0
        %v1395 = vadd.f32 %v1298, %v1387
        %v1396 = vadd.f32 %v1299, %v1392
        %1397 = vrot.lane.b32.xlu0 %v1215, 64
        %v1398 = vpop.permute.xlu0 %1397
        %1399 = vrot.lane.b32.xlu0 %v1216, 64
        %v1400 = vpop.permute.xlu0 %1399
        %1401 = vrot.lane.b32.xlu0 %v765, 119
        %v1402 = vpop.permute.xlu0 %1401
        %1403 = vrot.lane.b32.xlu0 %v767, 119
        %v1404 = vpop.permute.xlu0 %1403
        %1405 = vrot.lane.b32.xlu0 %v769, 119
        %v1406 = vpop.permute.xlu0 %1405
        %1407 = vrot.lane.b32.xlu0 %v771, 119
        %v1408 = vpop.permute.xlu0 %1407
        %v1413 = vsel %vm811, %v1398, 0
        %v1415 = vsel %vm811, %v1400, 0
        %1417 = vmatprep.subr.mxu0 0.0
        %1418 = vmatpush1.msra.mxu0 %v1402
        %1419 = vmatprep.subr.mxu0 0.0
        %1420 = vmatpush1.msra.mxu0 %v1404
        %1421 = vmatprep.subr.mxu0 0.0
        %1422 = vmatpush1.msra.mxu0 %v1406
        %1423 = vmatprep.subr.mxu0 0.0
        %1424 = vmatpush1.msra.mxu0 %v1408
        %1425 = vmatprep.subr.mxu0 0.0
        %1426 = vmatpush1.msra.mxu0 0.0
        %1427 = vmatprep.subr.mxu0 0.0
        %1428 = vmatpush1.msra.mxu0 0.0
        %1429 = vmatprep.subr.mxu0 0.0
        %1430 = vmatpush1.msra.mxu0 0.0
        %1431 = vmatprep.subr.mxu0 0.0
        %1432 = vmatpush1.msra.mxu0 0.0
        %1433 = vmatprep.subr.mxu0 0.0
        %1434 = vmatpush1.msra.mxu0 0.0
        %1435 = vmatprep.subr.mxu0 0.0
        %1436 = vmatpush1.msra.mxu0 0.0
        %1437 = vmatprep.subr.mxu0 0.0
        %1438 = vmatpush1.msra.mxu0 0.0
        %1439 = vmatprep.subr.mxu0 0.0
        %1440 = vmatpush1.msra.mxu0 0.0
        %1441 = vmatprep.subr.mxu0 0.0
        %1442 = vmatpush1.msra.mxu0 0.0
        %1443 = vmatprep.subr.mxu0 0.0
        %1444 = vmatpush1.msra.mxu0 0.0
        %1445 = vmatprep.subr.mxu0 0.0
        %1446 = vmatpush1.msra.mxu0 0.0
        %1447 = vmatprep.subr.mxu0 0.0
        %1448 = vmatpush1.msra.mxu0 0.0
        %1449 = vmatprep.subr.mxu0 0.0
        %1450 = vmatpush1.msra.mxu0 0.0
        %1451 = vmatprep.subr.mxu0 0.0
        %1452 = vmatpush1.msra.mxu0 0.0
        %1453 = vmatprep.subr.mxu0 0.0
        %1454 = vmatpush1.msra.mxu0 0.0
        %1455 = vmatprep.subr.mxu0 0.0
        %1456 = vmatpush1.msra.mxu0 0.0
        %1457 = vmatprep.subr.mxu0 0.0
        %1458 = vmatpush1.msra.mxu0 0.0
        %1459 = vmatprep.subr.mxu0 0.0
        %1460 = vmatpush1.msra.mxu0 0.0
        %1461 = vmatprep.subr.mxu0 0.0
        %1462 = vmatpush1.msra.mxu0 0.0
        %1463 = vmatprep.subr.mxu0 0.0
        %1464 = vmatpush1.msra.mxu0 0.0
        %1465 = vmatprep.subr.mxu0 0.0
        %1466 = vmatpush1.msra.mxu0 0.0
        %1467 = vmatprep.subr.mxu0 0.0
        %1468 = vmatpush1.msra.mxu0 0.0
        %1469 = vmatprep.subr.mxu0 0.0
        %1470 = vmatpush1.msra.mxu0 0.0
        %1471 = vmatprep.subr.mxu0 0.0
        %1472 = vmatpush1.msra.mxu0 0.0
        %1473 = vmatprep.subr.mxu0 0.0
        %1474 = vmatpush1.msra.mxu0 0.0
        %1475 = vmatprep.subr.mxu0 0.0
        %1476 = vmatpush1.msra.mxu0 0.0
        %1477 = vmatprep.subr.mxu0 0.0
        %1478 = vmatpush1.msra.mxu0 0.0
        %1479 = vmatprep.subr.mxu0 0.0
        %1480 = vmatpush1.msra.mxu0 0.0
        %1481 = vmatprep.mubr.f32.mxu0 0.0
        %1482 = vmatmul.mubr.f32.gmra.mrb[0].mxu0 %v1413
        %v1483 = vpop.f32.mrb[0].mxu0
        %v1484 = vadd.f32 0.0, %v1483
        %v1485 = vpop.f32.mrb[0].mxu0
        %1486 = vmatprep.mubr.f32.mxu0 0.0
        %1487 = vmatmul.mubr.f32.gmra.mrb[0].mxu0 %v1415
        %v1488 = vpop.f32.mrb[0].mxu0
        %v1489 = vadd.f32 0.0, %v1488
        %v1490 = vpop.f32.mrb[0].mxu0
        %1491 = vdwg.mxu0
        %v1492 = vadd.f32 %v1395, %v1484
        %v1493 = vadd.f32 %v1396, %v1489
        %1494 = vrot.lane.b32.xlu0 %v1215, 32
        %v1495 = vpop.permute.xlu0 %1494
        %1496 = vrot.lane.b32.xlu0 %v1216, 32
        %v1497 = vpop.permute.xlu0 %1496
        %1498 = vrot.lane.b32.xlu0 %v765, 118
        %v1499 = vpop.permute.xlu0 %1498
        %1500 = vrot.lane.b32.xlu0 %v767, 118
        %v1501 = vpop.permute.xlu0 %1500
        %1502 = vrot.lane.b32.xlu0 %v769, 118
        %v1503 = vpop.permute.xlu0 %1502
        %1504 = vrot.lane.b32.xlu0 %v771, 118
        %v1505 = vpop.permute.xlu0 %1504
        %v1510 = vsel %vm811, %v1495, 0
        %v1512 = vsel %vm811, %v1497, 0
        %1514 = vmatprep.subr.mxu0 0.0
        %1515 = vmatpush1.msra.mxu0 %v1499
        %1516 = vmatprep.subr.mxu0 0.0
        %1517 = vmatpush1.msra.mxu0 %v1501
        %1518 = vmatprep.subr.mxu0 0.0
        %1519 = vmatpush1.msra.mxu0 %v1503
        %1520 = vmatprep.subr.mxu0 0.0
        %1521 = vmatpush1.msra.mxu0 %v1505
        %1522 = vmatprep.subr.mxu0 0.0
        %1523 = vmatpush1.msra.mxu0 0.0
        %1524 = vmatprep.subr.mxu0 0.0
        %1525 = vmatpush1.msra.mxu0 0.0
        %1526 = vmatprep.subr.mxu0 0.0
        %1527 = vmatpush1.msra.mxu0 0.0
        %1528 = vmatprep.subr.mxu0 0.0
        %1529 = vmatpush1.msra.mxu0 0.0
        %1530 = vmatprep.subr.mxu0 0.0
        %1531 = vmatpush1.msra.mxu0 0.0
        %1532 = vmatprep.subr.mxu0 0.0
        %1533 = vmatpush1.msra.mxu0 0.0
        %1534 = vmatprep.subr.mxu0 0.0
        %1535 = vmatpush1.msra.mxu0 0.0
        %1536 = vmatprep.subr.mxu0 0.0
        %1537 = vmatpush1.msra.mxu0 0.0
        %1538 = vmatprep.subr.mxu0 0.0
        %1539 = vmatpush1.msra.mxu0 0.0
        %1540 = vmatprep.subr.mxu0 0.0
        %1541 = vmatpush1.msra.mxu0 0.0
        %1542 = vmatprep.subr.mxu0 0.0
        %1543 = vmatpush1.msra.mxu0 0.0
        %1544 = vmatprep.subr.mxu0 0.0
        %1545 = vmatpush1.msra.mxu0 0.0
        %1546 = vmatprep.subr.mxu0 0.0
        %1547 = vmatpush1.msra.mxu0 0.0
        %1548 = vmatprep.subr.mxu0 0.0
        %1549 = vmatpush1.msra.mxu0 0.0
        %1550 = vmatprep.subr.mxu0 0.0
        %1551 = vmatpush1.msra.mxu0 0.0
        %1552 = vmatprep.subr.mxu0 0.0
        %1553 = vmatpush1.msra.mxu0 0.0
        %1554 = vmatprep.subr.mxu0 0.0
        %1555 = vmatpush1.msra.mxu0 0.0
        %1556 = vmatprep.subr.mxu0 0.0
        %1557 = vmatpush1.msra.mxu0 0.0
        %1558 = vmatprep.subr.mxu0 0.0
        %1559 = vmatpush1.msra.mxu0 0.0
        %1560 = vmatprep.subr.mxu0 0.0
        %1561 = vmatpush1.msra.mxu0 0.0
        %1562 = vmatprep.subr.mxu0 0.0
        %1563 = vmatpush1.msra.mxu0 0.0
        %1564 = vmatprep.subr.mxu0 0.0
        %1565 = vmatpush1.msra.mxu0 0.0
        %1566 = vmatprep.subr.mxu0 0.0
        %1567 = vmatpush1.msra.mxu0 0.0
        %1568 = vmatprep.subr.mxu0 0.0
        %1569 = vmatpush1.msra.mxu0 0.0
        %1570 = vmatprep.subr.mxu0 0.0
        %1571 = vmatpush1.msra.mxu0 0.0
        %1572 = vmatprep.subr.mxu0 0.0
        %1573 = vmatpush1.msra.mxu0 0.0
        %1574 = vmatprep.subr.mxu0 0.0
        %1575 = vmatpush1.msra.mxu0 0.0
        %1576 = vmatprep.subr.mxu0 0.0
        %1577 = vmatpush1.msra.mxu0 0.0
        %1578 = vmatprep.mubr.f32.mxu0 0.0
        %1579 = vmatmul.mubr.f32.gmra.mrb[0].mxu0 %v1510
        %v1580 = vpop.f32.mrb[0].mxu0
        %v1581 = vadd.f32 0.0, %v1580
        %v1582 = vpop.f32.mrb[0].mxu0
        %1583 = vmatprep.mubr.f32.mxu0 0.0
        %1584 = vmatmul.mubr.f32.gmra.mrb[0].mxu0 %v1512
        %v1585 = vpop.f32.mrb[0].mxu0
        %v1586 = vadd.f32 0.0, %v1585
        %v1587 = vpop.f32.mrb[0].mxu0
        %1588 = vdwg.mxu0
        %v1589 = vadd.f32 %v1492, %v1581
        %v1590 = vadd.f32 %v1493, %v1586
        %v1591 = vld [vmem:[#allocation6 + $0x10] sm:$0xff]
        %v1592 = vld [vmem:[#allocation6 + $0x28] sm:$0xff]
        %1593 = vrot.lane.b32.xlu0 %v765, 117
        %v1594 = vpop.permute.xlu0 %1593
        %1595 = vrot.lane.b32.xlu0 %v767, 117
        %v1596 = vpop.permute.xlu0 %1595
        %1597 = vrot.lane.b32.xlu0 %v769, 117
        %v1598 = vpop.permute.xlu0 %1597
        %1599 = vrot.lane.b32.xlu0 %v771, 117
        %v1600 = vpop.permute.xlu0 %1599
        %v1606 = vsel %vm811, %v1591, 0
        %v1609 = vsel %vm811, %v1592, 0
        %1611 = vmatprep.subr.mxu0 0.0
        %1612 = vmatpush1.msra.mxu0 %v1594
        %1613 = vmatprep.subr.mxu0 0.0
        %1614 = vmatpush1.msra.mxu0 %v1596
        %1615 = vmatprep.subr.mxu0 0.0
        %1616 = vmatpush1.msra.mxu0 %v1598
        %1617 = vmatprep.subr.mxu0 0.0
        %1618 = vmatpush1.msra.mxu0 %v1600
        %1619 = vmatprep.subr.mxu0 0.0
        %1620 = vmatpush1.msra.mxu0 0.0
        %1621 = vmatprep.subr.mxu0 0.0
        %1622 = vmatpush1.msra.mxu0 0.0
        %1623 = vmatprep.subr.mxu0 0.0
        %1624 = vmatpush1.msra.mxu0 0.0
        %1625 = vmatprep.subr.mxu0 0.0
        %1626 = vmatpush1.msra.mxu0 0.0
        %1627 = vmatprep.subr.mxu0 0.0
        %1628 = vmatpush1.msra.mxu0 0.0
        %1629 = vmatprep.subr.mxu0 0.0
        %1630 = vmatpush1.msra.mxu0 0.0
        %1631 = vmatprep.subr.mxu0 0.0
        %1632 = vmatpush1.msra.mxu0 0.0
        %1633 = vmatprep.subr.mxu0 0.0
        %1634 = vmatpush1.msra.mxu0 0.0
        %1635 = vmatprep.subr.mxu0 0.0
        %1636 = vmatpush1.msra.mxu0 0.0
        %1637 = vmatprep.subr.mxu0 0.0
        %1638 = vmatpush1.msra.mxu0 0.0
        %1639 = vmatprep.subr.mxu0 0.0
        %1640 = vmatpush1.msra.mxu0 0.0
        %1641 = vmatprep.subr.mxu0 0.0
        %1642 = vmatpush1.msra.mxu0 0.0
        %1643 = vmatprep.subr.mxu0 0.0
        %1644 = vmatpush1.msra.mxu0 0.0
        %1645 = vmatprep.subr.mxu0 0.0
        %1646 = vmatpush1.msra.mxu0 0.0
        %1647 = vmatprep.subr.mxu0 0.0
        %1648 = vmatpush1.msra.mxu0 0.0
        %1649 = vmatprep.subr.mxu0 0.0
        %1650 = vmatpush1.msra.mxu0 0.0
        %1651 = vmatprep.subr.mxu0 0.0
        %1652 = vmatpush1.msra.mxu0 0.0
        %1653 = vmatprep.subr.mxu0 0.0
        %1654 = vmatpush1.msra.mxu0 0.0
        %1655 = vmatprep.subr.mxu0 0.0
        %1656 = vmatpush1.msra.mxu0 0.0
        %1657 = vmatprep.subr.mxu0 0.0
        %1658 = vmatpush1.msra.mxu0 0.0
        %1659 = vmatprep.subr.mxu0 0.0
        %1660 = vmatpush1.msra.mxu0 0.0
        %1661 = vmatprep.subr.mxu0 0.0
        %1662 = vmatpush1.msra.mxu0 0.0
        %1663 = vmatprep.subr.mxu0 0.0
        %1664 = vmatpush1.msra.mxu0 0.0
        %1665 = vmatprep.subr.mxu0 0.0
        %1666 = vmatpush1.msra.mxu0 0.0
        %1667 = vmatprep.subr.mxu0 0.0
        %1668 = vmatpush1.msra.mxu0 0.0
        %1669 = vmatprep.subr.mxu0 0.0
        %1670 = vmatpush1.msra.mxu0 0.0
        %1671 = vmatprep.subr.mxu0 0.0
        %1672 = vmatpush1.msra.mxu0 0.0
        %1673 = vmatprep.subr.mxu0 0.0
        %1674 = vmatpush1.msra.mxu0 0.0
        %1675 = vmatprep.mubr.f32.mxu0 0.0
        %1676 = vmatmul.mubr.f32.gmra.mrb[0].mxu0 %v1606
        %v1677 = vpop.f32.mrb[0].mxu0
        %v1678 = vadd.f32 0.0, %v1677
        %v1679 = vpop.f32.mrb[0].mxu0
        %1680 = vmatprep.mubr.f32.mxu0 0.0
        %1681 = vmatmul.mubr.f32.gmra.mrb[0].mxu0 %v1609
        %v1682 = vpop.f32.mrb[0].mxu0
        %v1683 = vadd.f32 0.0, %v1682
        %v1684 = vpop.f32.mrb[0].mxu0
        %1685 = vdwg.mxu0
        %v1686 = vadd.f32 %v1589, %v1678
        %v1687 = vadd.f32 %v1590, %v1683
        %v1688 = vld [vmem:[%s4] sm:$0xff]
        %v1689 = vld [vmem:[%s4 + $0x8] sm:$0xff]
        %1691 = vset.pattern.permute.xlu0 0
        %1692 = vperm.xlu0 %1691, %v1688
        %v1693 = vpop.permute.xlu0 %1692
        %1696 = vset.pattern.permute.xlu0 0
        %1697 = vperm.xlu0 %1696, %v1689
        %v1698 = vpop.permute.xlu0 %1697
        %v1700 = vadd.f32 %v1686, %v1693
        %v1701 = vadd.f32 %v1687, %v1698
        %v1702 = vmax.f32 %v1700, 0.0
        %v1703 = vmax.f32 %v1701, 0.0
        %v1704 = vsel %vm753, %v1702, 0.0
        %v1705 = vsel %vm753, %v1703, 0.0
        %1706 = vst.msk [vmem:[#allocation3 + $0x8] sm:$0xff] %vm385, %v1704
        %1707 = vst.msk [vmem:[#allocation3 + $0x20] sm:$0xff] %vm385, %v1705
        %v1708 = vld [vmem:[#allocation8] sm:$0x7]
        %v1709 = vld [vmem:[#allocation3] sm:$0xff]
        %v1710 = vld [vmem:[#allocation3 + $0x8] sm:$0xff]
        %v1711 = vld [vmem:[#allocation3 + $0x18] sm:$0xff]
        %v1712 = vld [vmem:[#allocation3 + $0x20] sm:$0xff]
        %1714 = vrot.lane.b32.xlu0 %v1708, 112
        %v1715 = vpop.permute.xlu0 %1714
        %1720 = vrot.lane.b32.xlu0 %v1709, 10
        %v1721 = vpop.permute.xlu0 %1720
        %1722 = vrot.lane.b32.xlu0 %v1710, 10
        %v1723 = vpop.permute.xlu0 %1722
        %1724 = vrot.lane.b32.xlu0 %v1711, 10
        %v1725 = vpop.permute.xlu0 %1724
        %1726 = vrot.lane.b32.xlu0 %v1712, 10
        %v1727 = vpop.permute.xlu0 %1726
        %v1728 = vsel %vm802, %v1721, %v1723
        %v1729 = vsel %vm802, %v1725, %v1727
        %vm1732 = vcmask 130048
        %v1733 = vsel %vm1732, %v1715, 0
        %1735 = vmatprep.subr.mxu0 0.0
        %1736 = vmatpush1.msra.mxu0 %v1728
        %1737 = vmatprep.subr.mxu0 0.0
        %1738 = vmatpush1.msra.mxu0 %v1729
        %1739 = vmatprep.subr.mxu0 0.0
        %1740 = vmatpush1.msra.mxu0 0.0
        %1741 = vmatprep.subr.mxu0 0.0
        %1742 = vmatpush1.msra.mxu0 0.0
        %1743 = vmatprep.subr.mxu0 0.0
        %1744 = vmatpush1.msra.mxu0 0.0
        %1745 = vmatprep.subr.mxu0 0.0
        %1746 = vmatpush1.msra.mxu0 0.0
        %1747 = vmatprep.subr.mxu0 0.0
        %1748 = vmatpush1.msra.mxu0 0.0
        %1749 = vmatprep.subr.mxu0 0.0
        %1750 = vmatpush1.msra.mxu0 0.0
        %1751 = vmatprep.subr.mxu0 0.0
        %1752 = vmatpush1.msra.mxu0 0.0
        %1753 = vmatprep.subr.mxu0 0.0
        %1754 = vmatpush1.msra.mxu0 0.0
        %1755 = vmatprep.subr.mxu0 0.0
        %1756 = vmatpush1.msra.mxu0 0.0
        %1757 = vmatprep.subr.mxu0 0.0
        %1758 = vmatpush1.msra.mxu0 0.0
        %1759 = vmatprep.subr.mxu0 0.0
        %1760 = vmatpush1.msra.mxu0 0.0
        %1761 = vmatprep.subr.mxu0 0.0
        %1762 = vmatpush1.msra.mxu0 0.0
        %1763 = vmatprep.subr.mxu0 0.0
        %1764 = vmatpush1.msra.mxu0 0.0
        %1765 = vmatprep.subr.mxu0 0.0
        %1766 = vmatpush1.msra.mxu0 0.0
        %1767 = vmatprep.subr.mxu0 0.0
        %1768 = vmatpush1.msra.mxu0 0.0
        %1769 = vmatprep.subr.mxu0 0.0
        %1770 = vmatpush1.msra.mxu0 0.0
        %1771 = vmatprep.subr.mxu0 0.0
        %1772 = vmatpush1.msra.mxu0 0.0
        %1773 = vmatprep.subr.mxu0 0.0
        %1774 = vmatpush1.msra.mxu0 0.0
        %1775 = vmatprep.subr.mxu0 0.0
        %1776 = vmatpush1.msra.mxu0 0.0
        %1777 = vmatprep.subr.mxu0 0.0
        %1778 = vmatpush1.msra.mxu0 0.0
        %1779 = vmatprep.subr.mxu0 0.0
        %1780 = vmatpush1.msra.mxu0 0.0
        %1781 = vmatprep.subr.mxu0 0.0
        %1782 = vmatpush1.msra.mxu0 0.0
        %1783 = vmatprep.subr.mxu0 0.0
        %1784 = vmatpush1.msra.mxu0 0.0
        %1785 = vmatprep.subr.mxu0 0.0
        %1786 = vmatpush1.msra.mxu0 0.0
        %1787 = vmatprep.subr.mxu0 0.0
        %1788 = vmatpush1.msra.mxu0 0.0
        %1789 = vmatprep.subr.mxu0 0.0
        %1790 = vmatpush1.msra.mxu0 0.0
        %1791 = vmatprep.subr.mxu0 0.0
        %1792 = vmatpush1.msra.mxu0 0.0
        %1793 = vmatprep.subr.mxu0 0.0
        %1794 = vmatpush1.msra.mxu0 0.0
        %1795 = vmatprep.subr.mxu0 0.0
        %1796 = vmatpush1.msra.mxu0 0.0
        %1797 = vmatprep.subr.mxu0 0.0
        %1798 = vmatpush1.msra.mxu0 0.0
        %1799 = vmatprep.mubr.f32.mxu0 0.0
        %1800 = vmatmul.mubr.f32.gmra.mrb[0].mxu0 %v1733
        %v1801 = vpop.f32.mrb[0].mxu0
        %v1802 = vadd.f32 0.0, %v1801
        %v1803 = vpop.f32.mrb[0].mxu0
        %1804 = vdwg.mxu0
        %1805 = vrot.lane.b32.xlu0 %v1709, 11
        %v1806 = vpop.permute.xlu0 %1805
        %1807 = vrot.lane.b32.xlu0 %v1710, 11
        %v1808 = vpop.permute.xlu0 %1807
        %1809 = vrot.lane.b32.xlu0 %v1711, 11
        %v1810 = vpop.permute.xlu0 %1809
        %1811 = vrot.lane.b32.xlu0 %v1712, 11
        %v1812 = vpop.permute.xlu0 %1811
        %v1813 = vsel %vm907, %v1806, %v1808
        %v1814 = vsel %vm907, %v1810, %v1812
        %v1817 = vsel %vm1732, %v1708, 0
        %1819 = vmatprep.subr.mxu0 0.0
        %1820 = vmatpush1.msra.mxu0 %v1813
        %1821 = vmatprep.subr.mxu0 0.0
        %1822 = vmatpush1.msra.mxu0 %v1814
        %1823 = vmatprep.subr.mxu0 0.0
        %1824 = vmatpush1.msra.mxu0 0.0
        %1825 = vmatprep.subr.mxu0 0.0
        %1826 = vmatpush1.msra.mxu0 0.0
        %1827 = vmatprep.subr.mxu0 0.0
        %1828 = vmatpush1.msra.mxu0 0.0
        %1829 = vmatprep.subr.mxu0 0.0
        %1830 = vmatpush1.msra.mxu0 0.0
        %1831 = vmatprep.subr.mxu0 0.0
        %1832 = vmatpush1.msra.mxu0 0.0
        %1833 = vmatprep.subr.mxu0 0.0
        %1834 = vmatpush1.msra.mxu0 0.0
        %1835 = vmatprep.subr.mxu0 0.0
        %1836 = vmatpush1.msra.mxu0 0.0
        %1837 = vmatprep.subr.mxu0 0.0
        %1838 = vmatpush1.msra.mxu0 0.0
        %1839 = vmatprep.subr.mxu0 0.0
        %1840 = vmatpush1.msra.mxu0 0.0
        %1841 = vmatprep.subr.mxu0 0.0
        %1842 = vmatpush1.msra.mxu0 0.0
        %1843 = vmatprep.subr.mxu0 0.0
        %1844 = vmatpush1.msra.mxu0 0.0
        %1845 = vmatprep.subr.mxu0 0.0
        %1846 = vmatpush1.msra.mxu0 0.0
        %1847 = vmatprep.subr.mxu0 0.0
        %1848 = vmatpush1.msra.mxu0 0.0
        %1849 = vmatprep.subr.mxu0 0.0
        %1850 = vmatpush1.msra.mxu0 0.0
        %1851 = vmatprep.subr.mxu0 0.0
        %1852 = vmatpush1.msra.mxu0 0.0
        %1853 = vmatprep.subr.mxu0 0.0
        %1854 = vmatpush1.msra.mxu0 0.0
        %1855 = vmatprep.subr.mxu0 0.0
        %1856 = vmatpush1.msra.mxu0 0.0
        %1857 = vmatprep.subr.mxu0 0.0
        %1858 = vmatpush1.msra.mxu0 0.0
        %1859 = vmatprep.subr.mxu0 0.0
        %1860 = vmatpush1.msra.mxu0 0.0
        %1861 = vmatprep.subr.mxu0 0.0
        %1862 = vmatpush1.msra.mxu0 0.0
        %1863 = vmatprep.subr.mxu0 0.0
        %1864 = vmatpush1.msra.mxu0 0.0
        %1865 = vmatprep.subr.mxu0 0.0
        %1866 = vmatpush1.msra.mxu0 0.0
        %1867 = vmatprep.subr.mxu0 0.0
        %1868 = vmatpush1.msra.mxu0 0.0
        %1869 = vmatprep.subr.mxu0 0.0
        %1870 = vmatpush1.msra.mxu0 0.0
        %1871 = vmatprep.subr.mxu0 0.0
        %1872 = vmatpush1.msra.mxu0 0.0
        %1873 = vmatprep.subr.mxu0 0.0
        %1874 = vmatpush1.msra.mxu0 0.0
        %1875 = vmatprep.subr.mxu0 0.0
        %1876 = vmatpush1.msra.mxu0 0.0
        %1877 = vmatprep.subr.mxu0 0.0
        %1878 = vmatpush1.msra.mxu0 0.0
        %1879 = vmatprep.subr.mxu0 0.0
        %1880 = vmatpush1.msra.mxu0 0.0
        %1881 = vmatprep.subr.mxu0 0.0
        %1882 = vmatpush1.msra.mxu0 0.0
        %1883 = vmatprep.mubr.f32.mxu0 0.0
        %1884 = vmatmul.mubr.f32.gmra.mrb[0].mxu0 %v1817
        %v1885 = vpop.f32.mrb[0].mxu0
        %v1886 = vadd.f32 %v1802, %v1885
        %v1887 = vpop.f32.mrb[0].mxu0
        %1888 = vdwg.mxu0
        %v1889 = vld [vmem:[#allocation8] sm:$0x7]
        %v1890 = vld [vmem:[#allocation3] sm:$0xff]
        %v1891 = vld [vmem:[#allocation3 + $0x8] sm:$0xff]
        %v1892 = vld [vmem:[#allocation3 + $0x18] sm:$0xff]
        %v1893 = vld [vmem:[#allocation3 + $0x20] sm:$0xff]
        %1895 = vrot.lane.b32.xlu0 %v1889, 96
        %v1896 = vpop.permute.xlu0 %1895
        %1901 = vrot.lane.b32.xlu0 %v1890, 9
        %v1902 = vpop.permute.xlu0 %1901
        %1903 = vrot.lane.b32.xlu0 %v1891, 9
        %v1904 = vpop.permute.xlu0 %1903
        %1905 = vrot.lane.b32.xlu0 %v1892, 9
        %v1906 = vpop.permute.xlu0 %1905
        %1907 = vrot.lane.b32.xlu0 %v1893, 9
        %v1908 = vpop.permute.xlu0 %1907
        %v1909 = vsel %vm1015, %v1902, %v1904
        %v1910 = vsel %vm1015, %v1906, %v1908
        %v1913 = vsel %vm1732, %v1896, 0
        %1915 = vmatprep.subr.mxu0 0.0
        %1916 = vmatpush1.msra.mxu0 %v1909
        %1917 = vmatprep.subr.mxu0 0.0
        %1918 = vmatpush1.msra.mxu0 %v1910
        %1919 = vmatprep.subr.mxu0 0.0
        %1920 = vmatpush1.msra.mxu0 0.0
        %1921 = vmatprep.subr.mxu0 0.0
        %1922 = vmatpush1.msra.mxu0 0.0
        %1923 = vmatprep.subr.mxu0 0.0
        %1924 = vmatpush1.msra.mxu0 0.0
        %1925 = vmatprep.subr.mxu0 0.0
        %1926 = vmatpush1.msra.mxu0 0.0
        %1927 = vmatprep.subr.mxu0 0.0
        %1928 = vmatpush1.msra.mxu0 0.0
        %1929 = vmatprep.subr.mxu0 0.0
        %1930 = vmatpush1.msra.mxu0 0.0
        %1931 = vmatprep.subr.mxu0 0.0
        %1932 = vmatpush1.msra.mxu0 0.0
        %1933 = vmatprep.subr.mxu0 0.0
        %1934 = vmatpush1.msra.mxu0 0.0
        %1935 = vmatprep.subr.mxu0 0.0
        %1936 = vmatpush1.msra.mxu0 0.0
        %1937 = vmatprep.subr.mxu0 0.0
        %1938 = vmatpush1.msra.mxu0 0.0
        %1939 = vmatprep.subr.mxu0 0.0
        %1940 = vmatpush1.msra.mxu0 0.0
        %1941 = vmatprep.subr.mxu0 0.0
        %1942 = vmatpush1.msra.mxu0 0.0
        %1943 = vmatprep.subr.mxu0 0.0
        %1944 = vmatpush1.msra.mxu0 0.0
        %1945 = vmatprep.subr.mxu0 0.0
        %1946 = vmatpush1.msra.mxu0 0.0
        %1947 = vmatprep.subr.mxu0 0.0
        %1948 = vmatpush1.msra.mxu0 0.0
        %1949 = vmatprep.subr.mxu0 0.0
        %1950 = vmatpush1.msra.mxu0 0.0
        %1951 = vmatprep.subr.mxu0 0.0
        %1952 = vmatpush1.msra.mxu0 0.0
        %1953 = vmatprep.subr.mxu0 0.0
        %1954 = vmatpush1.msra.mxu0 0.0
        %1955 = vmatprep.subr.mxu0 0.0
        %1956 = vmatpush1.msra.mxu0 0.0
        %1957 = vmatprep.subr.mxu0 0.0
        %1958 = vmatpush1.msra.mxu0 0.0
        %1959 = vmatprep.subr.mxu0 0.0
        %1960 = vmatpush1.msra.mxu0 0.0
        %1961 = vmatprep.subr.mxu0 0.0
        %1962 = vmatpush1.msra.mxu0 0.0
        %1963 = vmatprep.subr.mxu0 0.0
        %1964 = vmatpush1.msra.mxu0 0.0
        %1965 = vmatprep.subr.mxu0 0.0
        %1966 = vmatpush1.msra.mxu0 0.0
        %1967 = vmatprep.subr.mxu0 0.0
        %1968 = vmatpush1.msra.mxu0 0.0
        %1969 = vmatprep.subr.mxu0 0.0
        %1970 = vmatpush1.msra.mxu0 0.0
        %1971 = vmatprep.subr.mxu0 0.0
        %1972 = vmatpush1.msra.mxu0 0.0
        %1973 = vmatprep.subr.mxu0 0.0
        %1974 = vmatpush1.msra.mxu0 0.0
        %1975 = vmatprep.subr.mxu0 0.0
        %1976 = vmatpush1.msra.mxu0 0.0
        %1977 = vmatprep.subr.mxu0 0.0
        %1978 = vmatpush1.msra.mxu0 0.0
        %1979 = vmatprep.mubr.f32.mxu0 0.0
        %1980 = vmatmul.mubr.f32.gmra.mrb[0].mxu0 %v1913
        %v1981 = vpop.f32.mrb[0].mxu0
        %v1982 = vadd.f32 0.0, %v1981
        %v1983 = vpop.f32.mrb[0].mxu0
        %1984 = vdwg.mxu0
        %v1985 = vadd.f32 %v1886, %v1982
        %v1986 = vld [vmem:[#allocation8] sm:$0x7]
        %v1987 = vld [vmem:[#allocation3] sm:$0xff]
        %v1988 = vld [vmem:[#allocation3 + $0x8] sm:$0xff]
        %v1989 = vld [vmem:[#allocation3 + $0x18] sm:$0xff]
        %v1990 = vld [vmem:[#allocation3 + $0x20] sm:$0xff]
        %1992 = vrot.lane.b32.xlu0 %v1986, 80
        %v1993 = vpop.permute.xlu0 %1992
        %1998 = vrot.lane.b32.xlu0 %v1987, 1
        %v1999 = vpop.permute.xlu0 %1998
        %2000 = vrot.lane.b32.xlu0 %v1988, 1
        %v2001 = vpop.permute.xlu0 %2000
        %2002 = vrot.lane.b32.xlu0 %v1989, 1
        %v2003 = vpop.permute.xlu0 %2002
        %2004 = vrot.lane.b32.xlu0 %v1990, 1
        %v2005 = vpop.permute.xlu0 %2004
        %v2006 = vsel %vm1125, %v1999, %v2001
        %v2007 = vsel %vm1125, %v2003, %v2005
        %v2010 = vsel %vm1732, %v1993, 0
        %2012 = vmatprep.subr.mxu0 0.0
        %2013 = vmatpush1.msra.mxu0 %v2006
        %2014 = vmatprep.subr.mxu0 0.0
        %2015 = vmatpush1.msra.mxu0 %v2007
        %2016 = vmatprep.subr.mxu0 0.0
        %2017 = vmatpush1.msra.mxu0 0.0
        %2018 = vmatprep.subr.mxu0 0.0
        %2019 = vmatpush1.msra.mxu0 0.0
        %2020 = vmatprep.subr.mxu0 0.0
        %2021 = vmatpush1.msra.mxu0 0.0
        %2022 = vmatprep.subr.mxu0 0.0
        %2023 = vmatpush1.msra.mxu0 0.0
        %2024 = vmatprep.subr.mxu0 0.0
        %2025 = vmatpush1.msra.mxu0 0.0
        %2026 = vmatprep.subr.mxu0 0.0
        %2027 = vmatpush1.msra.mxu0 0.0
        %2028 = vmatprep.subr.mxu0 0.0
        %2029 = vmatpush1.msra.mxu0 0.0
        %2030 = vmatprep.subr.mxu0 0.0
        %2031 = vmatpush1.msra.mxu0 0.0
        %2032 = vmatprep.subr.mxu0 0.0
        %2033 = vmatpush1.msra.mxu0 0.0
        %2034 = vmatprep.subr.mxu0 0.0
        %2035 = vmatpush1.msra.mxu0 0.0
        %2036 = vmatprep.subr.mxu0 0.0
        %2037 = vmatpush1.msra.mxu0 0.0
        %2038 = vmatprep.subr.mxu0 0.0
        %2039 = vmatpush1.msra.mxu0 0.0
        %2040 = vmatprep.subr.mxu0 0.0
        %2041 = vmatpush1.msra.mxu0 0.0
        %2042 = vmatprep.subr.mxu0 0.0
        %2043 = vmatpush1.msra.mxu0 0.0
        %2044 = vmatprep.subr.mxu0 0.0
        %2045 = vmatpush1.msra.mxu0 0.0
        %2046 = vmatprep.subr.mxu0 0.0
        %2047 = vmatpush1.msra.mxu0 0.0
        %2048 = vmatprep.subr.mxu0 0.0
        %2049 = vmatpush1.msra.mxu0 0.0
        %2050 = vmatprep.subr.mxu0 0.0
        %2051 = vmatpush1.msra.mxu0 0.0
        %2052 = vmatprep.subr.mxu0 0.0
        %2053 = vmatpush1.msra.mxu0 0.0
        %2054 = vmatprep.subr.mxu0 0.0
        %2055 = vmatpush1.msra.mxu0 0.0
        %2056 = vmatprep.subr.mxu0 0.0
        %2057 = vmatpush1.msra.mxu0 0.0
        %2058 = vmatprep.subr.mxu0 0.0
        %2059 = vmatpush1.msra.mxu0 0.0
        %2060 = vmatprep.subr.mxu0 0.0
        %2061 = vmatpush1.msra.mxu0 0.0
        %2062 = vmatprep.subr.mxu0 0.0
        %2063 = vmatpush1.msra.mxu0 0.0
        %2064 = vmatprep.subr.mxu0 0.0
        %2065 = vmatpush1.msra.mxu0 0.0
        %2066 = vmatprep.subr.mxu0 0.0
        %2067 = vmatpush1.msra.mxu0 0.0
        %2068 = vmatprep.subr.mxu0 0.0
        %2069 = vmatpush1.msra.mxu0 0.0
        %2070 = vmatprep.subr.mxu0 0.0
        %2071 = vmatpush1.msra.mxu0 0.0
        %2072 = vmatprep.subr.mxu0 0.0
        %2073 = vmatpush1.msra.mxu0 0.0
        %2074 = vmatprep.subr.mxu0 0.0
        %2075 = vmatpush1.msra.mxu0 0.0
        %2076 = vmatprep.mubr.f32.mxu0 0.0
        %2077 = vmatmul.mubr.f32.gmra.mrb[0].mxu0 %v2010
        %v2078 = vpop.f32.mrb[0].mxu0
        %v2079 = vadd.f32 0.0, %v2078
        %v2080 = vpop.f32.mrb[0].mxu0
        %2081 = vdwg.mxu0
        %v2082 = vadd.f32 %v1985, %v2079
        %v2083 = vld [vmem:[#allocation8] sm:$0x7]
        %v2084 = vld [vmem:[#allocation3 + $0x8] sm:$0xff]
        %v2085 = vld [vmem:[#allocation3 + $0x20] sm:$0xff]
        %2087 = vrot.lane.b32.xlu0 %v2083, 64
        %v2088 = vpop.permute.xlu0 %2087
        %v2089 = vsel %vm1732, %v2088, 0
        %2091 = vmatprep.subr.mxu0 0.0
        %2092 = vmatpush1.msra.mxu0 %v2084
        %2093 = vmatprep.subr.mxu0 0.0
        %2094 = vmatpush1.msra.mxu0 %v2085
        %2095 = vmatprep.subr.mxu0 0.0
        %2096 = vmatpush1.msra.mxu0 0.0
        %2097 = vmatprep.subr.mxu0 0.0
        %2098 = vmatpush1.msra.mxu0 0.0
        %2099 = vmatprep.subr.mxu0 0.0
        %2100 = vmatpush1.msra.mxu0 0.0
        %2101 = vmatprep.subr.mxu0 0.0
        %2102 = vmatpush1.msra.mxu0 0.0
        %2103 = vmatprep.subr.mxu0 0.0
        %2104 = vmatpush1.msra.mxu0 0.0
        %2105 = vmatprep.subr.mxu0 0.0
        %2106 = vmatpush1.msra.mxu0 0.0
        %2107 = vmatprep.subr.mxu0 0.0
        %2108 = vmatpush1.msra.mxu0 0.0
        %2109 = vmatprep.subr.mxu0 0.0
        %2110 = vmatpush1.msra.mxu0 0.0
        %2111 = vmatprep.subr.mxu0 0.0
        %2112 = vmatpush1.msra.mxu0 0.0
        %2113 = vmatprep.subr.mxu0 0.0
        %2114 = vmatpush1.msra.mxu0 0.0
        %2115 = vmatprep.subr.mxu0 0.0
        %2116 = vmatpush1.msra.mxu0 0.0
        %2117 = vmatprep.subr.mxu0 0.0
        %2118 = vmatpush1.msra.mxu0 0.0
        %2119 = vmatprep.subr.mxu0 0.0
        %2120 = vmatpush1.msra.mxu0 0.0
        %2121 = vmatprep.subr.mxu0 0.0
        %2122 = vmatpush1.msra.mxu0 0.0
        %2123 = vmatprep.subr.mxu0 0.0
        %2124 = vmatpush1.msra.mxu0 0.0
        %2125 = vmatprep.subr.mxu0 0.0
        %2126 = vmatpush1.msra.mxu0 0.0
        %2127 = vmatprep.subr.mxu0 0.0
        %2128 = vmatpush1.msra.mxu0 0.0
        %2129 = vmatprep.subr.mxu0 0.0
        %2130 = vmatpush1.msra.mxu0 0.0
        %2131 = vmatprep.subr.mxu0 0.0
        %2132 = vmatpush1.msra.mxu0 0.0
        %2133 = vmatprep.subr.mxu0 0.0
        %2134 = vmatpush1.msra.mxu0 0.0
        %2135 = vmatprep.subr.mxu0 0.0
        %2136 = vmatpush1.msra.mxu0 0.0
        %2137 = vmatprep.subr.mxu0 0.0
        %2138 = vmatpush1.msra.mxu0 0.0
        %2139 = vmatprep.subr.mxu0 0.0
        %2140 = vmatpush1.msra.mxu0 0.0
        %2141 = vmatprep.subr.mxu0 0.0
        %2142 = vmatpush1.msra.mxu0 0.0
        %2143 = vmatprep.subr.mxu0 0.0
        %2144 = vmatpush1.msra.mxu0 0.0
        %2145 = vmatprep.subr.mxu0 0.0
        %2146 = vmatpush1.msra.mxu0 0.0
        %2147 = vmatprep.subr.mxu0 0.0
        %2148 = vmatpush1.msra.mxu0 0.0
        %2149 = vmatprep.subr.mxu0 0.0
        %2150 = vmatpush1.msra.mxu0 0.0
        %2151 = vmatprep.subr.mxu0 0.0
        %2152 = vmatpush1.msra.mxu0 0.0
        %2153 = vmatprep.subr.mxu0 0.0
        %2154 = vmatpush1.msra.mxu0 0.0
        %2155 = vmatprep.mubr.f32.mxu0 0.0
        %2156 = vmatmul.mubr.f32.gmra.mrb[0].mxu0 %v2089
        %v2157 = vpop.f32.mrb[0].mxu0
        %v2158 = vadd.f32 0.0, %v2157
        %v2159 = vpop.f32.mrb[0].mxu0
        %2160 = vdwg.mxu0
        %v2161 = vadd.f32 %v2082, %v2158
        %v2162 = vld [vmem:[#allocation8] sm:$0x7]
        %v2163 = vld [vmem:[#allocation3 + $0x8] sm:$0xff]
        %v2164 = vld [vmem:[#allocation3 + $0x20] sm:$0xff]
        %2166 = vrot.lane.b32.xlu0 %v2162, 48
        %v2167 = vpop.permute.xlu0 %2166
        %2170 = vrot.lane.b32.xlu0 %v2163, 127
        %v2171 = vpop.permute.xlu0 %2170
        %2172 = vrot.lane.b32.xlu0 %v2164, 127
        %v2173 = vpop.permute.xlu0 %2172
        %v2176 = vsel %vm1732, %v2167, 0
        %2178 = vmatprep.subr.mxu0 0.0
        %2179 = vmatpush1.msra.mxu0 %v2171
        %2180 = vmatprep.subr.mxu0 0.0
        %2181 = vmatpush1.msra.mxu0 %v2173
        %2182 = vmatprep.subr.mxu0 0.0
        %2183 = vmatpush1.msra.mxu0 0.0
        %2184 = vmatprep.subr.mxu0 0.0
        %2185 = vmatpush1.msra.mxu0 0.0
        %2186 = vmatprep.subr.mxu0 0.0
        %2187 = vmatpush1.msra.mxu0 0.0
        %2188 = vmatprep.subr.mxu0 0.0
        %2189 = vmatpush1.msra.mxu0 0.0
        %2190 = vmatprep.subr.mxu0 0.0
        %2191 = vmatpush1.msra.mxu0 0.0
        %2192 = vmatprep.subr.mxu0 0.0
        %2193 = vmatpush1.msra.mxu0 0.0
        %2194 = vmatprep.subr.mxu0 0.0
        %2195 = vmatpush1.msra.mxu0 0.0
        %2196 = vmatprep.subr.mxu0 0.0
        %2197 = vmatpush1.msra.mxu0 0.0
        %2198 = vmatprep.subr.mxu0 0.0
        %2199 = vmatpush1.msra.mxu0 0.0
        %2200 = vmatprep.subr.mxu0 0.0
        %2201 = vmatpush1.msra.mxu0 0.0
        %2202 = vmatprep.subr.mxu0 0.0
        %2203 = vmatpush1.msra.mxu0 0.0
        %2204 = vmatprep.subr.mxu0 0.0
        %2205 = vmatpush1.msra.mxu0 0.0
        %2206 = vmatprep.subr.mxu0 0.0
        %2207 = vmatpush1.msra.mxu0 0.0
        %2208 = vmatprep.subr.mxu0 0.0
        %2209 = vmatpush1.msra.mxu0 0.0
        %2210 = vmatprep.subr.mxu0 0.0
        %2211 = vmatpush1.msra.mxu0 0.0
        %2212 = vmatprep.subr.mxu0 0.0
        %2213 = vmatpush1.msra.mxu0 0.0
        %2214 = vmatprep.subr.mxu0 0.0
        %2215 = vmatpush1.msra.mxu0 0.0
        %2216 = vmatprep.subr.mxu0 0.0
        %2217 = vmatpush1.msra.mxu0 0.0
        %2218 = vmatprep.subr.mxu0 0.0
        %2219 = vmatpush1.msra.mxu0 0.0
        %2220 = vmatprep.subr.mxu0 0.0
        %2221 = vmatpush1.msra.mxu0 0.0
        %2222 = vmatprep.subr.mxu0 0.0
        %2223 = vmatpush1.msra.mxu0 0.0
        %2224 = vmatprep.subr.mxu0 0.0
        %2225 = vmatpush1.msra.mxu0 0.0
        %2226 = vmatprep.subr.mxu0 0.0
        %2227 = vmatpush1.msra.mxu0 0.0
        %2228 = vmatprep.subr.mxu0 0.0
        %2229 = vmatpush1.msra.mxu0 0.0
        %2230 = vmatprep.subr.mxu0 0.0
        %2231 = vmatpush1.msra.mxu0 0.0
        %2232 = vmatprep.subr.mxu0 0.0
        %2233 = vmatpush1.msra.mxu0 0.0
        %2234 = vmatprep.subr.mxu0 0.0
        %2235 = vmatpush1.msra.mxu0 0.0
        %2236 = vmatprep.subr.mxu0 0.0
        %2237 = vmatpush1.msra.mxu0 0.0
        %2238 = vmatprep.subr.mxu0 0.0
        %2239 = vmatpush1.msra.mxu0 0.0
        %2240 = vmatprep.subr.mxu0 0.0
        %2241 = vmatpush1.msra.mxu0 0.0
        %2242 = vmatprep.mubr.f32.mxu0 0.0
        %2243 = vmatmul.mubr.f32.gmra.mrb[0].mxu0 %v2176
        %v2244 = vpop.f32.mrb[0].mxu0
        %v2245 = vadd.f32 0.0, %v2244
        %v2246 = vpop.f32.mrb[0].mxu0
        %2247 = vdwg.mxu0
        %v2248 = vadd.f32 %v2161, %v2245
        %v2249 = vld [vmem:[#allocation8] sm:$0x7]
        %v2250 = vld [vmem:[#allocation3 + $0x8] sm:$0xff]
        %v2251 = vld [vmem:[#allocation3 + $0x20] sm:$0xff]
        %2253 = vrot.lane.b32.xlu0 %v2249, 32
        %v2254 = vpop.permute.xlu0 %2253
        %2257 = vrot.lane.b32.xlu0 %v2250, 119
        %v2258 = vpop.permute.xlu0 %2257
        %2259 = vrot.lane.b32.xlu0 %v2251, 119
        %v2260 = vpop.permute.xlu0 %2259
        %v2263 = vsel %vm1732, %v2254, 0
        %2265 = vmatprep.subr.mxu0 0.0
        %2266 = vmatpush1.msra.mxu0 %v2258
        %2267 = vmatprep.subr.mxu0 0.0
        %2268 = vmatpush1.msra.mxu0 %v2260
        %2269 = vmatprep.subr.mxu0 0.0
        %2270 = vmatpush1.msra.mxu0 0.0
        %2271 = vmatprep.subr.mxu0 0.0
        %2272 = vmatpush1.msra.mxu0 0.0
        %2273 = vmatprep.subr.mxu0 0.0
        %2274 = vmatpush1.msra.mxu0 0.0
        %2275 = vmatprep.subr.mxu0 0.0
        %2276 = vmatpush1.msra.mxu0 0.0
        %2277 = vmatprep.subr.mxu0 0.0
        %2278 = vmatpush1.msra.mxu0 0.0
        %2279 = vmatprep.subr.mxu0 0.0
        %2280 = vmatpush1.msra.mxu0 0.0
        %2281 = vmatprep.subr.mxu0 0.0
        %2282 = vmatpush1.msra.mxu0 0.0
        %2283 = vmatprep.subr.mxu0 0.0
        %2284 = vmatpush1.msra.mxu0 0.0
        %2285 = vmatprep.subr.mxu0 0.0
        %2286 = vmatpush1.msra.mxu0 0.0
        %2287 = vmatprep.subr.mxu0 0.0
        %2288 = vmatpush1.msra.mxu0 0.0
        %2289 = vmatprep.subr.mxu0 0.0
        %2290 = vmatpush1.msra.mxu0 0.0
        %2291 = vmatprep.subr.mxu0 0.0
        %2292 = vmatpush1.msra.mxu0 0.0
        %2293 = vmatprep.subr.mxu0 0.0
        %2294 = vmatpush1.msra.mxu0 0.0
        %2295 = vmatprep.subr.mxu0 0.0
        %2296 = vmatpush1.msra.mxu0 0.0
        %2297 = vmatprep.subr.mxu0 0.0
        %2298 = vmatpush1.msra.mxu0 0.0
        %2299 = vmatprep.subr.mxu0 0.0
        %2300 = vmatpush1.msra.mxu0 0.0
        %2301 = vmatprep.subr.mxu0 0.0
        %2302 = vmatpush1.msra.mxu0 0.0
        %2303 = vmatprep.subr.mxu0 0.0
        %2304 = vmatpush1.msra.mxu0 0.0
        %2305 = vmatprep.subr.mxu0 0.0
        %2306 = vmatpush1.msra.mxu0 0.0
        %2307 = vmatprep.subr.mxu0 0.0
        %2308 = vmatpush1.msra.mxu0 0.0
        %2309 = vmatprep.subr.mxu0 0.0
        %2310 = vmatpush1.msra.mxu0 0.0
        %2311 = vmatprep.subr.mxu0 0.0
        %2312 = vmatpush1.msra.mxu0 0.0
        %2313 = vmatprep.subr.mxu0 0.0
        %2314 = vmatpush1.msra.mxu0 0.0
        %2315 = vmatprep.subr.mxu0 0.0
        %2316 = vmatpush1.msra.mxu0 0.0
        %2317 = vmatprep.subr.mxu0 0.0
        %2318 = vmatpush1.msra.mxu0 0.0
        %2319 = vmatprep.subr.mxu0 0.0
        %2320 = vmatpush1.msra.mxu0 0.0
        %2321 = vmatprep.subr.mxu0 0.0
        %2322 = vmatpush1.msra.mxu0 0.0
        %2323 = vmatprep.subr.mxu0 0.0
        %2324 = vmatpush1.msra.mxu0 0.0
        %2325 = vmatprep.subr.mxu0 0.0
        %2326 = vmatpush1.msra.mxu0 0.0
        %2327 = vmatprep.subr.mxu0 0.0
        %2328 = vmatpush1.msra.mxu0 0.0
        %2329 = vmatprep.mubr.f32.mxu0 0.0
        %2330 = vmatmul.mubr.f32.gmra.mrb[0].mxu0 %v2263
        %v2331 = vpop.f32.mrb[0].mxu0
        %v2332 = vadd.f32 0.0, %v2331
        %v2333 = vpop.f32.mrb[0].mxu0
        %2334 = vdwg.mxu0
        %v2335 = vadd.f32 %v2248, %v2332
        %v2336 = vld [vmem:[#allocation8] sm:$0x7]
        %v2337 = vld [vmem:[#allocation3 + $0x8] sm:$0xff]
        %v2338 = vld [vmem:[#allocation3 + $0x20] sm:$0xff]
        %2340 = vrot.lane.b32.xlu0 %v2336, 16
        %v2341 = vpop.permute.xlu0 %2340
        %2344 = vrot.lane.b32.xlu0 %v2337, 118
        %v2345 = vpop.permute.xlu0 %2344
        %2346 = vrot.lane.b32.xlu0 %v2338, 118
        %v2347 = vpop.permute.xlu0 %2346
        %v2350 = vsel %vm1732, %v2341, 0
        %2352 = vmatprep.subr.mxu0 0.0
        %2353 = vmatpush1.msra.mxu0 %v2345
        %2354 = vmatprep.subr.mxu0 0.0
        %2355 = vmatpush1.msra.mxu0 %v2347
        %2356 = vmatprep.subr.mxu0 0.0
        %2357 = vmatpush1.msra.mxu0 0.0
        %2358 = vmatprep.subr.mxu0 0.0
        %2359 = vmatpush1.msra.mxu0 0.0
        %2360 = vmatprep.subr.mxu0 0.0
        %2361 = vmatpush1.msra.mxu0 0.0
        %2362 = vmatprep.subr.mxu0 0.0
        %2363 = vmatpush1.msra.mxu0 0.0
        %2364 = vmatprep.subr.mxu0 0.0
        %2365 = vmatpush1.msra.mxu0 0.0
        %2366 = vmatprep.subr.mxu0 0.0
        %2367 = vmatpush1.msra.mxu0 0.0
        %2368 = vmatprep.subr.mxu0 0.0
        %2369 = vmatpush1.msra.mxu0 0.0
        %2370 = vmatprep.subr.mxu0 0.0
        %2371 = vmatpush1.msra.mxu0 0.0
        %2372 = vmatprep.subr.mxu0 0.0
        %2373 = vmatpush1.msra.mxu0 0.0
        %2374 = vmatprep.subr.mxu0 0.0
        %2375 = vmatpush1.msra.mxu0 0.0
        %2376 = vmatprep.subr.mxu0 0.0
        %2377 = vmatpush1.msra.mxu0 0.0
        %2378 = vmatprep.subr.mxu0 0.0
        %2379 = vmatpush1.msra.mxu0 0.0
        %2380 = vmatprep.subr.mxu0 0.0
        %2381 = vmatpush1.msra.mxu0 0.0
        %2382 = vmatprep.subr.mxu0 0.0
        %2383 = vmatpush1.msra.mxu0 0.0
        %2384 = vmatprep.subr.mxu0 0.0
        %2385 = vmatpush1.msra.mxu0 0.0
        %2386 = vmatprep.subr.mxu0 0.0
        %2387 = vmatpush1.msra.mxu0 0.0
        %2388 = vmatprep.subr.mxu0 0.0
        %2389 = vmatpush1.msra.mxu0 0.0
        %2390 = vmatprep.subr.mxu0 0.0
        %2391 = vmatpush1.msra.mxu0 0.0
        %2392 = vmatprep.subr.mxu0 0.0
        %2393 = vmatpush1.msra.mxu0 0.0
        %2394 = vmatprep.subr.mxu0 0.0
        %2395 = vmatpush1.msra.mxu0 0.0
        %2396 = vmatprep.subr.mxu0 0.0
        %2397 = vmatpush1.msra.mxu0 0.0
        %2398 = vmatprep.subr.mxu0 0.0
        %2399 = vmatpush1.msra.mxu0 0.0
        %2400 = vmatprep.subr.mxu0 0.0
        %2401 = vmatpush1.msra.mxu0 0.0
        %2402 = vmatprep.subr.mxu0 0.0
        %2403 = vmatpush1.msra.mxu0 0.0
        %2404 = vmatprep.subr.mxu0 0.0
        %2405 = vmatpush1.msra.mxu0 0.0
        %2406 = vmatprep.subr.mxu0 0.0
        %2407 = vmatpush1.msra.mxu0 0.0
        %2408 = vmatprep.subr.mxu0 0.0
        %2409 = vmatpush1.msra.mxu0 0.0
        %2410 = vmatprep.subr.mxu0 0.0
        %2411 = vmatpush1.msra.mxu0 0.0
        %2412 = vmatprep.subr.mxu0 0.0
        %2413 = vmatpush1.msra.mxu0 0.0
        %2414 = vmatprep.subr.mxu0 0.0
        %2415 = vmatpush1.msra.mxu0 0.0
        %2416 = vmatprep.mubr.f32.mxu0 0.0
        %2417 = vmatmul.mubr.f32.gmra.mrb[0].mxu0 %v2350
        %v2418 = vpop.f32.mrb[0].mxu0
        %v2419 = vadd.f32 0.0, %v2418
        %v2420 = vpop.f32.mrb[0].mxu0
        %2421 = vdwg.mxu0
        %v2422 = vadd.f32 %v2335, %v2419
        %v2423 = vld [vmem:[#allocation8 + $0x4] sm:$0x7]
        %v2424 = vld [vmem:[#allocation3 + $0x8] sm:$0xff]
        %v2425 = vld [vmem:[#allocation3 + $0x20] sm:$0xff]
        %2428 = vrot.lane.b32.xlu0 %v2424, 117
        %v2429 = vpop.permute.xlu0 %2428
        %2430 = vrot.lane.b32.xlu0 %v2425, 117
        %v2431 = vpop.permute.xlu0 %2430
        %v2435 = vsel %vm1732, %v2423, 0
        %2437 = vmatprep.subr.mxu0 0.0
        %2438 = vmatpush1.msra.mxu0 %v2429
        %2439 = vmatprep.subr.mxu0 0.0
        %2440 = vmatpush1.msra.mxu0 %v2431
        %2441 = vmatprep.subr.mxu0 0.0
        %2442 = vmatpush1.msra.mxu0 0.0
        %2443 = vmatprep.subr.mxu0 0.0
        %2444 = vmatpush1.msra.mxu0 0.0
        %2445 = vmatprep.subr.mxu0 0.0
        %2446 = vmatpush1.msra.mxu0 0.0
        %2447 = vmatprep.subr.mxu0 0.0
        %2448 = vmatpush1.msra.mxu0 0.0
        %2449 = vmatprep.subr.mxu0 0.0
        %2450 = vmatpush1.msra.mxu0 0.0
        %2451 = vmatprep.subr.mxu0 0.0
        %2452 = vmatpush1.msra.mxu0 0.0
        %2453 = vmatprep.subr.mxu0 0.0
        %2454 = vmatpush1.msra.mxu0 0.0
        %2455 = vmatprep.subr.mxu0 0.0
        %2456 = vmatpush1.msra.mxu0 0.0
        %2457 = vmatprep.subr.mxu0 0.0
        %2458 = vmatpush1.msra.mxu0 0.0
        %2459 = vmatprep.subr.mxu0 0.0
        %2460 = vmatpush1.msra.mxu0 0.0
        %2461 = vmatprep.subr.mxu0 0.0
        %2462 = vmatpush1.msra.mxu0 0.0
        %2463 = vmatprep.subr.mxu0 0.0
        %2464 = vmatpush1.msra.mxu0 0.0
        %2465 = vmatprep.subr.mxu0 0.0
        %2466 = vmatpush1.msra.mxu0 0.0
        %2467 = vmatprep.subr.mxu0 0.0
        %2468 = vmatpush1.msra.mxu0 0.0
        %2469 = vmatprep.subr.mxu0 0.0
        %2470 = vmatpush1.msra.mxu0 0.0
        %2471 = vmatprep.subr.mxu0 0.0
        %2472 = vmatpush1.msra.mxu0 0.0
        %2473 = vmatprep.subr.mxu0 0.0
        %2474 = vmatpush1.msra.mxu0 0.0
        %2475 = vmatprep.subr.mxu0 0.0
        %2476 = vmatpush1.msra.mxu0 0.0
        %2477 = vmatprep.subr.mxu0 0.0
        %2478 = vmatpush1.msra.mxu0 0.0
        %2479 = vmatprep.subr.mxu0 0.0
        %2480 = vmatpush1.msra.mxu0 0.0
        %2481 = vmatprep.subr.mxu0 0.0
        %2482 = vmatpush1.msra.mxu0 0.0
        %2483 = vmatprep.subr.mxu0 0.0
        %2484 = vmatpush1.msra.mxu0 0.0
        %2485 = vmatprep.subr.mxu0 0.0
        %2486 = vmatpush1.msra.mxu0 0.0
        %2487 = vmatprep.subr.mxu0 0.0
        %2488 = vmatpush1.msra.mxu0 0.0
        %2489 = vmatprep.subr.mxu0 0.0
        %2490 = vmatpush1.msra.mxu0 0.0
        %2491 = vmatprep.subr.mxu0 0.0
        %2492 = vmatpush1.msra.mxu0 0.0
        %2493 = vmatprep.subr.mxu0 0.0
        %2494 = vmatpush1.msra.mxu0 0.0
        %2495 = vmatprep.subr.mxu0 0.0
        %2496 = vmatpush1.msra.mxu0 0.0
        %2497 = vmatprep.subr.mxu0 0.0
        %2498 = vmatpush1.msra.mxu0 0.0
        %2499 = vmatprep.subr.mxu0 0.0
        %2500 = vmatpush1.msra.mxu0 0.0
        %2501 = vmatprep.mubr.f32.mxu0 0.0
        %2502 = vmatmul.mubr.f32.gmra.mrb[0].mxu0 %v2435
        %v2503 = vpop.f32.mrb[0].mxu0
        %v2504 = vadd.f32 0.0, %v2503
        %v2505 = vpop.f32.mrb[0].mxu0
        %2506 = vdwg.mxu0
        %v2507 = vadd.f32 %v2422, %v2504
        %v2508 = vld [vmem:[%s6] sm:$0x7]
        %2510 = vset.pattern.permute.xlu0 0
        %2511 = vperm.xlu0 %2510, %v2508
        %v2512 = vpop.permute.xlu0 %2511
        %v2514 = vadd.f32 %v2507, %v2512
        %v2515 = vmax.f32 %v2514, 0.0
        %v2516 = vsel %vm753, %v2515, 0.0
        %v2517 = vld [vmem:[%s8] sm:$0xff]
        %v2518 = vld [vmem:[%s8 + $0x8] sm:$0xff]
        %v2519 = vld [vmem:[%s8 + $0x10] sm:$0xff]
        %v2520 = vld [vmem:[%s8 + $0x18] sm:$0xff]
        %v2521 = vld [vmem:[%s8 + $0x20] sm:$0xff]
        %v2522 = vld [vmem:[%s8 + $0x28] sm:$0xff]
        %v2523 = vld [vmem:[%s8 + $0x30] sm:$0xff]
        %v2524 = vld [vmem:[%s8 + $0x38] sm:$0xff]
        %v2525 = vld [vmem:[%s8 + $0x40] sm:$0xff]
        %v2526 = vld [vmem:[%s8 + $0x48] sm:$0xff]
        %v2527 = vld [vmem:[%s8 + $0x50] sm:$0xff]
        %v2528 = vld [vmem:[%s8 + $0x58] sm:$0xff]
        %v2529 = vld [vmem:[%s8 + $0x60] sm:$0xff]
        %v2530 = vld [vmem:[%s8 + $0x68] sm:$0xff]
        %v2531 = vld [vmem:[%s8 + $0x70] sm:$0xf]
        %v2532 = vld [vmem:[%s8 + $0x78] sm:$0xf]
        %v2534 = vsel %vm385, %v2516, 0
        %v2537 = vsel %vm428, %v2531, 0
        %v2540 = vsel %vm428, %v2532, 0
        %2542 = vmatprep.subr.mxu0 %v2518
        %2543 = vmatpush1.msra.mxu0 %v2517
        %2544 = vmatprep.subr.mxu0 %v2520
        %2545 = vmatpush1.msra.mxu0 %v2519
        %2546 = vmatprep.subr.mxu0 %v2522
        %2547 = vmatpush1.msra.mxu0 %v2521
        %2548 = vmatprep.subr.mxu0 %v2524
        %2549 = vmatpush1.msra.mxu0 %v2523
        %2550 = vmatprep.subr.mxu0 %v2526
        %2551 = vmatpush1.msra.mxu0 %v2525
        %2552 = vmatprep.subr.mxu0 %v2528
        %2553 = vmatpush1.msra.mxu0 %v2527
        %2554 = vmatprep.subr.mxu0 %v2530
        %2555 = vmatpush1.msra.mxu0 %v2529
        %2556 = vmatprep.subr.mxu0 %v2540
        %2557 = vmatpush1.msra.mxu0 %v2537
        %2558 = vmatprep.subr.mxu0 0.0
        %2559 = vmatpush1.msra.mxu0 0.0
        %2560 = vmatprep.subr.mxu0 0.0
        %2561 = vmatpush1.msra.mxu0 0.0
        %2562 = vmatprep.subr.mxu0 0.0
        %2563 = vmatpush1.msra.mxu0 0.0
        %2564 = vmatprep.subr.mxu0 0.0
        %2565 = vmatpush1.msra.mxu0 0.0
        %2566 = vmatprep.subr.mxu0 0.0
        %2567 = vmatpush1.msra.mxu0 0.0
        %2568 = vmatprep.subr.mxu0 0.0
        %2569 = vmatpush1.msra.mxu0 0.0
        %2570 = vmatprep.subr.mxu0 0.0
        %2571 = vmatpush1.msra.mxu0 0.0
        %2572 = vmatprep.subr.mxu0 0.0
        %2573 = vmatpush1.msra.mxu0 0.0
        %2574 = vmatprep.subr.mxu0 0.0
        %2575 = vmatpush1.msra.mxu0 0.0
        %2576 = vmatprep.subr.mxu0 0.0
        %2577 = vmatpush1.msra.mxu0 0.0
        %2578 = vmatprep.subr.mxu0 0.0
        %2579 = vmatpush1.msra.mxu0 0.0
        %2580 = vmatprep.subr.mxu0 0.0
        %2581 = vmatpush1.msra.mxu0 0.0
        %2582 = vmatprep.subr.mxu0 0.0
        %2583 = vmatpush1.msra.mxu0 0.0
        %2584 = vmatprep.subr.mxu0 0.0
        %2585 = vmatpush1.msra.mxu0 0.0
        %2586 = vmatprep.subr.mxu0 0.0
        %2587 = vmatpush1.msra.mxu0 0.0
        %2588 = vmatprep.subr.mxu0 0.0
        %2589 = vmatpush1.msra.mxu0 0.0
        %2590 = vmatprep.subr.mxu0 0.0
        %2591 = vmatpush1.msra.mxu0 0.0
        %2592 = vmatprep.subr.mxu0 0.0
        %2593 = vmatpush1.msra.mxu0 0.0
        %2594 = vmatprep.subr.mxu0 0.0
        %2595 = vmatpush1.msra.mxu0 0.0
        %2596 = vmatprep.subr.mxu0 0.0
        %2597 = vmatpush1.msra.mxu0 0.0
        %2598 = vmatprep.subr.mxu0 0.0
        %2599 = vmatpush1.msra.mxu0 0.0
        %2600 = vmatprep.subr.mxu0 0.0
        %2601 = vmatpush1.msra.mxu0 0.0
        %2602 = vmatprep.subr.mxu0 0.0
        %2603 = vmatpush1.msra.mxu0 0.0
        %2604 = vmatprep.subr.mxu0 0.0
        %2605 = vmatpush1.msra.mxu0 0.0
        %2606 = vmatprep.mubr.f32.mxu0 0.0
        %2607 = vmatmul.mubr.f32.gmra.mrb[0].mxu0 %v2534
        %v2608 = vpop.f32.mrb[0].mxu0
        %v2609 = vadd.f32 0.0, %v2608
        %v2610 = vpop.f32.mrb[0].mxu0
        %v2611 = vadd.f32 0.0, %v2610
        %2612 = vdwg.mxu0
        %v2615 = vcombine.low %v2609, %v2611
        %2617 = vst [vmem:[%s376] sm:$0x77] %v2615
        %p2618 = scmp.lt.s32.totalorder %s24, 1
        %s2619 = scalar_select %p2618, %s24, 1
        %s2620 = smul.addr %s2619, 2
        %s2621 = smul.addr %s2620, 4
        %s2622 = scalar_lea.vmem %s9, %s2621
        // Predicated region
        $region69: #{tpu_custom_call.1} parent=55 // pred_check
          %p2623 = pneg %p236
        $region70: #{tpu_custom_call.1} parent=55 // pred_check_branch
          %2625 = sbr.rel (%p2623) target = $region72
        $region71: #{tpu_custom_call.1} parent=55 // pred_region
          _
        $region72: #{tpu_custom_call.1} parent=55 // pred_fallthru
          _
      $region56: #{tpu_custom_call.1} parent=5 // pred_fallthru
        _
      %p2626 = scmp.le.s32.totalorder 2, %s19
      // Predicated region
      $region73: #{tpu_custom_call.1} parent=5 // pred_check
        %p2627 = pneg %p2626
      $region74: #{tpu_custom_call.1} parent=5 // pred_check_branch
        %2629 = sbr.rel (%p2627) target = $region76
      $region75: #{tpu_custom_call.1} parent=5 // pred_region
        %s2630 = ssub.s32 %s19, 2
        // Predicated region
        $region77: #{tpu_custom_call.1} parent=75 // pred_check
          %p2631 = pneg %p242
        $region78: #{tpu_custom_call.1} parent=75 // pred_check_branch
          %2633 = sbr.rel (%p2631) target = $region80
        $region79: #{tpu_custom_call.1} parent=75 // pred_region
          %p2634 = scmp.lt.s32.totalorder %s25, 1
          %s2635 = scalar_select %p2634, %s25, 1
          %s2636 = smul.addr %s2635, 2
          %s2637 = smul.addr %s2636, 4
          %s2638 = scalar_lea.vmem %s9, %s2637
        $region80: #{tpu_custom_call.1} parent=75 // pred_fallthru
          _
      $region76: #{tpu_custom_call.1} parent=5 // pred_fallthru
        _
    $region6: #{tpu_custom_call.1} parent=1 // loop_footer
      %s23 = sadd.s32 1, %s19
    $region7: #{tpu_custom_call.1} parent=1 // loop_footer_branch
      %18 = sbr.rel target = $region3
    $region8: #{tpu_custom_call.1} parent=1 // loop_exit
      _
    %2639 = vsyncpa [#allocation5], 1
    %s2640 = scalar_lea.sflag [#allocation5], 1
    %2641 = vsyncpa %s2640, 1
    %2642 = vsyncpa [#allocation7], 1

</llo_original>
